<compile_context>
chip_gen: v6e
topology: v6e:2x2x1
jax: 0.10.0
libtpu: 0.0.40
codegen_flags: <defaults>
</compile_context>

<pallas_src>
import math

import jax
import jax.numpy as jnp
from jax.experimental import pallas as pl
from jax.experimental.pallas import tpu as pltpu

BN_EPS = 1e-5


# ----------------------------- fused forward kernel --------------------------------

def make_alignn_kernel(n_alignn, hidden):
    H = hidden

    def dense_silu(z, w, b):
        y = jnp.dot(z, w, preferred_element_type=jnp.float32) + b
        return y * jax.nn.sigmoid(y)

    def egc(x, e, src_oh, dst_oh, dstT, wn, nb, we, eb, sc, sh):
        """One EdgeGatedGraphConv (PyG aggr='add', residual=True), eval-mode BN folded.

        wn columns: [src_gate | dst_gate | dst_update | src_update]  -> (H, 4H).
        Per PyG naming: src_gate acts on x_i (= x[dst]), dst_gate / dst_update act on
        x_j (= x[src]).  Per-node biases before the gather are exact because every
        one-hot row has exactly one 1.
        """
        node_lin = jnp.dot(x, wn, preferred_element_type=jnp.float32) + nb   # (n, 4H)
        nl16 = node_lin.astype(jnp.bfloat16)

        # Gathers: bf16 one-hot matmuls (0/1 exact on the MXU), f32 accumulation.
        g_dst = jnp.dot(dst_oh, nl16[:, :H],
                        preferred_element_type=jnp.float32)          # src_gate(x_i)
        g_src = jnp.dot(src_oh, nl16[:, H:3 * H],
                        preferred_element_type=jnp.float32)          # [dst_gate|dst_update](x_j)

        edge_lin = jnp.dot(e.astype(jnp.bfloat16), we,               # bf16 x bf16, f32 acc
                           preferred_element_type=jnp.float32) + eb
        gate = g_dst + g_src[:, :H] + edge_lin
        sigma = gate * jax.nn.sigmoid(gate)                          # SiLU, (E, H)
        msg = sigma * g_src[:, H:]

        # Fused scatter: one (n, E) x (E, 2H) bf16 contraction on the PRE-TRANSPOSED
        # destination one-hot -> lane-dense 2H output, single pass, no XLU transpose.
        slab = jnp.concatenate([sigma, msg], axis=-1).astype(jnp.bfloat16)   # (E, 2H)
        scat = jnp.dot(dstT, slab, preferred_element_type=jnp.float32)       # (n, 2H)
        norm = scat[:, :H] + 1e-8
        aggr = scat[:, H:]

        out = node_lin[:, 3 * H:] + aggr * pl.reciprocal(norm, approx=True)  # src_update(x)+aggr
        out = out * sc + sh                                                  # folded eval BN
        out = out * jax.nn.sigmoid(out)                                      # SiLU
        return out + x                                                       # residual

    def kernel(*refs):
        (atom_ref, d_ref, ang_in_ref, ce_ref, ca_ref,
         wa_ref, ba_ref, wee_ref, bee_ref, wt_ref, bt_ref,
         sg_ref, dg_ref, dgT_ref, sl_ref, dl_ref, dlT_ref,
         pool_ref, invc_ref, ow_ref, ob_ref,
         ewn_ref, enb_ref, ewe_ref, eeb_ref, esc_ref, esh_ref,
         nwn_ref, nnb_ref, nwe_ref, neb_ref, nsc_ref, nsh_ref,
         out_ref, x_st, e_st, ang_st) = refs

        layer = pl.program_id(0)

        # ---- prologue (layer 0): RBF expansion + folded-BN embeddings + SiLU --------
        @pl.when(layer == 0)
        def _():
            x_st[...] = dense_silu(atom_ref[...], wa_ref[...], ba_ref[...])
            rbf_e = jnp.exp(-jnp.square(d_ref[...] - ce_ref[...]))       # (E, edge_bins)
            e_st[...] = dense_silu(rbf_e, wee_ref[...], bee_ref[...])
            rbf_a = jnp.exp(-jnp.square(ang_in_ref[...] - ca_ref[...]))  # (EL, tri_bins)
            ang_st[...] = dense_silu(rbf_a, wt_ref[...], bt_ref[...])

        # ---- ALIGNN layers first refresh bond features with an EGC on the line graph
        @pl.when(layer < n_alignn)
        def _():
            e_st[...] = egc(e_st[...], ang_st[...], sl_ref[...], dl_ref[...], dlT_ref[...],
                            ewn_ref[0], enb_ref[0], ewe_ref[0], eeb_ref[0],
                            esc_ref[0], esh_ref[0])

        # ---- node update on the bond graph (ALIGNN second half, or plain GCN layer) -
        x_st[...] = egc(x_st[...], e_st[...], sg_ref[...], dg_ref[...], dgT_ref[...],
                        nwn_ref[0], nnb_ref[0], nwe_ref[0], neb_ref[0],
                        nsc_ref[0], nsh_ref[0])

        # ---- epilogue (last layer): global_mean_pool + output Linear ----------------
        @pl.when(layer == pl.num_programs(0) - 1)
        def _():
            pooled = jnp.dot(pool_ref[...], x_st[...].astype(jnp.bfloat16),
                             preferred_element_type=jnp.float32) * invc_ref[...]
            out_ref[...] = jnp.dot(pooled, ow_ref[...],
                                   preferred_element_type=jnp.float32) + ob_ref[...]

    return kernel


# ----------------------------- host-side glue / wrapper -----------------------------

def one_hot_triplet(edge_index, num_entities):
    # bf16 0/1 gather matrices (exact on the MXU, half the f32 DMA bytes) plus a
    # pre-transposed destination matrix for the scatter contraction (DMA'd once).
    # TODO(synk): for production-scale graphs replace these dense O(E*N) matrices with
    # scalar-prefetched index gathers + segment scatters (O(E*H)).
    src, dst = edge_index[0], edge_index[1]
    src_oh = jax.nn.one_hot(src, num_entities, dtype=jnp.bfloat16)
    dst_oh = jax.nn.one_hot(dst, num_entities, dtype=jnp.bfloat16)
    return src_oh, dst_oh, dst_oh.T


def _rbf_prescale(vmin, vmax, bins, vals):
    # exp(-gamma*(d-c)^2) == exp(-((d*s)-(c*s))^2) with s = 1/spacing  (gamma folded).
    centers = jnp.linspace(vmin, vmax, bins).astype(jnp.float32)
    s = 1.0 / (centers[1] - centers[0])
    return vals.astype(jnp.float32)[:, None] * s, (centers * s)[None, :]


def _pad_bytes(a):
    shp = (1,) + tuple(a.shape) if a.ndim == 1 else tuple(a.shape)
    lead = 1
    for s in shp[:-2]:
        lead *= s
    r = -(-shp[-2] // 8) * 8
    c = -(-shp[-1] // 128) * 128
    return lead * r * c * a.dtype.itemsize


def alignn_forward(params, g, lg, *, radius, edge_bins, tri_bins, hidden):
    N = g["x"].shape[0]
    E = g["edge_index"].shape[1]
    EL = lg["edge_index"].shape[1]
    num_graphs = g["pool_oh"].shape[0]
    n_alignn = params["n_alignn"]
    num_layers = params["num_layers"]
    out_features = params["out_w"].shape[1]

    d_s, cen_e = _rbf_prescale(0.0, radius, edge_bins, g["edge_attr"])
    a_s, cen_a = _rbf_prescale(-1.0, 1.0, tri_bins, lg["edge_attr"])

    sg, dg, dgT = one_hot_triplet(g["edge_index"], N)
    sl, dl, dlT = one_hot_triplet(lg["edge_index"], E)

    const_args = (g["x"], d_s, a_s, cen_e, cen_a,
                  *params["atom_emb"], *params["edge_emb"], *params["angle_emb"],
                  sg, dg, dgT, sl, dl, dlT,
                  g["pool_oh"], g["inv_counts"], params["out_w"], params["out_b"])
    edge_stack = params["edge_stack"]   # 6 arrays, leading dim max(n_alignn, 1)
    node_stack = params["node_stack"]   # 6 arrays, leading dim num_layers

    # Grid-constant inputs: whole-array VMEM residents (single-buffered, DMA'd once).
    vmem_const = pl.BlockSpec(memory_space=pltpu.MemorySpace.VMEM)

    def layer_spec(arr, clamp):
        shp = arr.shape
        zeros = (0,) * (len(shp) - 1)
        if clamp is None:
            imap = lambda l: (l,) + zeros
        else:
            imap = lambda l: (jnp.minimum(l, clamp),) + zeros   # re-use last alignn block
        return pl.BlockSpec((1,) + tuple(shp[1:]), imap)

    in_specs = ([vmem_const] * len(const_args)
                + [layer_spec(a, max(n_alignn, 1) - 1) for a in edge_stack]
                + [layer_spec(a, None) for a in node_stack])

    # Explicit VMEM budget: single-buffered constants + f32 scratch + double-buffered
    # per-layer weight blocks, with (8,128) tile padding and headroom.
    cpad = -(-hidden // 128) * 128
    pad8 = lambda n: -(-n // 8) * 8
    resident = sum(_pad_bytes(a) for a in const_args)
    resident += 2 * sum(_pad_bytes(a[:1]) for a in edge_stack + node_stack)
    resident += 4 * cpad * (pad8(N) + pad8(E) + pad8(EL))
    vmem_limit = int(min(max(2 * resident + (8 << 20), 16 << 20), 100 << 20))

    out = pl.pallas_call(
        make_alignn_kernel(n_alignn, hidden),
        out_shape=jax.ShapeDtypeStruct((num_graphs, out_features), jnp.float32),
        grid_spec=pltpu.PrefetchScalarGridSpec(
            num_scalar_prefetch=0,
            grid=(num_layers,),
            in_specs=in_specs,
            out_specs=pl.BlockSpec((num_graphs, out_features), lambda l: (0, 0)),
            scratch_shapes=[pltpu.VMEM((N, hidden), jnp.float32),
                            pltpu.VMEM((E, hidden), jnp.float32),
                            pltpu.VMEM((EL, hidden), jnp.float32)]),
        # The layer axis is a sequential dependency chain.
        # TODO(synk): for large graphs add a "parallel" edge/node row-tile grid axis so
        # both v7x TensorCores are used, re-budgeting tiles against its 64 MiB VMEM.
        compiler_params=pltpu.CompilerParams(
            dimension_semantics=("arbitrary",),
            vmem_limit_bytes=vmem_limit),
    )(*const_args, *edge_stack, *node_stack)

    return out[:, 0] if out_features == 1 else out


# ----------------------------- parameter init / eval-BN folding ---------------------

def init_linear(key, din, dout):
    k1, k2 = jax.random.split(key)
    lim = 1.0 / math.sqrt(din)
    w = jax.random.uniform(k1, (din, dout), jnp.float32, -lim, lim)
    b = jax.random.uniform(k2, (1, dout), jnp.float32, -lim, lim)
    return w, b


def init_bn(c):
    return {"gamma": jnp.ones((1, c), jnp.float32), "beta": jnp.zeros((1, c), jnp.float32),
            "mean": jnp.zeros((1, c), jnp.float32), "var": jnp.ones((1, c), jnp.float32)}


def bn_scale_shift(bn):
    scale = bn["gamma"] * jax.lax.rsqrt(bn["var"] + BN_EPS)
    shift = bn["beta"] - bn["mean"] * scale
    return scale, shift


def fold_linear_bn(w, b, bn):
    scale, shift = bn_scale_shift(bn)
    return w * scale, b * scale + shift


def init_egc(key, h):
    # order: [src_gate, dst_gate, edge_gate, src_update, dst_update]
    keys = jax.random.split(key, 5)
    ws, bs = zip(*(init_linear(k, h, h) for k in keys))
    # NOTE: the reference also constructs bn_edges but its forward never uses it.
    return {"w": list(ws), "b": list(bs), "bn_nodes": init_bn(h)}


def fold_egc(p):
    w, b = p["w"], p["b"]
    # node-side pack: [src_gate | dst_gate | dst_update | src_update] -> (H, 4H)
    wn = jnp.concatenate([w[0], w[1], w[4], w[3]], axis=1)
    nb = jnp.concatenate([b[0], b[1], b[4], b[3]], axis=1)
    we = w[2].astype(jnp.bfloat16)      # edge-gate weight runs bf16 on the MXU
    eb = b[2]
    sc, sh = bn_scale_shift(p["bn_nodes"])
    return wn, nb, we, eb, sc, sh


def stack_egcs(egc_list, h):
    if not egc_list:   # keep a single zero layer so the (never-taken) branch still types
        egc_list = [{"w": [jnp.zeros((h, h), jnp.float32)] * 5,
                     "b": [jnp.zeros((1, h), jnp.float32)] * 5,
                     "bn_nodes": init_bn(h)}]
    folded = [fold_egc(p) for p in egc_list]
    return tuple(jnp.stack([f[i] for f in folded]) for i in range(6))


def init_model(key, atom_in, hidden, edge_bins, tri_bins,
               alignn_layers, gcn_layers, out_features=1):
    ks = list(jax.random.split(key, 4 + 2 * alignn_layers + gcn_layers))
    p = {}
    p["atom_emb"] = fold_linear_bn(*init_linear(ks.pop(), atom_in, hidden), init_bn(hidden))
    p["edge_emb"] = fold_linear_bn(*init_linear(ks.pop(), edge_bins, hidden), init_bn(hidden))
    p["angle_emb"] = fold_linear_bn(*init_linear(ks.pop(), tri_bins, hidden), init_bn(hidden))
    alignn = [{"edge_update": init_egc(ks.pop(), hidden),
               "node_update": init_egc(ks.pop(), hidden)} for _ in range(alignn_layers)]
    gcn = [init_egc(ks.pop(), hidden) for _ in range(gcn_layers)]
    p["edge_stack"] = stack_egcs([l["edge_update"] for l in alignn], hidden)
    p["node_stack"] = stack_egcs([l["node_update"] for l in alignn] + gcn, hidden)
    p["n_alignn"] = alignn_layers
    p["num_layers"] = alignn_layers + gcn_layers
    p["out_w"], p["out_b"] = init_linear(ks.pop(), hidden, out_features)
    return p


# ----------------------------- main --------------------------------------------------

if __name__ == "__main__":
    key = jax.random.PRNGKey(0)

    # model config (small)
    ATOM_IN, HIDDEN = 16, 32
    EDGE_BINS, TRI_BINS, RADIUS = 40, 20, 10.0
    ALIGNN_LAYERS, GCN_LAYERS = 2, 2

    # synthetic batch: 2 graphs, 8 nodes each, 16 edges each; line graph over the edges
    G, NPG, EPG = 2, 8, 16
    N, E, EL = G * NPG, G * EPG, 48

    ks = jax.random.split(key, 10)
    atom_x = jax.random.normal(ks[0], (N, ATOM_IN), jnp.float32)
    distances = jax.random.uniform(ks[1], (E,), jnp.float32, 0.5, 9.0)
    angles = jax.random.uniform(ks[2], (EL,), jnp.float32, -1.0, 1.0)

    src = jnp.concatenate([jax.random.randint(ks[3], (EPG,), 0, NPG),
                           jax.random.randint(ks[4], (EPG,), 0, NPG) + NPG])
    dst = jnp.concatenate([jax.random.randint(ks[5], (EPG,), 0, NPG),
                           jax.random.randint(ks[6], (EPG,), 0, NPG) + NPG])
    edge_index_g = jnp.stack([src, dst])                          # (2, E)

    lsrc = jax.random.randint(ks[7], (EL,), 0, E)
    ldst = jax.random.randint(ks[8], (EL,), 0, E)
    edge_index_lg = jnp.stack([lsrc, ldst])                       # (2, EL)

    batch = jnp.repeat(jnp.arange(G), NPG)                        # (N,)
    member = batch[None, :] == jnp.arange(G)[:, None]             # (G, N)
    pool_oh = member.astype(jnp.bfloat16)                         # 0/1 membership (bf16)
    inv_counts = 1.0 / jnp.sum(member.astype(jnp.float32), axis=1, keepdims=True)

    data_g = {"x": atom_x, "edge_index": edge_index_g, "edge_attr": distances,
              "pool_oh": pool_oh, "inv_counts": inv_counts}
    data_lg = {"edge_index": edge_index_lg, "edge_attr": angles}

    params = init_model(ks[9], ATOM_IN, HIDDEN, EDGE_BINS, TRI_BINS,
                        ALIGNN_LAYERS, GCN_LAYERS, out_features=1)

    out = alignn_forward(params, data_g, data_lg,
                         radius=RADIUS, edge_bins=EDGE_BINS, tri_bins=TRI_BINS,
                         hidden=HIDDEN)
    out = jax.block_until_ready(out)
    assert out.shape == (G,) and bool(jnp.all(jnp.isfinite(out)))
    print("KERNEL_OK")
</pallas_src>

<mosaic_0001>
module attributes {stable_mosaic.version = 11 : i64} {
  func.func @kernel(%arg0: i32, %arg1: memref<16x16xf32, #tpu.memory_space<vmem>>, %arg2: memref<32x1xf32, #tpu.memory_space<vmem>>, %arg3: memref<48x1xf32, #tpu.memory_space<vmem>>, %arg4: memref<1x40xf32, #tpu.memory_space<vmem>>, %arg5: memref<1x20xf32, #tpu.memory_space<vmem>>, %arg6: memref<16x32xf32, #tpu.memory_space<vmem>>, %arg7: memref<1x32xf32, #tpu.memory_space<vmem>>, %arg8: memref<40x32xf32, #tpu.memory_space<vmem>>, %arg9: memref<1x32xf32, #tpu.memory_space<vmem>>, %arg10: memref<20x32xf32, #tpu.memory_space<vmem>>, %arg11: memref<1x32xf32, #tpu.memory_space<vmem>>, %arg12: memref<32x16xbf16, #tpu.memory_space<vmem>>, %arg13: memref<32x16xbf16, #tpu.memory_space<vmem>>, %arg14: memref<16x32xbf16, #tpu.memory_space<vmem>>, %arg15: memref<48x32xbf16, #tpu.memory_space<vmem>>, %arg16: memref<48x32xbf16, #tpu.memory_space<vmem>>, %arg17: memref<32x48xbf16, #tpu.memory_space<vmem>>, %arg18: memref<2x16xbf16, #tpu.memory_space<vmem>>, %arg19: memref<2x1xf32, #tpu.memory_space<vmem>>, %arg20: memref<32x1xf32, #tpu.memory_space<vmem>>, %arg21: memref<1x1xf32, #tpu.memory_space<vmem>>, %arg22: memref<1x32x128xf32, #tpu.memory_space<vmem>>, %arg23: memref<1x1x128xf32, #tpu.memory_space<vmem>>, %arg24: memref<1x32x32xbf16, #tpu.memory_space<vmem>>, %arg25: memref<1x1x32xf32, #tpu.memory_space<vmem>>, %arg26: memref<1x1x32xf32, #tpu.memory_space<vmem>>, %arg27: memref<1x1x32xf32, #tpu.memory_space<vmem>>, %arg28: memref<1x32x128xf32, #tpu.memory_space<vmem>>, %arg29: memref<1x1x128xf32, #tpu.memory_space<vmem>>, %arg30: memref<1x32x32xbf16, #tpu.memory_space<vmem>>, %arg31: memref<1x1x32xf32, #tpu.memory_space<vmem>>, %arg32: memref<1x1x32xf32, #tpu.memory_space<vmem>>, %arg33: memref<1x1x32xf32, #tpu.memory_space<vmem>>, %arg34: memref<2x1xf32, #tpu.memory_space<vmem>>, %arg35: memref<16x32xf32, #tpu.memory_space<vmem>>, %arg36: memref<32x32xf32, #tpu.memory_space<vmem>>, %arg37: memref<48x32xf32, #tpu.memory_space<vmem>>) attributes {dimension_semantics = [#tpu.dimension_semantics<arbitrary>], iteration_bounds = array<i64: 4>, scalar_prefetch = 0 : i64, scratch_operands = 3 : i64, tpu.core_type = #tpu.core_type<tc>, window_params = [{pipeline_mode = #tpu.pipeline_mode<synchronous>, transform_indices = @transform_0, window_bounds = array<i64: 16, 16>}, {pipeline_mode = #tpu.pipeline_mode<synchronous>, transform_indices = @transform_1, window_bounds = array<i64: 32, 1>}, {pipeline_mode = #tpu.pipeline_mode<synchronous>, transform_indices = @transform_2, window_bounds = array<i64: 48, 1>}, {pipeline_mode = #tpu.pipeline_mode<synchronous>, transform_indices = @transform_3, window_bounds = array<i64: 1, 40>}, {pipeline_mode = #tpu.pipeline_mode<synchronous>, transform_indices = @transform_4, window_bounds = array<i64: 1, 20>}, {pipeline_mode = #tpu.pipeline_mode<synchronous>, transform_indices = @transform_5, window_bounds = array<i64: 16, 32>}, {pipeline_mode = #tpu.pipeline_mode<synchronous>, transform_indices = @transform_6, window_bounds = array<i64: 1, 32>}, {pipeline_mode = #tpu.pipeline_mode<synchronous>, transform_indices = @transform_7, window_bounds = array<i64: 40, 32>}, {pipeline_mode = #tpu.pipeline_mode<synchronous>, transform_indices = @transform_8, window_bounds = array<i64: 1, 32>}, {pipeline_mode = #tpu.pipeline_mode<synchronous>, transform_indices = @transform_9, window_bounds = array<i64: 20, 32>}, {pipeline_mode = #tpu.pipeline_mode<synchronous>, transform_indices = @transform_10, window_bounds = array<i64: 1, 32>}, {pipeline_mode = #tpu.pipeline_mode<synchronous>, transform_indices = @transform_11, window_bounds = array<i64: 32, 16>}, {pipeline_mode = #tpu.pipeline_mode<synchronous>, transform_indices = @transform_12, window_bounds = array<i64: 32, 16>}, {pipeline_mode = #tpu.pipeline_mode<synchronous>, transform_indices = @transform_13, window_bounds = array<i64: 16, 32>}, {pipeline_mode = #tpu.pipeline_mode<synchronous>, transform_indices = @transform_14, window_bounds = array<i64: 48, 32>}, {pipeline_mode = #tpu.pipeline_mode<synchronous>, transform_indices = @transform_15, window_bounds = array<i64: 48, 32>}, {pipeline_mode = #tpu.pipeline_mode<synchronous>, transform_indices = @transform_16, window_bounds = array<i64: 32, 48>}, {pipeline_mode = #tpu.pipeline_mode<synchronous>, transform_indices = @transform_17, window_bounds = array<i64: 2, 16>}, {pipeline_mode = #tpu.pipeline_mode<synchronous>, transform_indices = @transform_18, window_bounds = array<i64: 2, 1>}, {pipeline_mode = #tpu.pipeline_mode<synchronous>, transform_indices = @transform_19, window_bounds = array<i64: 32, 1>}, {pipeline_mode = #tpu.pipeline_mode<synchronous>, transform_indices = @transform_20, window_bounds = array<i64: 1, 1>}, {transform_indices = @transform_21, window_bounds = array<i64: 1, 32, 128>}, {transform_indices = @transform_22, window_bounds = array<i64: 1, 1, 128>}, {transform_indices = @transform_23, window_bounds = array<i64: 1, 32, 32>}, {transform_indices = @transform_24, window_bounds = array<i64: 1, 1, 32>}, {transform_indices = @transform_25, window_bounds = array<i64: 1, 1, 32>}, {transform_indices = @transform_26, window_bounds = array<i64: 1, 1, 32>}, {transform_indices = @transform_27, window_bounds = array<i64: 1, 32, 128>}, {transform_indices = @transform_28, window_bounds = array<i64: 1, 1, 128>}, {transform_indices = @transform_29, window_bounds = array<i64: 1, 32, 32>}, {transform_indices = @transform_30, window_bounds = array<i64: 1, 1, 32>}, {transform_indices = @transform_31, window_bounds = array<i64: 1, 1, 32>}, {transform_indices = @transform_32, window_bounds = array<i64: 1, 1, 32>}, {pipeline_mode = #tpu.pipeline_mode<synchronous>, transform_indices = @transform_33, window_bounds = array<i64: 2, 1>}]} {
    %c0_i32 = arith.constant 0 : i32
    %0 = arith.cmpi eq, %arg0, %c0_i32 : i32
    %1 = arith.extui %0 : i1 to i32
    %c0_i32_0 = arith.constant 0 : i32
    %2 = arith.cmpi ne, %1, %c0_i32_0 : i32
    scf.if %2 {
      %c0_39 = arith.constant 0 : index
      %c0_40 = arith.constant 0 : index
      %72 = vector.load %arg1[%c0_39, %c0_40] : memref<16x16xf32, #tpu.memory_space<vmem>>, vector<16x16xf32>
      %c0_41 = arith.constant 0 : index
      %c0_42 = arith.constant 0 : index
      %73 = vector.load %arg6[%c0_41, %c0_42] : memref<16x32xf32, #tpu.memory_space<vmem>>, vector<16x32xf32>
      %c0_43 = arith.constant 0 : index
      %c0_44 = arith.constant 0 : index
      %74 = vector.load %arg7[%c0_43, %c0_44] : memref<1x32xf32, #tpu.memory_space<vmem>>, vector<1x32xf32>
      %cst_45 = arith.constant dense<0.000000e+00> : vector<16x32xf32>
      %75 = tpu.matmul %72, %73, %cst_45 {dimension_numbers = #tpu.dot_dimension_numbers<[1], [0], [0], [1], [0, 0, 1, 1], [], []>} : vector<16x16xf32>, vector<16x32xf32>, vector<16x32xf32> -> vector<16x32xf32>
      %76 = vector.broadcast %74 : vector<1x32xf32> to vector<16x32xf32>
      %77 = arith.addf %75, %76 : vector<16x32xf32>
      %78 = arith.negf %77 : vector<16x32xf32>
      %79 = math.exp %78 : vector<16x32xf32>
      %cst_46 = arith.constant 1.000000e+00 : f32
      %80 = vector.broadcast %cst_46 : f32 to vector<16x32xf32>
      %81 = arith.addf %80, %79 : vector<16x32xf32>
      %82 = arith.divf %80, %81 : vector<16x32xf32>
      %83 = arith.mulf %77, %82 : vector<16x32xf32>
      %c0_47 = arith.constant 0 : index
      %c0_48 = arith.constant 0 : index
      %84 = vector.load %arg35[%c0_47, %c0_48] : memref<16x32xf32, #tpu.memory_space<vmem>>, vector<16x32xf32>
      tpu.vector_store %arg35[%c0_47, %c0_48], %83 {strides = array<i32>} : memref<16x32xf32, #tpu.memory_space<vmem>>, vector<16x32xf32>,
      %c0_49 = arith.constant 0 : index
      %c0_50 = arith.constant 0 : index
      %85 = vector.load %arg2[%c0_49, %c0_50] : memref<32x1xf32, #tpu.memory_space<vmem>>, vector<32x1xf32>
      %c0_51 = arith.constant 0 : index
      %c0_52 = arith.constant 0 : index
      %86 = vector.load %arg4[%c0_51, %c0_52] : memref<1x40xf32, #tpu.memory_space<vmem>>, vector<1x40xf32>
      %87 = vector.broadcast %85 : vector<32x1xf32> to vector<32x40xf32>
      %88 = vector.broadcast %86 : vector<1x40xf32> to vector<32x40xf32>
      %89 = arith.subf %87, %88 : vector<32x40xf32>
      %90 = arith.mulf %89, %89 : vector<32x40xf32>
      %cst_53 = arith.constant 0.000000e+00 : f32
      %91 = vector.broadcast %cst_53 : f32 to vector<32x40xf32>
      %92 = arith.subf %91, %90 : vector<32x40xf32>
      %93 = math.exp %92 : vector<32x40xf32>
      %c0_54 = arith.constant 0 : index
      %c0_55 = arith.constant 0 : index
      %94 = vector.load %arg8[%c0_54, %c0_55] : memref<40x32xf32, #tpu.memory_space<vmem>>, vector<40x32xf32>
      %c0_56 = arith.constant 0 : index
      %c0_57 = arith.constant 0 : index
      %95 = vector.load %arg9[%c0_56, %c0_57] : memref<1x32xf32, #tpu.memory_space<vmem>>, vector<1x32xf32>
      %cst_58 = arith.constant dense<0.000000e+00> : vector<32x32xf32>
      %96 = tpu.matmul %93, %94, %cst_58 {dimension_numbers = #tpu.dot_dimension_numbers<[1], [0], [0], [1], [0, 0, 1, 1], [], []>} : vector<32x40xf32>, vector<40x32xf32>, vector<32x32xf32> -> vector<32x32xf32>
      %97 = vector.broadcast %95 : vector<1x32xf32> to vector<32x32xf32>
      %98 = arith.addf %96, %97 : vector<32x32xf32>
      %99 = arith.negf %98 : vector<32x32xf32>
      %100 = math.exp %99 : vector<32x32xf32>
      %cst_59 = arith.constant 1.000000e+00 : f32
      %101 = vector.broadcast %cst_59 : f32 to vector<32x32xf32>
      %102 = arith.addf %101, %100 : vector<32x32xf32>
      %103 = arith.divf %101, %102 : vector<32x32xf32>
      %104 = arith.mulf %98, %103 : vector<32x32xf32>
      %c0_60 = arith.constant 0 : index
      %c0_61 = arith.constant 0 : index
      %105 = vector.load %arg36[%c0_60, %c0_61] : memref<32x32xf32, #tpu.memory_space<vmem>>, vector<32x32xf32>
      tpu.vector_store %arg36[%c0_60, %c0_61], %104 {strides = array<i32>} : memref<32x32xf32, #tpu.memory_space<vmem>>, vector<32x32xf32>,
      %c0_62 = arith.constant 0 : index
      %c0_63 = arith.constant 0 : index
      %106 = vector.load %arg3[%c0_62, %c0_63] : memref<48x1xf32, #tpu.memory_space<vmem>>, vector<48x1xf32>
      %c0_64 = arith.constant 0 : index
      %c0_65 = arith.constant 0 : index
      %107 = vector.load %arg5[%c0_64, %c0_65] : memref<1x20xf32, #tpu.memory_space<vmem>>, vector<1x20xf32>
      %108 = vector.broadcast %106 : vector<48x1xf32> to vector<48x20xf32>
      %109 = vector.broadcast %107 : vector<1x20xf32> to vector<48x20xf32>
      %110 = arith.subf %108, %109 : vector<48x20xf32>
      %111 = arith.mulf %110, %110 : vector<48x20xf32>
      %cst_66 = arith.constant 0.000000e+00 : f32
      %112 = vector.broadcast %cst_66 : f32 to vector<48x20xf32>
      %113 = arith.subf %112, %111 : vector<48x20xf32>
      %114 = math.exp %113 : vector<48x20xf32>
      %c0_67 = arith.constant 0 : index
      %c0_68 = arith.constant 0 : index
      %115 = vector.load %arg10[%c0_67, %c0_68] : memref<20x32xf32, #tpu.memory_space<vmem>>, vector<20x32xf32>
      %c0_69 = arith.constant 0 : index
      %c0_70 = arith.constant 0 : index
      %116 = vector.load %arg11[%c0_69, %c0_70] : memref<1x32xf32, #tpu.memory_space<vmem>>, vector<1x32xf32>
      %cst_71 = arith.constant dense<0.000000e+00> : vector<48x32xf32>
      %117 = tpu.matmul %114, %115, %cst_71 {dimension_numbers = #tpu.dot_dimension_numbers<[1], [0], [0], [1], [0, 0, 1, 1], [], []>} : vector<48x20xf32>, vector<20x32xf32>, vector<48x32xf32> -> vector<48x32xf32>
      %118 = vector.broadcast %116 : vector<1x32xf32> to vector<48x32xf32>
      %119 = arith.addf %117, %118 : vector<48x32xf32>
      %120 = arith.negf %119 : vector<48x32xf32>
      %121 = math.exp %120 : vector<48x32xf32>
      %cst_72 = arith.constant 1.000000e+00 : f32
      %122 = vector.broadcast %cst_72 : f32 to vector<48x32xf32>
      %123 = arith.addf %122, %121 : vector<48x32xf32>
      %124 = arith.divf %122, %123 : vector<48x32xf32>
      %125 = arith.mulf %119, %124 : vector<48x32xf32>
      %c0_73 = arith.constant 0 : index
      %c0_74 = arith.constant 0 : index
      %126 = vector.load %arg37[%c0_73, %c0_74] : memref<48x32xf32, #tpu.memory_space<vmem>>, vector<48x32xf32>
      tpu.vector_store %arg37[%c0_73, %c0_74], %125 {strides = array<i32>} : memref<48x32xf32, #tpu.memory_space<vmem>>, vector<48x32xf32>,
    } else {
    }
    %c2_i32 = arith.constant 2 : i32
    %3 = arith.cmpi slt, %arg0, %c2_i32 : i32
    %4 = arith.extui %3 : i1 to i32
    %c0_i32_1 = arith.constant 0 : i32
    %5 = arith.cmpi ne, %4, %c0_i32_1 : i32
    scf.if %5 {
      %c0_39 = arith.constant 0 : index
      %c0_40 = arith.constant 0 : index
      %72 = vector.load %arg36[%c0_39, %c0_40] : memref<32x32xf32, #tpu.memory_space<vmem>>, vector<32x32xf32>
      %c0_41 = arith.constant 0 : index
      %c0_42 = arith.constant 0 : index
      %73 = vector.load %arg37[%c0_41, %c0_42] : memref<48x32xf32, #tpu.memory_space<vmem>>, vector<48x32xf32>
      %c0_43 = arith.constant 0 : index
      %c0_44 = arith.constant 0 : index
      %74 = vector.load %arg15[%c0_43, %c0_44] : memref<48x32xbf16, #tpu.memory_space<vmem>>, vector<48x32xbf16>
      %c0_45 = arith.constant 0 : index
      %c0_46 = arith.constant 0 : index
      %75 = vector.load %arg16[%c0_45, %c0_46] : memref<48x32xbf16, #tpu.memory_space<vmem>>, vector<48x32xbf16>
      %c0_47 = arith.constant 0 : index
      %c0_48 = arith.constant 0 : index
      %76 = vector.load %arg17[%c0_47, %c0_48] : memref<32x48xbf16, #tpu.memory_space<vmem>>, vector<32x48xbf16>
      %c0_49 = arith.constant 0 : index
      %c0_50 = arith.constant 0 : index
      %c0_51 = arith.constant 0 : index
      %77 = vector.load %arg22[%c0_49, %c0_50, %c0_51] : memref<1x32x128xf32, #tpu.memory_space<vmem>>, vector<1x32x128xf32>
      %78 = vector.shape_cast %77 : vector<1x32x128xf32> to vector<32x128xf32>
      %c0_52 = arith.constant 0 : index
      %c0_53 = arith.constant 0 : index
      %c0_54 = arith.constant 0 : index
      %79 = vector.load %arg23[%c0_52, %c0_53, %c0_54] : memref<1x1x128xf32, #tpu.memory_space<vmem>>, vector<1x1x128xf32>
      %80 = vector.shape_cast %79 : vector<1x1x128xf32> to vector<1x128xf32>
      %c0_55 = arith.constant 0 : index
      %c0_56 = arith.constant 0 : index
      %c0_57 = arith.constant 0 : index
      %81 = vector.load %arg24[%c0_55, %c0_56, %c0_57] : memref<1x32x32xbf16, #tpu.memory_space<vmem>>, vector<1x32x32xbf16>
      %82 = vector.shape_cast %81 : vector<1x32x32xbf16> to vector<32x32xbf16>
      %c0_58 = arith.constant 0 : index
      %c0_59 = arith.constant 0 : index
      %c0_60 = arith.constant 0 : index
      %83 = vector.load %arg25[%c0_58, %c0_59, %c0_60] : memref<1x1x32xf32, #tpu.memory_space<vmem>>, vector<1x1x32xf32>
      %84 = vector.shape_cast %83 : vector<1x1x32xf32> to vector<1x32xf32>
      %c0_61 = arith.constant 0 : index
      %c0_62 = arith.constant 0 : index
      %c0_63 = arith.constant 0 : index
      %85 = vector.load %arg26[%c0_61, %c0_62, %c0_63] : memref<1x1x32xf32, #tpu.memory_space<vmem>>, vector<1x1x32xf32>
      %86 = vector.shape_cast %85 : vector<1x1x32xf32> to vector<1x32xf32>
      %c0_64 = arith.constant 0 : index
      %c0_65 = arith.constant 0 : index
      %c0_66 = arith.constant 0 : index
      %87 = vector.load %arg27[%c0_64, %c0_65, %c0_66] : memref<1x1x32xf32, #tpu.memory_space<vmem>>, vector<1x1x32xf32>
      %88 = vector.shape_cast %87 : vector<1x1x32xf32> to vector<1x32xf32>
      %cst_67 = arith.constant dense<0.000000e+00> : vector<32x128xf32>
      %89 = tpu.matmul %72, %78, %cst_67 {dimension_numbers = #tpu.dot_dimension_numbers<[1], [0], [0], [1], [0, 0, 1, 1], [], []>} : vector<32x32xf32>, vector<32x128xf32>, vector<32x128xf32> -> vector<32x128xf32>
      %90 = vector.broadcast %80 : vector<1x128xf32> to vector<32x128xf32>
      %91 = arith.addf %89, %90 : vector<32x128xf32>
      %92 = arith.truncf %91 : vector<32x128xf32> to vector<32x128xbf16>
      %93 = vector.extract_strided_slice %92 {offsets = [0, 0], sizes = [32, 32], strides = [1, 1]} : vector<32x128xbf16> to vector<32x32xbf16>
      %cst_68 = arith.constant dense<0.000000e+00> : vector<48x32xf32>
      %94 = tpu.matmul %75, %93, %cst_68 {dimension_numbers = #tpu.dot_dimension_numbers<[1], [0], [0], [1], [0, 0, 1, 1], [], []>} : vector<48x32xbf16>, vector<32x32xbf16>, vector<48x32xf32> -> vector<48x32xf32>
      %95 = vector.extract_strided_slice %92 {offsets = [0, 32], sizes = [32, 64], strides = [1, 1]} : vector<32x128xbf16> to vector<32x64xbf16>
      %cst_69 = arith.constant dense<0.000000e+00> : vector<48x64xf32>
      %96 = tpu.matmul %74, %95, %cst_69 {dimension_numbers = #tpu.dot_dimension_numbers<[1], [0], [0], [1], [0, 0, 1, 1], [], []>} : vector<48x32xbf16>, vector<32x64xbf16>, vector<48x64xf32> -> vector<48x64xf32>
      %97 = arith.truncf %73 : vector<48x32xf32> to vector<48x32xbf16>
      %cst_70 = arith.constant dense<0.000000e+00> : vector<48x32xf32>
      %98 = tpu.matmul %97, %82, %cst_70 {dimension_numbers = #tpu.dot_dimension_numbers<[1], [0], [0], [1], [0, 0, 1, 1], [], []>} : vector<48x32xbf16>, vector<32x32xbf16>, vector<48x32xf32> -> vector<48x32xf32>
      %99 = vector.broadcast %84 : vector<1x32xf32> to vector<48x32xf32>
      %100 = arith.addf %98, %99 : vector<48x32xf32>
      %101 = vector.extract_strided_slice %96 {offsets = [0, 0], sizes = [48, 32], strides = [1, 1]} : vector<48x64xf32> to vector<48x32xf32>
      %102 = arith.addf %94, %101 : vector<48x32xf32>
      %103 = arith.addf %102, %100 : vector<48x32xf32>
      %104 = arith.negf %103 : vector<48x32xf32>
      %105 = math.exp %104 : vector<48x32xf32>
      %cst_71 = arith.constant 1.000000e+00 : f32
      %106 = vector.broadcast %cst_71 : f32 to vector<48x32xf32>
      %107 = arith.addf %106, %105 : vector<48x32xf32>
      %108 = arith.divf %106, %107 : vector<48x32xf32>
      %109 = arith.mulf %103, %108 : vector<48x32xf32>
      %110 = vector.extract_strided_slice %96 {offsets = [0, 32], sizes = [48, 32], strides = [1, 1]} : vector<48x64xf32> to vector<48x32xf32>
      %111 = arith.mulf %109, %110 : vector<48x32xf32>
      %112 = tpu.concatenate %109, %111 in 1 : vector<48x32xf32>, vector<48x32xf32> -> vector<48x64xf32>
      %113 = arith.truncf %112 : vector<48x64xf32> to vector<48x64xbf16>
      %cst_72 = arith.constant dense<0.000000e+00> : vector<32x64xf32>
      %114 = tpu.matmul %76, %113, %cst_72 {dimension_numbers = #tpu.dot_dimension_numbers<[1], [0], [0], [1], [0, 0, 1, 1], [], []>} : vector<32x48xbf16>, vector<48x64xbf16>, vector<32x64xf32> -> vector<32x64xf32>
      %115 = vector.extract_strided_slice %114 {offsets = [0, 0], sizes = [32, 32], strides = [1, 1]} : vector<32x64xf32> to vector<32x32xf32>
      %cst_73 = arith.constant 9.99999993E-9 : f32
      %116 = vector.broadcast %cst_73 : f32 to vector<32x32xf32>
      %117 = arith.addf %115, %116 : vector<32x32xf32>
      %118 = vector.extract_strided_slice %114 {offsets = [0, 32], sizes = [32, 32], strides = [1, 1]} : vector<32x64xf32> to vector<32x32xf32>
      %119 = vector.extract_strided_slice %91 {offsets = [0, 96], sizes = [32, 32], strides = [1, 1]} : vector<32x128xf32> to vector<32x32xf32>
      %120 = tpu.reciprocal %117 {approx = true} : vector<32x32xf32> -> vector<32x32xf32>
      %121 = arith.mulf %118, %120 : vector<32x32xf32>
      %122 = arith.addf %119, %121 : vector<32x32xf32>
      %123 = vector.broadcast %86 : vector<1x32xf32> to vector<32x32xf32>
      %124 = arith.mulf %122, %123 : vector<32x32xf32>
      %125 = vector.broadcast %88 : vector<1x32xf32> to vector<32x32xf32>
      %126 = arith.addf %124, %125 : vector<32x32xf32>
      %127 = arith.negf %126 : vector<32x32xf32>
      %128 = math.exp %127 : vector<32x32xf32>
      %cst_74 = arith.constant 1.000000e+00 : f32
      %129 = vector.broadcast %cst_74 : f32 to vector<32x32xf32>
      %130 = arith.addf %129, %128 : vector<32x32xf32>
      %131 = arith.divf %129, %130 : vector<32x32xf32>
      %132 = arith.mulf %126, %131 : vector<32x32xf32>
      %133 = arith.addf %132, %72 : vector<32x32xf32>
      %c0_75 = arith.constant 0 : index
      %c0_76 = arith.constant 0 : index
      %134 = vector.load %arg36[%c0_75, %c0_76] : memref<32x32xf32, #tpu.memory_space<vmem>>, vector<32x32xf32>
      tpu.vector_store %arg36[%c0_75, %c0_76], %133 {strides = array<i32>} : memref<32x32xf32, #tpu.memory_space<vmem>>, vector<32x32xf32>,
    } else {
    }
    %c0 = arith.constant 0 : index
    %c0_2 = arith.constant 0 : index
    %6 = vector.load %arg35[%c0, %c0_2] : memref<16x32xf32, #tpu.memory_space<vmem>>, vector<16x32xf32>
    %c0_3 = arith.constant 0 : index
    %c0_4 = arith.constant 0 : index
    %7 = vector.load %arg36[%c0_3, %c0_4] : memref<32x32xf32, #tpu.memory_space<vmem>>, vector<32x32xf32>
    %c0_5 = arith.constant 0 : index
    %c0_6 = arith.constant 0 : index
    %8 = vector.load %arg12[%c0_5, %c0_6] : memref<32x16xbf16, #tpu.memory_space<vmem>>, vector<32x16xbf16>
    %c0_7 = arith.constant 0 : index
    %c0_8 = arith.constant 0 : index
    %9 = vector.load %arg13[%c0_7, %c0_8] : memref<32x16xbf16, #tpu.memory_space<vmem>>, vector<32x16xbf16>
    %c0_9 = arith.constant 0 : index
    %c0_10 = arith.constant 0 : index
    %10 = vector.load %arg14[%c0_9, %c0_10] : memref<16x32xbf16, #tpu.memory_space<vmem>>, vector<16x32xbf16>
    %c0_11 = arith.constant 0 : index
    %c0_12 = arith.constant 0 : index
    %c0_13 = arith.constant 0 : index
    %11 = vector.load %arg28[%c0_11, %c0_12, %c0_13] : memref<1x32x128xf32, #tpu.memory_space<vmem>>, vector<1x32x128xf32>
    %12 = vector.shape_cast %11 : vector<1x32x128xf32> to vector<32x128xf32>
    %c0_14 = arith.constant 0 : index
    %c0_15 = arith.constant 0 : index
    %c0_16 = arith.constant 0 : index
    %13 = vector.load %arg29[%c0_14, %c0_15, %c0_16] : memref<1x1x128xf32, #tpu.memory_space<vmem>>, vector<1x1x128xf32>
    %14 = vector.shape_cast %13 : vector<1x1x128xf32> to vector<1x128xf32>
    %c0_17 = arith.constant 0 : index
    %c0_18 = arith.constant 0 : index
    %c0_19 = arith.constant 0 : index
    %15 = vector.load %arg30[%c0_17, %c0_18, %c0_19] : memref<1x32x32xbf16, #tpu.memory_space<vmem>>, vector<1x32x32xbf16>
    %16 = vector.shape_cast %15 : vector<1x32x32xbf16> to vector<32x32xbf16>
    %c0_20 = arith.constant 0 : index
    %c0_21 = arith.constant 0 : index
    %c0_22 = arith.constant 0 : index
    %17 = vector.load %arg31[%c0_20, %c0_21, %c0_22] : memref<1x1x32xf32, #tpu.memory_space<vmem>>, vector<1x1x32xf32>
    %18 = vector.shape_cast %17 : vector<1x1x32xf32> to vector<1x32xf32>
    %c0_23 = arith.constant 0 : index
    %c0_24 = arith.constant 0 : index
    %c0_25 = arith.constant 0 : index
    %19 = vector.load %arg32[%c0_23, %c0_24, %c0_25] : memref<1x1x32xf32, #tpu.memory_space<vmem>>, vector<1x1x32xf32>
    %20 = vector.shape_cast %19 : vector<1x1x32xf32> to vector<1x32xf32>
    %c0_26 = arith.constant 0 : index
    %c0_27 = arith.constant 0 : index
    %c0_28 = arith.constant 0 : index
    %21 = vector.load %arg33[%c0_26, %c0_27, %c0_28] : memref<1x1x32xf32, #tpu.memory_space<vmem>>, vector<1x1x32xf32>
    %22 = vector.shape_cast %21 : vector<1x1x32xf32> to vector<1x32xf32>
    %cst = arith.constant dense<0.000000e+00> : vector<16x128xf32>
    %23 = tpu.matmul %6, %12, %cst {dimension_numbers = #tpu.dot_dimension_numbers<[1], [0], [0], [1], [0, 0, 1, 1], [], []>} : vector<16x32xf32>, vector<32x128xf32>, vector<16x128xf32> -> vector<16x128xf32>
    %24 = vector.broadcast %14 : vector<1x128xf32> to vector<16x128xf32>
    %25 = arith.addf %23, %24 : vector<16x128xf32>
    %26 = arith.truncf %25 : vector<16x128xf32> to vector<16x128xbf16>
    %27 = vector.extract_strided_slice %26 {offsets = [0, 0], sizes = [16, 32], strides = [1, 1]} : vector<16x128xbf16> to vector<16x32xbf16>
    %cst_29 = arith.constant dense<0.000000e+00> : vector<32x32xf32>
    %28 = tpu.matmul %9, %27, %cst_29 {dimension_numbers = #tpu.dot_dimension_numbers<[1], [0], [0], [1], [0, 0, 1, 1], [], []>} : vector<32x16xbf16>, vector<16x32xbf16>, vector<32x32xf32> -> vector<32x32xf32>
    %29 = vector.extract_strided_slice %26 {offsets = [0, 32], sizes = [16, 64], strides = [1, 1]} : vector<16x128xbf16> to vector<16x64xbf16>
    %cst_30 = arith.constant dense<0.000000e+00> : vector<32x64xf32>
    %30 = tpu.matmul %8, %29, %cst_30 {dimension_numbers = #tpu.dot_dimension_numbers<[1], [0], [0], [1], [0, 0, 1, 1], [], []>} : vector<32x16xbf16>, vector<16x64xbf16>, vector<32x64xf32> -> vector<32x64xf32>
    %31 = arith.truncf %7 : vector<32x32xf32> to vector<32x32xbf16>
    %cst_31 = arith.constant dense<0.000000e+00> : vector<32x32xf32>
    %32 = tpu.matmul %31, %16, %cst_31 {dimension_numbers = #tpu.dot_dimension_numbers<[1], [0], [0], [1], [0, 0, 1, 1], [], []>} : vector<32x32xbf16>, vector<32x32xbf16>, vector<32x32xf32> -> vector<32x32xf32>
    %33 = vector.broadcast %18 : vector<1x32xf32> to vector<32x32xf32>
    %34 = arith.addf %32, %33 : vector<32x32xf32>
    %35 = vector.extract_strided_slice %30 {offsets = [0, 0], sizes = [32, 32], strides = [1, 1]} : vector<32x64xf32> to vector<32x32xf32>
    %36 = arith.addf %28, %35 : vector<32x32xf32>
    %37 = arith.addf %36, %34 : vector<32x32xf32>
    %38 = arith.negf %37 : vector<32x32xf32>
    %39 = math.exp %38 : vector<32x32xf32>
    %cst_32 = arith.constant 1.000000e+00 : f32
    %40 = vector.broadcast %cst_32 : f32 to vector<32x32xf32>
    %41 = arith.addf %40, %39 : vector<32x32xf32>
    %42 = arith.divf %40, %41 : vector<32x32xf32>
    %43 = arith.mulf %37, %42 : vector<32x32xf32>
    %44 = vector.extract_strided_slice %30 {offsets = [0, 32], sizes = [32, 32], strides = [1, 1]} : vector<32x64xf32> to vector<32x32xf32>
    %45 = arith.mulf %43, %44 : vector<32x32xf32>
    %46 = tpu.concatenate %43, %45 in 1 : vector<32x32xf32>, vector<32x32xf32> -> vector<32x64xf32>
    %47 = arith.truncf %46 : vector<32x64xf32> to vector<32x64xbf16>
    %cst_33 = arith.constant dense<0.000000e+00> : vector<16x64xf32>
    %48 = tpu.matmul %10, %47, %cst_33 {dimension_numbers = #tpu.dot_dimension_numbers<[1], [0], [0], [1], [0, 0, 1, 1], [], []>} : vector<16x32xbf16>, vector<32x64xbf16>, vector<16x64xf32> -> vector<16x64xf32>
    %49 = vector.extract_strided_slice %48 {offsets = [0, 0], sizes = [16, 32], strides = [1, 1]} : vector<16x64xf32> to vector<16x32xf32>
    %cst_34 = arith.constant 9.99999993E-9 : f32
    %50 = vector.broadcast %cst_34 : f32 to vector<16x32xf32>
    %51 = arith.addf %49, %50 : vector<16x32xf32>
    %52 = vector.extract_strided_slice %48 {offsets = [0, 32], sizes = [16, 32], strides = [1, 1]} : vector<16x64xf32> to vector<16x32xf32>
    %53 = vector.extract_strided_slice %25 {offsets = [0, 96], sizes = [16, 32], strides = [1, 1]} : vector<16x128xf32> to vector<16x32xf32>
    %54 = tpu.reciprocal %51 {approx = true} : vector<16x32xf32> -> vector<16x32xf32>
    %55 = arith.mulf %52, %54 : vector<16x32xf32>
    %56 = arith.addf %53, %55 : vector<16x32xf32>
    %57 = vector.broadcast %20 : vector<1x32xf32> to vector<16x32xf32>
    %58 = arith.mulf %56, %57 : vector<16x32xf32>
    %59 = vector.broadcast %22 : vector<1x32xf32> to vector<16x32xf32>
    %60 = arith.addf %58, %59 : vector<16x32xf32>
    %61 = arith.negf %60 : vector<16x32xf32>
    %62 = math.exp %61 : vector<16x32xf32>
    %cst_35 = arith.constant 1.000000e+00 : f32
    %63 = vector.broadcast %cst_35 : f32 to vector<16x32xf32>
    %64 = arith.addf %63, %62 : vector<16x32xf32>
    %65 = arith.divf %63, %64 : vector<16x32xf32>
    %66 = arith.mulf %60, %65 : vector<16x32xf32>
    %67 = arith.addf %66, %6 : vector<16x32xf32>
    %c0_36 = arith.constant 0 : index
    %c0_37 = arith.constant 0 : index
    %68 = vector.load %arg35[%c0_36, %c0_37] : memref<16x32xf32, #tpu.memory_space<vmem>>, vector<16x32xf32>
    tpu.vector_store %arg35[%c0_36, %c0_37], %67 {strides = array<i32>} : memref<16x32xf32, #tpu.memory_space<vmem>>, vector<16x32xf32>,
    %c3_i32 = arith.constant 3 : i32
    %69 = arith.cmpi eq, %arg0, %c3_i32 : i32
    %70 = arith.extui %69 : i1 to i32
    %c0_i32_38 = arith.constant 0 : i32
    %71 = arith.cmpi ne, %70, %c0_i32_38 : i32
    scf.if %71 {
      %c0_39 = arith.constant 0 : index
      %c0_40 = arith.constant 0 : index
      %72 = vector.load %arg18[%c0_39, %c0_40] : memref<2x16xbf16, #tpu.memory_space<vmem>>, vector<2x16xbf16>
      %c0_41 = arith.constant 0 : index
      %c0_42 = arith.constant 0 : index
      %73 = vector.load %arg35[%c0_41, %c0_42] : memref<16x32xf32, #tpu.memory_space<vmem>>, vector<16x32xf32>
      %74 = arith.truncf %73 : vector<16x32xf32> to vector<16x32xbf16>
      %cst_43 = arith.constant dense<0.000000e+00> : vector<2x32xf32>
      %75 = tpu.matmul %72, %74, %cst_43 {dimension_numbers = #tpu.dot_dimension_numbers<[1], [0], [0], [1], [0, 0, 1, 1], [], []>} : vector<2x16xbf16>, vector<16x32xbf16>, vector<2x32xf32> -> vector<2x32xf32>
      %c0_44 = arith.constant 0 : index
      %c0_45 = arith.constant 0 : index
      %76 = vector.load %arg19[%c0_44, %c0_45] : memref<2x1xf32, #tpu.memory_space<vmem>>, vector<2x1xf32>
      %77 = vector.broadcast %76 : vector<2x1xf32> to vector<2x32xf32>
      %78 = arith.mulf %75, %77 : vector<2x32xf32>
      %c0_46 = arith.constant 0 : index
      %c0_47 = arith.constant 0 : index
      %79 = vector.load %arg20[%c0_46, %c0_47] : memref<32x1xf32, #tpu.memory_space<vmem>>, vector<32x1xf32>
      %cst_48 = arith.constant dense<0.000000e+00> : vector<2x1xf32>
      %80 = tpu.matmul %78, %79, %cst_48 {dimension_numbers = #tpu.dot_dimension_numbers<[1], [0], [0], [1], [0, 0, 1, 1], [], []>} : vector<2x32xf32>, vector<32x1xf32>, vector<2x1xf32> -> vector<2x1xf32>
      %c0_49 = arith.constant 0 : index
      %c0_50 = arith.constant 0 : index
      %81 = vector.load %arg21[%c0_49, %c0_50] : memref<1x1xf32, #tpu.memory_space<vmem>>, vector<1x1xf32>
      %82 = vector.broadcast %81 : vector<1x1xf32> to vector<2x1xf32>
      %83 = arith.addf %80, %82 : vector<2x1xf32>
      %c0_51 = arith.constant 0 : index
      %c0_52 = arith.constant 0 : index
      %84 = vector.load %arg34[%c0_51, %c0_52] : memref<2x1xf32, #tpu.memory_space<vmem>>, vector<2x1xf32>
      tpu.vector_store %arg34[%c0_51, %c0_52], %83 {strides = array<i32>} : memref<2x1xf32, #tpu.memory_space<vmem>>, vector<2x1xf32>,
    } else {
    }
    return
  }
  func.func @transform_0(%arg0: i32) -> (i32, i32) {
    %c0_i32 = arith.constant 0 : i32
    %c0_i32_0 = arith.constant 0 : i32
    %c0_i32_1 = arith.constant 0 : i32
    return %c0_i32, %c0_i32_0 : i32, i32
  }
  func.func @transform_1(%arg0: i32) -> (i32, i32) {
    %c0_i32 = arith.constant 0 : i32
    %c0_i32_0 = arith.constant 0 : i32
    %c0_i32_1 = arith.constant 0 : i32
    return %c0_i32, %c0_i32_0 : i32, i32
  }
  func.func @transform_2(%arg0: i32) -> (i32, i32) {
    %c0_i32 = arith.constant 0 : i32
    %c0_i32_0 = arith.constant 0 : i32
    %c0_i32_1 = arith.constant 0 : i32
    return %c0_i32, %c0_i32_0 : i32, i32
  }
  func.func @transform_3(%arg0: i32) -> (i32, i32) {
    %c0_i32 = arith.constant 0 : i32
    %c0_i32_0 = arith.constant 0 : i32
    %c0_i32_1 = arith.constant 0 : i32
    return %c0_i32, %c0_i32_0 : i32, i32
  }
  func.func @transform_4(%arg0: i32) -> (i32, i32) {
    %c0_i32 = arith.constant 0 : i32
    %c0_i32_0 = arith.constant 0 : i32
    %c0_i32_1 = arith.constant 0 : i32
    return %c0_i32, %c0_i32_0 : i32, i32
  }
  func.func @transform_5(%arg0: i32) -> (i32, i32) {
    %c0_i32 = arith.constant 0 : i32
    %c0_i32_0 = arith.constant 0 : i32
    %c0_i32_1 = arith.constant 0 : i32
    return %c0_i32, %c0_i32_0 : i32, i32
  }
  func.func @transform_6(%arg0: i32) -> (i32, i32) {
    %c0_i32 = arith.constant 0 : i32
    %c0_i32_0 = arith.constant 0 : i32
    %c0_i32_1 = arith.constant 0 : i32
    return %c0_i32, %c0_i32_0 : i32, i32
  }
  func.func @transform_7(%arg0: i32) -> (i32, i32) {
    %c0_i32 = arith.constant 0 : i32
    %c0_i32_0 = arith.constant 0 : i32
    %c0_i32_1 = arith.constant 0 : i32
    return %c0_i32, %c0_i32_0 : i32, i32
  }
  func.func @transform_8(%arg0: i32) -> (i32, i32) {
    %c0_i32 = arith.constant 0 : i32
    %c0_i32_0 = arith.constant 0 : i32
    %c0_i32_1 = arith.constant 0 : i32
    return %c0_i32, %c0_i32_0 : i32, i32
  }
  func.func @transform_9(%arg0: i32) -> (i32, i32) {
    %c0_i32 = arith.constant 0 : i32
    %c0_i32_0 = arith.constant 0 : i32
    %c0_i32_1 = arith.constant 0 : i32
    return %c0_i32, %c0_i32_0 : i32, i32
  }
  func.func @transform_10(%arg0: i32) -> (i32, i32) {
    %c0_i32 = arith.constant 0 : i32
    %c0_i32_0 = arith.constant 0 : i32
    %c0_i32_1 = arith.constant 0 : i32
    return %c0_i32, %c0_i32_0 : i32, i32
  }
  func.func @transform_11(%arg0: i32) -> (i32, i32) {
    %c0_i32 = arith.constant 0 : i32
    %c0_i32_0 = arith.constant 0 : i32
    %c0_i32_1 = arith.constant 0 : i32
    return %c0_i32, %c0_i32_0 : i32, i32
  }
  func.func @transform_12(%arg0: i32) -> (i32, i32) {
    %c0_i32 = arith.constant 0 : i32
    %c0_i32_0 = arith.constant 0 : i32
    %c0_i32_1 = arith.constant 0 : i32
    return %c0_i32, %c0_i32_0 : i32, i32
  }
  func.func @transform_13(%arg0: i32) -> (i32, i32) {
    %c0_i32 = arith.constant 0 : i32
    %c0_i32_0 = arith.constant 0 : i32
    %c0_i32_1 = arith.constant 0 : i32
    return %c0_i32, %c0_i32_0 : i32, i32
  }
  func.func @transform_14(%arg0: i32) -> (i32, i32) {
    %c0_i32 = arith.constant 0 : i32
    %c0_i32_0 = arith.constant 0 : i32
    %c0_i32_1 = arith.constant 0 : i32
    return %c0_i32, %c0_i32_0 : i32, i32
  }
  func.func @transform_15(%arg0: i32) -> (i32, i32) {
    %c0_i32 = arith.constant 0 : i32
    %c0_i32_0 = arith.constant 0 : i32
    %c0_i32_1 = arith.constant 0 : i32
    return %c0_i32, %c0_i32_0 : i32, i32
  }
  func.func @transform_16(%arg0: i32) -> (i32, i32) {
    %c0_i32 = arith.constant 0 : i32
    %c0_i32_0 = arith.constant 0 : i32
    %c0_i32_1 = arith.constant 0 : i32
    return %c0_i32, %c0_i32_0 : i32, i32
  }
  func.func @transform_17(%arg0: i32) -> (i32, i32) {
    %c0_i32 = arith.constant 0 : i32
    %c0_i32_0 = arith.constant 0 : i32
    %c0_i32_1 = arith.constant 0 : i32
    return %c0_i32, %c0_i32_0 : i32, i32
  }
  func.func @transform_18(%arg0: i32) -> (i32, i32) {
    %c0_i32 = arith.constant 0 : i32
    %c0_i32_0 = arith.constant 0 : i32
    %c0_i32_1 = arith.constant 0 : i32
    return %c0_i32, %c0_i32_0 : i32, i32
  }
  func.func @transform_19(%arg0: i32) -> (i32, i32) {
    %c0_i32 = arith.constant 0 : i32
    %c0_i32_0 = arith.constant 0 : i32
    %c0_i32_1 = arith.constant 0 : i32
    return %c0_i32, %c0_i32_0 : i32, i32
  }
  func.func @transform_20(%arg0: i32) -> (i32, i32) {
    %c0_i32 = arith.constant 0 : i32
    %c0_i32_0 = arith.constant 0 : i32
    %c0_i32_1 = arith.constant 0 : i32
    return %c0_i32, %c0_i32_0 : i32, i32
  }
  func.func @transform_21(%arg0: i32) -> (i32, i32, i32) {
    %c1_i32 = arith.constant 1 : i32
    %0 = arith.minsi %arg0, %c1_i32 : i32
    %c0_i32 = arith.constant 0 : i32
    %c0_i32_0 = arith.constant 0 : i32
    %c0_i32_1 = arith.constant 0 : i32
    return %0, %c0_i32, %c0_i32_0 : i32, i32, i32
  }
  func.func @transform_22(%arg0: i32) -> (i32, i32, i32) {
    %c1_i32 = arith.constant 1 : i32
    %0 = arith.minsi %arg0, %c1_i32 : i32
    %c0_i32 = arith.constant 0 : i32
    %c0_i32_0 = arith.constant 0 : i32
    %c0_i32_1 = arith.constant 0 : i32
    return %0, %c0_i32, %c0_i32_0 : i32, i32, i32
  }
  func.func @transform_23(%arg0: i32) -> (i32, i32, i32) {
    %c1_i32 = arith.constant 1 : i32
    %0 = arith.minsi %arg0, %c1_i32 : i32
    %c0_i32 = arith.constant 0 : i32
    %c0_i32_0 = arith.constant 0 : i32
    %c0_i32_1 = arith.constant 0 : i32
    return %0, %c0_i32, %c0_i32_0 : i32, i32, i32
  }
  func.func @transform_24(%arg0: i32) -> (i32, i32, i32) {
    %c1_i32 = arith.constant 1 : i32
    %0 = arith.minsi %arg0, %c1_i32 : i32
    %c0_i32 = arith.constant 0 : i32
    %c0_i32_0 = arith.constant 0 : i32
    %c0_i32_1 = arith.constant 0 : i32
    return %0, %c0_i32, %c0_i32_0 : i32, i32, i32
  }
  func.func @transform_25(%arg0: i32) -> (i32, i32, i32) {
    %c1_i32 = arith.constant 1 : i32
    %0 = arith.minsi %arg0, %c1_i32 : i32
    %c0_i32 = arith.constant 0 : i32
    %c0_i32_0 = arith.constant 0 : i32
    %c0_i32_1 = arith.constant 0 : i32
    return %0, %c0_i32, %c0_i32_0 : i32, i32, i32
  }
  func.func @transform_26(%arg0: i32) -> (i32, i32, i32) {
    %c1_i32 = arith.constant 1 : i32
    %0 = arith.minsi %arg0, %c1_i32 : i32
    %c0_i32 = arith.constant 0 : i32
    %c0_i32_0 = arith.constant 0 : i32
    %c0_i32_1 = arith.constant 0 : i32
    return %0, %c0_i32, %c0_i32_0 : i32, i32, i32
  }
  func.func @transform_27(%arg0: i32) -> (i32, i32, i32) {
    %c0_i32 = arith.constant 0 : i32
    %c0_i32_0 = arith.constant 0 : i32
    %c0_i32_1 = arith.constant 0 : i32
    return %arg0, %c0_i32, %c0_i32_0 : i32, i32, i32
  }
  func.func @transform_28(%arg0: i32) -> (i32, i32, i32) {
    %c0_i32 = arith.constant 0 : i32
    %c0_i32_0 = arith.constant 0 : i32
    %c0_i32_1 = arith.constant 0 : i32
    return %arg0, %c0_i32, %c0_i32_0 : i32, i32, i32
  }
  func.func @transform_29(%arg0: i32) -> (i32, i32, i32) {
    %c0_i32 = arith.constant 0 : i32
    %c0_i32_0 = arith.constant 0 : i32
    %c0_i32_1 = arith.constant 0 : i32
    return %arg0, %c0_i32, %c0_i32_0 : i32, i32, i32
  }
  func.func @transform_30(%arg0: i32) -> (i32, i32, i32) {
    %c0_i32 = arith.constant 0 : i32
    %c0_i32_0 = arith.constant 0 : i32
    %c0_i32_1 = arith.constant 0 : i32
    return %arg0, %c0_i32, %c0_i32_0 : i32, i32, i32
  }
  func.func @transform_31(%arg0: i32) -> (i32, i32, i32) {
    %c0_i32 = arith.constant 0 : i32
    %c0_i32_0 = arith.constant 0 : i32
    %c0_i32_1 = arith.constant 0 : i32
    return %arg0, %c0_i32, %c0_i32_0 : i32, i32, i32
  }
  func.func @transform_32(%arg0: i32) -> (i32, i32, i32) {
    %c0_i32 = arith.constant 0 : i32
    %c0_i32_0 = arith.constant 0 : i32
    %c0_i32_1 = arith.constant 0 : i32
    return %arg0, %c0_i32, %c0_i32_0 : i32, i32, i32
  }
  func.func @transform_33(%arg0: i32) -> (i32, i32) {
    %c0_i32 = arith.constant 0 : i32
    %c0_i32_0 = arith.constant 0 : i32
    %c0_i32_1 = arith.constant 0 : i32
    return %c0_i32, %c0_i32_0 : i32, i32
  }
}

</mosaic_0001>

<llo_original>
// kernel: tpu_custom_call.1
$region0: #{tpu_custom_call.1}
  #allocation0 [shape = 'u32[]', space=smem, size = 0x4, offset = 0x4, fixed_abs, tag = 'smem constant byte address 0x4 - core index']
  #allocation1 [shape = 'u32[144,128]{1,0:T(1,128)}', space=vmem, size = 0x12000, scoped, tag = 'internal scratch']
  #allocation2 [shape = 'f32[16,32]{1,0:T(8,128)}', space=vmem, size = 0x2000, scoped, tag = 'scratch operand']
  #allocation3 [shape = 'f32[32,32]{1,0:T(8,128)}', space=vmem, size = 0x4000, scoped, tag = 'scratch operand']
  #allocation4 [shape = 'f32[48,32]{1,0:T(8,128)}', space=vmem, size = 0x6000, scoped, tag = 'scratch operand']
  #allocation5 [shape = 'f32[1,1]{1,0:T(1,128)S(1)}', space=vmem, size = 0x200, scoped, tag = 'scoped memory for tpu_custom_call.1']
  %s0 = inlined_call_operand.smem [shape: u32[34], index: -1, kind: input, shape index: {}]
  %s1 = sld [smem:[%s0]]
  %s2 = scalar_lea.smem %s0, 1
  %s3 = sld [smem:[%s2]]
  %s4 = scalar_lea.smem %s0, 2
  %s5 = sld [smem:[%s4]]
  %s6 = scalar_lea.smem %s0, 3
  %s7 = sld [smem:[%s6]]
  %s8 = scalar_lea.smem %s0, 4
  %s9 = sld [smem:[%s8]]
  %s10 = scalar_lea.smem %s0, 5
  %s11 = sld [smem:[%s10]]
  %s12 = scalar_lea.smem %s0, 6
  %s13 = sld [smem:[%s12]]
  %s14 = scalar_lea.smem %s0, 7
  %s15 = sld [smem:[%s14]]
  %s16 = scalar_lea.smem %s0, 8
  %s17 = sld [smem:[%s16]]
  %s18 = scalar_lea.smem %s0, 9
  %s19 = sld [smem:[%s18]]
  %s20 = scalar_lea.smem %s0, 10
  %s21 = sld [smem:[%s20]]
  %s22 = scalar_lea.smem %s0, 11
  %s23 = sld [smem:[%s22]]
  %s24 = scalar_lea.smem %s0, 12
  %s25 = sld [smem:[%s24]]
  %s26 = scalar_lea.smem %s0, 13
  %s27 = sld [smem:[%s26]]
  %s28 = scalar_lea.smem %s0, 14
  %s29 = sld [smem:[%s28]]
  %s30 = scalar_lea.smem %s0, 15
  %s31 = sld [smem:[%s30]]
  %s32 = scalar_lea.smem %s0, 16
  %s33 = sld [smem:[%s32]]
  %s34 = scalar_lea.smem %s0, 17
  %s35 = sld [smem:[%s34]]
  %s36 = scalar_lea.smem %s0, 18
  %s37 = sld [smem:[%s36]]
  %s38 = scalar_lea.smem %s0, 19
  %s39 = sld [smem:[%s38]]
  %s40 = scalar_lea.smem %s0, 20
  %s41 = sld [smem:[%s40]]
  %s42 = scalar_lea.smem %s0, 21
  %s43 = sld [smem:[%s42]]
  %s44 = scalar_lea.smem %s0, 22
  %s45 = sld [smem:[%s44]]
  %s46 = scalar_lea.smem %s0, 23
  %s47 = sld [smem:[%s46]]
  %s48 = scalar_lea.smem %s0, 24
  %s49 = sld [smem:[%s48]]
  %s50 = scalar_lea.smem %s0, 25
  %s51 = sld [smem:[%s50]]
  %s52 = scalar_lea.smem %s0, 26
  %s53 = sld [smem:[%s52]]
  %s54 = scalar_lea.smem %s0, 27
  %s55 = sld [smem:[%s54]]
  %s56 = scalar_lea.smem %s0, 28
  %s57 = sld [smem:[%s56]]
  %s58 = scalar_lea.smem %s0, 29
  %s59 = sld [smem:[%s58]]
  %s60 = scalar_lea.smem %s0, 30
  %s61 = sld [smem:[%s60]]
  %s62 = scalar_lea.smem %s0, 31
  %s63 = sld [smem:[%s62]]
  %s64 = scalar_lea.smem %s0, 32
  %s65 = sld [smem:[%s64]]
  %s66 = scalar_lea.smem %s0, 33
  %s67 = sld [smem:[%s66]]
  %s68 = sld [smem:[#allocation0]]
  $region221: #{tpu_custom_call.1} parent=0
    _
  %s70 = ssub.s32 1, %s68
  %s71 = scalar_select 0, %s70, %s68
  %v72 = vstv %s41
  %73 = vst [vmem:[#allocation5] sm:$0x1] %v72
  $region1: #{tpu_custom_call.1} parent=0
    #allocation6 [shape = 'u8[8192]{0}', space=vmem, size = 0x2000, scoped, tag = 'input window, operand 0, single buffered']
    #allocation7 [shape = 's32[2]{0}', space=sflag, size = 0x8, scoped, tag = 'scoped memory for tpu_custom_call.1']
    #allocation8 [shape = 'u8[512]{0}', space=vmem, size = 0x400, scoped, tag = 'input window, operand 3, single buffered']
    #allocation9 [shape = 's32[1]{0}', space=sflag, size = 0x4, scoped, tag = 'scoped memory for tpu_custom_call.1']
    #allocation10 [shape = 'u8[512]{0}', space=vmem, size = 0x400, scoped, tag = 'input window, operand 4, single buffered']
    #allocation11 [shape = 'u8[8192]{0}', space=vmem, size = 0x2000, scoped, tag = 'input window, operand 5, single buffered']
    #allocation12 [shape = 's32[1]{0}', space=sflag, size = 0x4, scoped, tag = 'scoped memory for tpu_custom_call.1']
    #allocation13 [shape = 'u8[512]{0}', space=vmem, size = 0x400, scoped, tag = 'input window, operand 6, single buffered']
    #allocation14 [shape = 'u8[512]{0}', space=vmem, size = 0x400, scoped, tag = 'input window, operand 8, single buffered']
    #allocation15 [shape = 's32[1]{0}', space=sflag, size = 0x4, scoped, tag = 'scoped memory for tpu_custom_call.1']
    #allocation16 [shape = 'u8[12288]{0}', space=vmem, size = 0x3000, scoped, tag = 'input window, operand 9, single buffered']
    #allocation17 [shape = 'u8[512]{0}', space=vmem, size = 0x400, scoped, tag = 'input window, operand 10, single buffered']
    #allocation18 [shape = 's32[1]{0}', space=sflag, size = 0x4, scoped, tag = 'scoped memory for tpu_custom_call.1']
    #allocation19 [shape = 'u8[4096]{0}', space=vmem, size = 0x1000, scoped, tag = 'input window, operand 13, single buffered']
    #allocation20 [shape = 'u8[8192]{0}', space=vmem, size = 0x2000, scoped, tag = 'input window, operand 16, single buffered']
    #allocation21 [shape = 's32[1]{0}', space=sflag, size = 0x4, scoped, tag = 'scoped memory for tpu_custom_call.1']
    #allocation22 [shape = 'u8[512]{0}', space=vmem, size = 0x400, scoped, tag = 'input window, operand 17, single buffered']
    %74 = vsyncpa [#allocation7], 0
    %75 = vsyncpa [#allocation9], 0
    %76 = vsyncpa [#allocation12], 0
    %77 = vsyncpa [#allocation15], 0
    %78 = vsyncpa [#allocation18], 0
    %79 = vsyncpa [#allocation21], 0
    loop: start=0, step=1, limit=6
    $region2: #{tpu_custom_call.1} parent=1 // loop_pre_header
      _
    $region3: #{tpu_custom_call.1} parent=1 // loop_header
      %s81 = sphi 0, %s85
      %p82 = scmp.ge.s32.totalorder %s81, 6
      %s89 = sphi 0, %s89
      %s91 = sphi 0, %s89
      %s92 = sphi 0, %s91
      %s106 = sphi 0, %s92
      %s110 = sphi 0, %s110
      %s112 = sphi 0, %s110
      %s113 = sphi 0, %s112
      %s127 = sphi 0, %s113
      %s131 = sphi 0, %s131
      %s133 = sphi 0, %s131
      %s134 = sphi 0, %s133
      %s148 = sphi 0, %s134
      %s152 = sphi 0, %s152
      %s154 = sphi 0, %s152
      %s155 = sphi 0, %s154
      %s169 = sphi 0, %s155
      %s173 = sphi 0, %s173
      %s175 = sphi 0, %s173
      %s176 = sphi 0, %s175
      %s190 = sphi 0, %s176
      %s194 = sphi 0, %s194
      %s196 = sphi 0, %s194
      %s197 = sphi 0, %s196
      %s211 = sphi 0, %s197
      %s215 = sphi 0, %s215
      %s217 = sphi 0, %s215
      %s218 = sphi 0, %s217
      %s232 = sphi 0, %s218
      %s236 = sphi 0, %s236
      %s238 = sphi 0, %s236
      %s239 = sphi 0, %s238
      %s253 = sphi 0, %s239
      %s257 = sphi 0, %s257
      %s259 = sphi 0, %s257
      %s260 = sphi 0, %s259
      %s274 = sphi 0, %s260
      %s278 = sphi 0, %s278
      %s280 = sphi 0, %s278
      %s281 = sphi 0, %s280
      %s295 = sphi 0, %s281
      %s299 = sphi 0, %s299
      %s301 = sphi 0, %s299
      %s302 = sphi 0, %s301
      %s316 = sphi 0, %s302
      %s320 = sphi 0, %s320
      %s322 = sphi 0, %s320
      %s323 = sphi 0, %s322
      %s337 = sphi 0, %s323
      %s341 = sphi 0, %s341
      %s343 = sphi 0, %s341
      %s344 = sphi 0, %s343
      %s358 = sphi 0, %s344
      %s362 = sphi 0, %s362
      %s364 = sphi 0, %s362
      %s365 = sphi 0, %s364
      %s379 = sphi 0, %s365
      %s383 = sphi 0, %s383
      %s385 = sphi 0, %s383
      %s386 = sphi 0, %s385
      %s400 = sphi 0, %s386
      %s404 = sphi 0, %s404
      %s406 = sphi 0, %s404
      %s407 = sphi 0, %s406
      %s421 = sphi 0, %s407
      %s425 = sphi 0, %s425
      %s427 = sphi 0, %s425
      %s428 = sphi 0, %s427
      %s442 = sphi 0, %s428
      %s446 = sphi 0, %s446
      %s448 = sphi 0, %s446
      %s449 = sphi 0, %s448
      %s463 = sphi 0, %s449
      %s467 = sphi 0, %s467
      %s469 = sphi 0, %s467
      %s470 = sphi 0, %s469
      %s484 = sphi 0, %s470
      %s488 = sphi 0, %s488
      %s490 = sphi 0, %s488
      %s491 = sphi 0, %s490
      %s505 = sphi 0, %s491
      %s509 = sphi 0, %s509
      %s511 = sphi 0, %s509
      %s512 = sphi 0, %s511
      %s526 = sphi 0, %s512
      %s536 = sphi 0, %s538
      %s539 = sphi 0, %s536
      %s540 = sphi 0, %s539
      %s556 = sphi 0, %s540
      %s566 = sphi 0, %s568
      %s569 = sphi 0, %s566
      %s570 = sphi 0, %s569
      %s586 = sphi 0, %s570
      %s596 = sphi 0, %s598
      %s599 = sphi 0, %s596
      %s600 = sphi 0, %s599
      %s616 = sphi 0, %s600
      %s626 = sphi 0, %s628
      %s629 = sphi 0, %s626
      %s630 = sphi 0, %s629
      %s646 = sphi 0, %s630
      %s656 = sphi 0, %s658
      %s659 = sphi 0, %s656
      %s660 = sphi 0, %s659
      %s676 = sphi 0, %s660
      %s686 = sphi 0, %s688
      %s689 = sphi 0, %s686
      %s690 = sphi 0, %s689
      %s706 = sphi 0, %s690
      %s712 = sphi 0, %s714
      %s715 = sphi 0, %s712
      %s716 = sphi 0, %s715
      %s732 = sphi 0, %s716
      %s738 = sphi 0, %s740
      %s741 = sphi 0, %s738
      %s742 = sphi 0, %s741
      %s758 = sphi 0, %s742
      %s764 = sphi 0, %s766
      %s767 = sphi 0, %s764
      %s768 = sphi 0, %s767
      %s784 = sphi 0, %s768
      %s790 = sphi 0, %s792
      %s793 = sphi 0, %s790
      %s794 = sphi 0, %s793
      %s810 = sphi 0, %s794
      %s816 = sphi 0, %s818
      %s819 = sphi 0, %s816
      %s820 = sphi 0, %s819
      %s836 = sphi 0, %s820
      %s842 = sphi 0, %s844
      %s845 = sphi 0, %s842
      %s846 = sphi 0, %s845
      %s862 = sphi 0, %s846
      %s866 = sphi 0, %s866
      %s868 = sphi 0, %s866
      %s869 = sphi 0, %s868
      %s883 = sphi 0, %s869
    $region4: #{tpu_custom_call.1} parent=1 // loop_header_branch
      %84 = sbr.rel (%p82) target = $region8
    $region5: #{tpu_custom_call.1} parent=1 // loop_body
      %s86 = ssub.s32 %s81, 1
      %s87 = ssub.s32 %s81, 2
      %s88 = sadd.s32 %s81, 1
      %s90 = sadd.s32 %s89, 1
      %p93 = scmp.eq.s32.totalorder %s81, 3
      %p94 = scmp.ne.s32.totalorder %s89, %s91
      %p95 = scmp.eq.s32.totalorder %s81, 0
      %p96 = por %p94, %p95
      %p97 = scmp.ne.s32.totalorder %s89, %s91
      %p98 = scmp.eq.s32.totalorder %s86, 3
      %p99 = por %p97, %p98
      %p100 = scmp.ne.s32.totalorder %s91, %s92
      %p101 = scmp.eq.s32.totalorder %s86, 0
      %p102 = por %p100, %p101
      %p103 = scmp.ne.s32.totalorder %s91, %s92
      %p104 = scmp.eq.s32.totalorder %s87, 3
      %p105 = por %p103, %p104
      %p107 = scmp.ne.s32.totalorder %s92, %s106
      %p108 = scmp.eq.s32.totalorder %s87, 0
      %p109 = por %p107, %p108
      %s111 = sadd.s32 %s110, 1
      %p114 = scmp.eq.s32.totalorder %s81, 3
      %p115 = scmp.ne.s32.totalorder %s110, %s112
      %p116 = scmp.eq.s32.totalorder %s81, 0
      %p117 = por %p115, %p116
      %p118 = scmp.ne.s32.totalorder %s110, %s112
      %p119 = scmp.eq.s32.totalorder %s86, 3
      %p120 = por %p118, %p119
      %p121 = scmp.ne.s32.totalorder %s112, %s113
      %p122 = scmp.eq.s32.totalorder %s86, 0
      %p123 = por %p121, %p122
      %p124 = scmp.ne.s32.totalorder %s112, %s113
      %p125 = scmp.eq.s32.totalorder %s87, 3
      %p126 = por %p124, %p125
      %p128 = scmp.ne.s32.totalorder %s113, %s127
      %p129 = scmp.eq.s32.totalorder %s87, 0
      %p130 = por %p128, %p129
      %s132 = sadd.s32 %s131, 1
      %p135 = scmp.eq.s32.totalorder %s81, 3
      %p136 = scmp.ne.s32.totalorder %s131, %s133
      %p137 = scmp.eq.s32.totalorder %s81, 0
      %p138 = por %p136, %p137
      %p139 = scmp.ne.s32.totalorder %s131, %s133
      %p140 = scmp.eq.s32.totalorder %s86, 3
      %p141 = por %p139, %p140
      %p142 = scmp.ne.s32.totalorder %s133, %s134
      %p143 = scmp.eq.s32.totalorder %s86, 0
      %p144 = por %p142, %p143
      %p145 = scmp.ne.s32.totalorder %s133, %s134
      %p146 = scmp.eq.s32.totalorder %s87, 3
      %p147 = por %p145, %p146
      %p149 = scmp.ne.s32.totalorder %s134, %s148
      %p150 = scmp.eq.s32.totalorder %s87, 0
      %p151 = por %p149, %p150
      %s153 = sadd.s32 %s152, 1
      %p156 = scmp.eq.s32.totalorder %s81, 3
      %p157 = scmp.ne.s32.totalorder %s152, %s154
      %p158 = scmp.eq.s32.totalorder %s81, 0
      %p159 = por %p157, %p158
      %p160 = scmp.ne.s32.totalorder %s152, %s154
      %p161 = scmp.eq.s32.totalorder %s86, 3
      %p162 = por %p160, %p161
      %p163 = scmp.ne.s32.totalorder %s154, %s155
      %p164 = scmp.eq.s32.totalorder %s86, 0
      %p165 = por %p163, %p164
      %p166 = scmp.ne.s32.totalorder %s154, %s155
      %p167 = scmp.eq.s32.totalorder %s87, 3
      %p168 = por %p166, %p167
      %p170 = scmp.ne.s32.totalorder %s155, %s169
      %p171 = scmp.eq.s32.totalorder %s87, 0
      %p172 = por %p170, %p171
      %s174 = sadd.s32 %s173, 1
      %p177 = scmp.eq.s32.totalorder %s81, 3
      %p178 = scmp.ne.s32.totalorder %s173, %s175
      %p179 = scmp.eq.s32.totalorder %s81, 0
      %p180 = por %p178, %p179
      %p181 = scmp.ne.s32.totalorder %s173, %s175
      %p182 = scmp.eq.s32.totalorder %s86, 3
      %p183 = por %p181, %p182
      %p184 = scmp.ne.s32.totalorder %s175, %s176
      %p185 = scmp.eq.s32.totalorder %s86, 0
      %p186 = por %p184, %p185
      %p187 = scmp.ne.s32.totalorder %s175, %s176
      %p188 = scmp.eq.s32.totalorder %s87, 3
      %p189 = por %p187, %p188
      %p191 = scmp.ne.s32.totalorder %s176, %s190
      %p192 = scmp.eq.s32.totalorder %s87, 0
      %p193 = por %p191, %p192
      %s195 = sadd.s32 %s194, 1
      %p198 = scmp.eq.s32.totalorder %s81, 3
      %p199 = scmp.ne.s32.totalorder %s194, %s196
      %p200 = scmp.eq.s32.totalorder %s81, 0
      %p201 = por %p199, %p200
      %p202 = scmp.ne.s32.totalorder %s194, %s196
      %p203 = scmp.eq.s32.totalorder %s86, 3
      %p204 = por %p202, %p203
      %p205 = scmp.ne.s32.totalorder %s196, %s197
      %p206 = scmp.eq.s32.totalorder %s86, 0
      %p207 = por %p205, %p206
      %p208 = scmp.ne.s32.totalorder %s196, %s197
      %p209 = scmp.eq.s32.totalorder %s87, 3
      %p210 = por %p208, %p209
      %p212 = scmp.ne.s32.totalorder %s197, %s211
      %p213 = scmp.eq.s32.totalorder %s87, 0
      %p214 = por %p212, %p213
      %s216 = sadd.s32 %s215, 1
      %p219 = scmp.eq.s32.totalorder %s81, 3
      %p220 = scmp.ne.s32.totalorder %s215, %s217
      %p221 = scmp.eq.s32.totalorder %s81, 0
      %p222 = por %p220, %p221
      %p223 = scmp.ne.s32.totalorder %s215, %s217
      %p224 = scmp.eq.s32.totalorder %s86, 3
      %p225 = por %p223, %p224
      %p226 = scmp.ne.s32.totalorder %s217, %s218
      %p227 = scmp.eq.s32.totalorder %s86, 0
      %p228 = por %p226, %p227
      %p229 = scmp.ne.s32.totalorder %s217, %s218
      %p230 = scmp.eq.s32.totalorder %s87, 3
      %p231 = por %p229, %p230
      %p233 = scmp.ne.s32.totalorder %s218, %s232
      %p234 = scmp.eq.s32.totalorder %s87, 0
      %p235 = por %p233, %p234
      %s237 = sadd.s32 %s236, 1
      %p240 = scmp.eq.s32.totalorder %s81, 3
      %p241 = scmp.ne.s32.totalorder %s236, %s238
      %p242 = scmp.eq.s32.totalorder %s81, 0
      %p243 = por %p241, %p242
      %p244 = scmp.ne.s32.totalorder %s236, %s238
      %p245 = scmp.eq.s32.totalorder %s86, 3
      %p246 = por %p244, %p245
      %p247 = scmp.ne.s32.totalorder %s238, %s239
      %p248 = scmp.eq.s32.totalorder %s86, 0
      %p249 = por %p247, %p248
      %p250 = scmp.ne.s32.totalorder %s238, %s239
      %p251 = scmp.eq.s32.totalorder %s87, 3
      %p252 = por %p250, %p251
      %p254 = scmp.ne.s32.totalorder %s239, %s253
      %p255 = scmp.eq.s32.totalorder %s87, 0
      %p256 = por %p254, %p255
      %s258 = sadd.s32 %s257, 1
      %p261 = scmp.eq.s32.totalorder %s81, 3
      %p262 = scmp.ne.s32.totalorder %s257, %s259
      %p263 = scmp.eq.s32.totalorder %s81, 0
      %p264 = por %p262, %p263
      %p265 = scmp.ne.s32.totalorder %s257, %s259
      %p266 = scmp.eq.s32.totalorder %s86, 3
      %p267 = por %p265, %p266
      %p268 = scmp.ne.s32.totalorder %s259, %s260
      %p269 = scmp.eq.s32.totalorder %s86, 0
      %p270 = por %p268, %p269
      %p271 = scmp.ne.s32.totalorder %s259, %s260
      %p272 = scmp.eq.s32.totalorder %s87, 3
      %p273 = por %p271, %p272
      %p275 = scmp.ne.s32.totalorder %s260, %s274
      %p276 = scmp.eq.s32.totalorder %s87, 0
      %p277 = por %p275, %p276
      %s279 = sadd.s32 %s278, 1
      %p282 = scmp.eq.s32.totalorder %s81, 3
      %p283 = scmp.ne.s32.totalorder %s278, %s280
      %p284 = scmp.eq.s32.totalorder %s81, 0
      %p285 = por %p283, %p284
      %p286 = scmp.ne.s32.totalorder %s278, %s280
      %p287 = scmp.eq.s32.totalorder %s86, 3
      %p288 = por %p286, %p287
      %p289 = scmp.ne.s32.totalorder %s280, %s281
      %p290 = scmp.eq.s32.totalorder %s86, 0
      %p291 = por %p289, %p290
      %p292 = scmp.ne.s32.totalorder %s280, %s281
      %p293 = scmp.eq.s32.totalorder %s87, 3
      %p294 = por %p292, %p293
      %p296 = scmp.ne.s32.totalorder %s281, %s295
      %p297 = scmp.eq.s32.totalorder %s87, 0
      %p298 = por %p296, %p297
      %s300 = sadd.s32 %s299, 1
      %p303 = scmp.eq.s32.totalorder %s81, 3
      %p304 = scmp.ne.s32.totalorder %s299, %s301
      %p305 = scmp.eq.s32.totalorder %s81, 0
      %p306 = por %p304, %p305
      %p307 = scmp.ne.s32.totalorder %s299, %s301
      %p308 = scmp.eq.s32.totalorder %s86, 3
      %p309 = por %p307, %p308
      %p310 = scmp.ne.s32.totalorder %s301, %s302
      %p311 = scmp.eq.s32.totalorder %s86, 0
      %p312 = por %p310, %p311
      %p313 = scmp.ne.s32.totalorder %s301, %s302
      %p314 = scmp.eq.s32.totalorder %s87, 3
      %p315 = por %p313, %p314
      %p317 = scmp.ne.s32.totalorder %s302, %s316
      %p318 = scmp.eq.s32.totalorder %s87, 0
      %p319 = por %p317, %p318
      %s321 = sadd.s32 %s320, 1
      %p324 = scmp.eq.s32.totalorder %s81, 3
      %p325 = scmp.ne.s32.totalorder %s320, %s322
      %p326 = scmp.eq.s32.totalorder %s81, 0
      %p327 = por %p325, %p326
      %p328 = scmp.ne.s32.totalorder %s320, %s322
      %p329 = scmp.eq.s32.totalorder %s86, 3
      %p330 = por %p328, %p329
      %p331 = scmp.ne.s32.totalorder %s322, %s323
      %p332 = scmp.eq.s32.totalorder %s86, 0
      %p333 = por %p331, %p332
      %p334 = scmp.ne.s32.totalorder %s322, %s323
      %p335 = scmp.eq.s32.totalorder %s87, 3
      %p336 = por %p334, %p335
      %p338 = scmp.ne.s32.totalorder %s323, %s337
      %p339 = scmp.eq.s32.totalorder %s87, 0
      %p340 = por %p338, %p339
      %s342 = sadd.s32 %s341, 1
      %p345 = scmp.eq.s32.totalorder %s81, 3
      %p346 = scmp.ne.s32.totalorder %s341, %s343
      %p347 = scmp.eq.s32.totalorder %s81, 0
      %p348 = por %p346, %p347
      %p349 = scmp.ne.s32.totalorder %s341, %s343
      %p350 = scmp.eq.s32.totalorder %s86, 3
      %p351 = por %p349, %p350
      %p352 = scmp.ne.s32.totalorder %s343, %s344
      %p353 = scmp.eq.s32.totalorder %s86, 0
      %p354 = por %p352, %p353
      %p355 = scmp.ne.s32.totalorder %s343, %s344
      %p356 = scmp.eq.s32.totalorder %s87, 3
      %p357 = por %p355, %p356
      %p359 = scmp.ne.s32.totalorder %s344, %s358
      %p360 = scmp.eq.s32.totalorder %s87, 0
      %p361 = por %p359, %p360
      %s363 = sadd.s32 %s362, 1
      %p366 = scmp.eq.s32.totalorder %s81, 3
      %p367 = scmp.ne.s32.totalorder %s362, %s364
      %p368 = scmp.eq.s32.totalorder %s81, 0
      %p369 = por %p367, %p368
      %p370 = scmp.ne.s32.totalorder %s362, %s364
      %p371 = scmp.eq.s32.totalorder %s86, 3
      %p372 = por %p370, %p371
      %p373 = scmp.ne.s32.totalorder %s364, %s365
      %p374 = scmp.eq.s32.totalorder %s86, 0
      %p375 = por %p373, %p374
      %p376 = scmp.ne.s32.totalorder %s364, %s365
      %p377 = scmp.eq.s32.totalorder %s87, 3
      %p378 = por %p376, %p377
      %p380 = scmp.ne.s32.totalorder %s365, %s379
      %p381 = scmp.eq.s32.totalorder %s87, 0
      %p382 = por %p380, %p381
      %s384 = sadd.s32 %s383, 1
      %p387 = scmp.eq.s32.totalorder %s81, 3
      %p388 = scmp.ne.s32.totalorder %s383, %s385
      %p389 = scmp.eq.s32.totalorder %s81, 0
      %p390 = por %p388, %p389
      %p391 = scmp.ne.s32.totalorder %s383, %s385
      %p392 = scmp.eq.s32.totalorder %s86, 3
      %p393 = por %p391, %p392
      %p394 = scmp.ne.s32.totalorder %s385, %s386
      %p395 = scmp.eq.s32.totalorder %s86, 0
      %p396 = por %p394, %p395
      %p397 = scmp.ne.s32.totalorder %s385, %s386
      %p398 = scmp.eq.s32.totalorder %s87, 3
      %p399 = por %p397, %p398
      %p401 = scmp.ne.s32.totalorder %s386, %s400
      %p402 = scmp.eq.s32.totalorder %s87, 0
      %p403 = por %p401, %p402
      %s405 = sadd.s32 %s404, 1
      %p408 = scmp.eq.s32.totalorder %s81, 3
      %p409 = scmp.ne.s32.totalorder %s404, %s406
      %p410 = scmp.eq.s32.totalorder %s81, 0
      %p411 = por %p409, %p410
      %p412 = scmp.ne.s32.totalorder %s404, %s406
      %p413 = scmp.eq.s32.totalorder %s86, 3
      %p414 = por %p412, %p413
      %p415 = scmp.ne.s32.totalorder %s406, %s407
      %p416 = scmp.eq.s32.totalorder %s86, 0
      %p417 = por %p415, %p416
      %p418 = scmp.ne.s32.totalorder %s406, %s407
      %p419 = scmp.eq.s32.totalorder %s87, 3
      %p420 = por %p418, %p419
      %p422 = scmp.ne.s32.totalorder %s407, %s421
      %p423 = scmp.eq.s32.totalorder %s87, 0
      %p424 = por %p422, %p423
      %s426 = sadd.s32 %s425, 1
      %p429 = scmp.eq.s32.totalorder %s81, 3
      %p430 = scmp.ne.s32.totalorder %s425, %s427
      %p431 = scmp.eq.s32.totalorder %s81, 0
      %p432 = por %p430, %p431
      %p433 = scmp.ne.s32.totalorder %s425, %s427
      %p434 = scmp.eq.s32.totalorder %s86, 3
      %p435 = por %p433, %p434
      %p436 = scmp.ne.s32.totalorder %s427, %s428
      %p437 = scmp.eq.s32.totalorder %s86, 0
      %p438 = por %p436, %p437
      %p439 = scmp.ne.s32.totalorder %s427, %s428
      %p440 = scmp.eq.s32.totalorder %s87, 3
      %p441 = por %p439, %p440
      %p443 = scmp.ne.s32.totalorder %s428, %s442
      %p444 = scmp.eq.s32.totalorder %s87, 0
      %p445 = por %p443, %p444
      %s447 = sadd.s32 %s446, 1
      %p450 = scmp.eq.s32.totalorder %s81, 3
      %p451 = scmp.ne.s32.totalorder %s446, %s448
      %p452 = scmp.eq.s32.totalorder %s81, 0
      %p453 = por %p451, %p452
      %p454 = scmp.ne.s32.totalorder %s446, %s448
      %p455 = scmp.eq.s32.totalorder %s86, 3
      %p456 = por %p454, %p455
      %p457 = scmp.ne.s32.totalorder %s448, %s449
      %p458 = scmp.eq.s32.totalorder %s86, 0
      %p459 = por %p457, %p458
      %p460 = scmp.ne.s32.totalorder %s448, %s449
      %p461 = scmp.eq.s32.totalorder %s87, 3
      %p462 = por %p460, %p461
      %p464 = scmp.ne.s32.totalorder %s449, %s463
      %p465 = scmp.eq.s32.totalorder %s87, 0
      %p466 = por %p464, %p465
      %s468 = sadd.s32 %s467, 1
      %p471 = scmp.eq.s32.totalorder %s81, 3
      %p472 = scmp.ne.s32.totalorder %s467, %s469
      %p473 = scmp.eq.s32.totalorder %s81, 0
      %p474 = por %p472, %p473
      %p475 = scmp.ne.s32.totalorder %s467, %s469
      %p476 = scmp.eq.s32.totalorder %s86, 3
      %p477 = por %p475, %p476
      %p478 = scmp.ne.s32.totalorder %s469, %s470
      %p479 = scmp.eq.s32.totalorder %s86, 0
      %p480 = por %p478, %p479
      %p481 = scmp.ne.s32.totalorder %s469, %s470
      %p482 = scmp.eq.s32.totalorder %s87, 3
      %p483 = por %p481, %p482
      %p485 = scmp.ne.s32.totalorder %s470, %s484
      %p486 = scmp.eq.s32.totalorder %s87, 0
      %p487 = por %p485, %p486
      %s489 = sadd.s32 %s488, 1
      %p492 = scmp.eq.s32.totalorder %s81, 3
      %p493 = scmp.ne.s32.totalorder %s488, %s490
      %p494 = scmp.eq.s32.totalorder %s81, 0
      %p495 = por %p493, %p494
      %p496 = scmp.ne.s32.totalorder %s488, %s490
      %p497 = scmp.eq.s32.totalorder %s86, 3
      %p498 = por %p496, %p497
      %p499 = scmp.ne.s32.totalorder %s490, %s491
      %p500 = scmp.eq.s32.totalorder %s86, 0
      %p501 = por %p499, %p500
      %p502 = scmp.ne.s32.totalorder %s490, %s491
      %p503 = scmp.eq.s32.totalorder %s87, 3
      %p504 = por %p502, %p503
      %p506 = scmp.ne.s32.totalorder %s491, %s505
      %p507 = scmp.eq.s32.totalorder %s87, 0
      %p508 = por %p506, %p507
      %s510 = sadd.s32 %s509, 1
      %p513 = scmp.eq.s32.totalorder %s81, 3
      %p514 = scmp.ne.s32.totalorder %s509, %s511
      %p515 = scmp.eq.s32.totalorder %s81, 0
      %p516 = por %p514, %p515
      %p517 = scmp.ne.s32.totalorder %s509, %s511
      %p518 = scmp.eq.s32.totalorder %s86, 3
      %p519 = por %p517, %p518
      %p520 = scmp.ne.s32.totalorder %s511, %s512
      %p521 = scmp.eq.s32.totalorder %s86, 0
      %p522 = por %p520, %p521
      %p523 = scmp.ne.s32.totalorder %s511, %s512
      %p524 = scmp.eq.s32.totalorder %s87, 3
      %p525 = por %p523, %p524
      %p527 = scmp.ne.s32.totalorder %s512, %s526
      %p528 = scmp.eq.s32.totalorder %s87, 0
      %p529 = por %p527, %p528
      %p530 = scmp.lt.s32.totalorder %s81, 1
      %s531 = scalar_select %p530, %s81, 1
      %p532 = scmp.lt.s32.totalorder %s88, 1
      %s533 = scalar_select %p532, %s88, 1
      %s534 = ssub.s32 %s531, %s533
      %p535 = scmp.eq.s32.totalorder %s534, 0
      %s537 = sadd.s32 %s536, 1
      %s538 = scalar_select %p535, %s536, %s537
      %p541 = pneg %p535
      %p542 = scmp.eq.s32.totalorder %s81, 3
      %p543 = por %p541, %p542
      %p544 = scmp.ne.s32.totalorder %s536, %s539
      %p545 = scmp.eq.s32.totalorder %s81, 0
      %p546 = por %p544, %p545
      %p547 = scmp.ne.s32.totalorder %s536, %s539
      %p548 = scmp.eq.s32.totalorder %s86, 3
      %p549 = por %p547, %p548
      %p550 = scmp.ne.s32.totalorder %s539, %s540
      %p551 = scmp.eq.s32.totalorder %s86, 0
      %p552 = por %p550, %p551
      %p553 = scmp.ne.s32.totalorder %s539, %s540
      %p554 = scmp.eq.s32.totalorder %s87, 3
      %p555 = por %p553, %p554
      %p557 = scmp.ne.s32.totalorder %s540, %s556
      %p558 = scmp.eq.s32.totalorder %s87, 0
      %p559 = por %p557, %p558
      %p560 = scmp.lt.s32.totalorder %s81, 1
      %s561 = scalar_select %p560, %s81, 1
      %p562 = scmp.lt.s32.totalorder %s88, 1
      %s563 = scalar_select %p562, %s88, 1
      %s564 = ssub.s32 %s561, %s563
      %p565 = scmp.eq.s32.totalorder %s564, 0
      %s567 = sadd.s32 %s566, 1
      %s568 = scalar_select %p565, %s566, %s567
      %p571 = pneg %p565
      %p572 = scmp.eq.s32.totalorder %s81, 3
      %p573 = por %p571, %p572
      %p574 = scmp.ne.s32.totalorder %s566, %s569
      %p575 = scmp.eq.s32.totalorder %s81, 0
      %p576 = por %p574, %p575
      %p577 = scmp.ne.s32.totalorder %s566, %s569
      %p578 = scmp.eq.s32.totalorder %s86, 3
      %p579 = por %p577, %p578
      %p580 = scmp.ne.s32.totalorder %s569, %s570
      %p581 = scmp.eq.s32.totalorder %s86, 0
      %p582 = por %p580, %p581
      %p583 = scmp.ne.s32.totalorder %s569, %s570
      %p584 = scmp.eq.s32.totalorder %s87, 3
      %p585 = por %p583, %p584
      %p587 = scmp.ne.s32.totalorder %s570, %s586
      %p588 = scmp.eq.s32.totalorder %s87, 0
      %p589 = por %p587, %p588
      %p590 = scmp.lt.s32.totalorder %s81, 1
      %s591 = scalar_select %p590, %s81, 1
      %p592 = scmp.lt.s32.totalorder %s88, 1
      %s593 = scalar_select %p592, %s88, 1
      %s594 = ssub.s32 %s591, %s593
      %p595 = scmp.eq.s32.totalorder %s594, 0
      %s597 = sadd.s32 %s596, 1
      %s598 = scalar_select %p595, %s596, %s597
      %p601 = pneg %p595
      %p602 = scmp.eq.s32.totalorder %s81, 3
      %p603 = por %p601, %p602
      %p604 = scmp.ne.s32.totalorder %s596, %s599
      %p605 = scmp.eq.s32.totalorder %s81, 0
      %p606 = por %p604, %p605
      %p607 = scmp.ne.s32.totalorder %s596, %s599
      %p608 = scmp.eq.s32.totalorder %s86, 3
      %p609 = por %p607, %p608
      %p610 = scmp.ne.s32.totalorder %s599, %s600
      %p611 = scmp.eq.s32.totalorder %s86, 0
      %p612 = por %p610, %p611
      %p613 = scmp.ne.s32.totalorder %s599, %s600
      %p614 = scmp.eq.s32.totalorder %s87, 3
      %p615 = por %p613, %p614
      %p617 = scmp.ne.s32.totalorder %s600, %s616
      %p618 = scmp.eq.s32.totalorder %s87, 0
      %p619 = por %p617, %p618
      %p620 = scmp.lt.s32.totalorder %s81, 1
      %s621 = scalar_select %p620, %s81, 1
      %p622 = scmp.lt.s32.totalorder %s88, 1
      %s623 = scalar_select %p622, %s88, 1
      %s624 = ssub.s32 %s621, %s623
      %p625 = scmp.eq.s32.totalorder %s624, 0
      %s627 = sadd.s32 %s626, 1
      %s628 = scalar_select %p625, %s626, %s627
      %p631 = pneg %p625
      %p632 = scmp.eq.s32.totalorder %s81, 3
      %p633 = por %p631, %p632
      %p634 = scmp.ne.s32.totalorder %s626, %s629
      %p635 = scmp.eq.s32.totalorder %s81, 0
      %p636 = por %p634, %p635
      %p637 = scmp.ne.s32.totalorder %s626, %s629
      %p638 = scmp.eq.s32.totalorder %s86, 3
      %p639 = por %p637, %p638
      %p640 = scmp.ne.s32.totalorder %s629, %s630
      %p641 = scmp.eq.s32.totalorder %s86, 0
      %p642 = por %p640, %p641
      %p643 = scmp.ne.s32.totalorder %s629, %s630
      %p644 = scmp.eq.s32.totalorder %s87, 3
      %p645 = por %p643, %p644
      %p647 = scmp.ne.s32.totalorder %s630, %s646
      %p648 = scmp.eq.s32.totalorder %s87, 0
      %p649 = por %p647, %p648
      %p650 = scmp.lt.s32.totalorder %s81, 1
      %s651 = scalar_select %p650, %s81, 1
      %p652 = scmp.lt.s32.totalorder %s88, 1
      %s653 = scalar_select %p652, %s88, 1
      %s654 = ssub.s32 %s651, %s653
      %p655 = scmp.eq.s32.totalorder %s654, 0
      %s657 = sadd.s32 %s656, 1
      %s658 = scalar_select %p655, %s656, %s657
      %p661 = pneg %p655
      %p662 = scmp.eq.s32.totalorder %s81, 3
      %p663 = por %p661, %p662
      %p664 = scmp.ne.s32.totalorder %s656, %s659
      %p665 = scmp.eq.s32.totalorder %s81, 0
      %p666 = por %p664, %p665
      %p667 = scmp.ne.s32.totalorder %s656, %s659
      %p668 = scmp.eq.s32.totalorder %s86, 3
      %p669 = por %p667, %p668
      %p670 = scmp.ne.s32.totalorder %s659, %s660
      %p671 = scmp.eq.s32.totalorder %s86, 0
      %p672 = por %p670, %p671
      %p673 = scmp.ne.s32.totalorder %s659, %s660
      %p674 = scmp.eq.s32.totalorder %s87, 3
      %p675 = por %p673, %p674
      %p677 = scmp.ne.s32.totalorder %s660, %s676
      %p678 = scmp.eq.s32.totalorder %s87, 0
      %p679 = por %p677, %p678
      %p680 = scmp.lt.s32.totalorder %s81, 1
      %s681 = scalar_select %p680, %s81, 1
      %p682 = scmp.lt.s32.totalorder %s88, 1
      %s683 = scalar_select %p682, %s88, 1
      %s684 = ssub.s32 %s681, %s683
      %p685 = scmp.eq.s32.totalorder %s684, 0
      %s687 = sadd.s32 %s686, 1
      %s688 = scalar_select %p685, %s686, %s687
      %p691 = pneg %p685
      %p692 = scmp.eq.s32.totalorder %s81, 3
      %p693 = por %p691, %p692
      %p694 = scmp.ne.s32.totalorder %s686, %s689
      %p695 = scmp.eq.s32.totalorder %s81, 0
      %p696 = por %p694, %p695
      %p697 = scmp.ne.s32.totalorder %s686, %s689
      %p698 = scmp.eq.s32.totalorder %s86, 3
      %p699 = por %p697, %p698
      %p700 = scmp.ne.s32.totalorder %s689, %s690
      %p701 = scmp.eq.s32.totalorder %s86, 0
      %p702 = por %p700, %p701
      %p703 = scmp.ne.s32.totalorder %s689, %s690
      %p704 = scmp.eq.s32.totalorder %s87, 3
      %p705 = por %p703, %p704
      %p707 = scmp.ne.s32.totalorder %s690, %s706
      %p708 = scmp.eq.s32.totalorder %s87, 0
      %p709 = por %p707, %p708
      %s710 = ssub.s32 %s81, %s88
      %p711 = scmp.eq.s32.totalorder %s710, 0
      %s713 = sadd.s32 %s712, 1
      %s714 = scalar_select %p711, %s712, %s713
      %p717 = pneg %p711
      %p718 = scmp.eq.s32.totalorder %s81, 3
      %p719 = por %p717, %p718
      %p720 = scmp.ne.s32.totalorder %s712, %s715
      %p721 = scmp.eq.s32.totalorder %s81, 0
      %p722 = por %p720, %p721
      %p723 = scmp.ne.s32.totalorder %s712, %s715
      %p724 = scmp.eq.s32.totalorder %s86, 3
      %p725 = por %p723, %p724
      %p726 = scmp.ne.s32.totalorder %s715, %s716
      %p727 = scmp.eq.s32.totalorder %s86, 0
      %p728 = por %p726, %p727
      %p729 = scmp.ne.s32.totalorder %s715, %s716
      %p730 = scmp.eq.s32.totalorder %s87, 3
      %p731 = por %p729, %p730
      %p733 = scmp.ne.s32.totalorder %s716, %s732
      %p734 = scmp.eq.s32.totalorder %s87, 0
      %p735 = por %p733, %p734
      %s736 = ssub.s32 %s81, %s88
      %p737 = scmp.eq.s32.totalorder %s736, 0
      %s739 = sadd.s32 %s738, 1
      %s740 = scalar_select %p737, %s738, %s739
      %p743 = pneg %p737
      %p744 = scmp.eq.s32.totalorder %s81, 3
      %p745 = por %p743, %p744
      %p746 = scmp.ne.s32.totalorder %s738, %s741
      %p747 = scmp.eq.s32.totalorder %s81, 0
      %p748 = por %p746, %p747
      %p749 = scmp.ne.s32.totalorder %s738, %s741
      %p750 = scmp.eq.s32.totalorder %s86, 3
      %p751 = por %p749, %p750
      %p752 = scmp.ne.s32.totalorder %s741, %s742
      %p753 = scmp.eq.s32.totalorder %s86, 0
      %p754 = por %p752, %p753
      %p755 = scmp.ne.s32.totalorder %s741, %s742
      %p756 = scmp.eq.s32.totalorder %s87, 3
      %p757 = por %p755, %p756
      %p759 = scmp.ne.s32.totalorder %s742, %s758
      %p760 = scmp.eq.s32.totalorder %s87, 0
      %p761 = por %p759, %p760
      %s762 = ssub.s32 %s81, %s88
      %p763 = scmp.eq.s32.totalorder %s762, 0
      %s765 = sadd.s32 %s764, 1
      %s766 = scalar_select %p763, %s764, %s765
      %p769 = pneg %p763
      %p770 = scmp.eq.s32.totalorder %s81, 3
      %p771 = por %p769, %p770
      %p772 = scmp.ne.s32.totalorder %s764, %s767
      %p773 = scmp.eq.s32.totalorder %s81, 0
      %p774 = por %p772, %p773
      %p775 = scmp.ne.s32.totalorder %s764, %s767
      %p776 = scmp.eq.s32.totalorder %s86, 3
      %p777 = por %p775, %p776
      %p778 = scmp.ne.s32.totalorder %s767, %s768
      %p779 = scmp.eq.s32.totalorder %s86, 0
      %p780 = por %p778, %p779
      %p781 = scmp.ne.s32.totalorder %s767, %s768
      %p782 = scmp.eq.s32.totalorder %s87, 3
      %p783 = por %p781, %p782
      %p785 = scmp.ne.s32.totalorder %s768, %s784
      %p786 = scmp.eq.s32.totalorder %s87, 0
      %p787 = por %p785, %p786
      %s788 = ssub.s32 %s81, %s88
      %p789 = scmp.eq.s32.totalorder %s788, 0
      %s791 = sadd.s32 %s790, 1
      %s792 = scalar_select %p789, %s790, %s791
      %p795 = pneg %p789
      %p796 = scmp.eq.s32.totalorder %s81, 3
      %p797 = por %p795, %p796
      %p798 = scmp.ne.s32.totalorder %s790, %s793
      %p799 = scmp.eq.s32.totalorder %s81, 0
      %p800 = por %p798, %p799
      %p801 = scmp.ne.s32.totalorder %s790, %s793
      %p802 = scmp.eq.s32.totalorder %s86, 3
      %p803 = por %p801, %p802
      %p804 = scmp.ne.s32.totalorder %s793, %s794
      %p805 = scmp.eq.s32.totalorder %s86, 0
      %p806 = por %p804, %p805
      %p807 = scmp.ne.s32.totalorder %s793, %s794
      %p808 = scmp.eq.s32.totalorder %s87, 3
      %p809 = por %p807, %p808
      %p811 = scmp.ne.s32.totalorder %s794, %s810
      %p812 = scmp.eq.s32.totalorder %s87, 0
      %p813 = por %p811, %p812
      %s814 = ssub.s32 %s81, %s88
      %p815 = scmp.eq.s32.totalorder %s814, 0
      %s817 = sadd.s32 %s816, 1
      %s818 = scalar_select %p815, %s816, %s817
      %p821 = pneg %p815
      %p822 = scmp.eq.s32.totalorder %s81, 3
      %p823 = por %p821, %p822
      %p824 = scmp.ne.s32.totalorder %s816, %s819
      %p825 = scmp.eq.s32.totalorder %s81, 0
      %p826 = por %p824, %p825
      %p827 = scmp.ne.s32.totalorder %s816, %s819
      %p828 = scmp.eq.s32.totalorder %s86, 3
      %p829 = por %p827, %p828
      %p830 = scmp.ne.s32.totalorder %s819, %s820
      %p831 = scmp.eq.s32.totalorder %s86, 0
      %p832 = por %p830, %p831
      %p833 = scmp.ne.s32.totalorder %s819, %s820
      %p834 = scmp.eq.s32.totalorder %s87, 3
      %p835 = por %p833, %p834
      %p837 = scmp.ne.s32.totalorder %s820, %s836
      %p838 = scmp.eq.s32.totalorder %s87, 0
      %p839 = por %p837, %p838
      %s840 = ssub.s32 %s81, %s88
      %p841 = scmp.eq.s32.totalorder %s840, 0
      %s843 = sadd.s32 %s842, 1
      %s844 = scalar_select %p841, %s842, %s843
      %p847 = pneg %p841
      %p848 = scmp.eq.s32.totalorder %s81, 3
      %p849 = por %p847, %p848
      %p850 = scmp.ne.s32.totalorder %s842, %s845
      %p851 = scmp.eq.s32.totalorder %s81, 0
      %p852 = por %p850, %p851
      %p853 = scmp.ne.s32.totalorder %s842, %s845
      %p854 = scmp.eq.s32.totalorder %s86, 3
      %p855 = por %p853, %p854
      %p856 = scmp.ne.s32.totalorder %s845, %s846
      %p857 = scmp.eq.s32.totalorder %s86, 0
      %p858 = por %p856, %p857
      %p859 = scmp.ne.s32.totalorder %s845, %s846
      %p860 = scmp.eq.s32.totalorder %s87, 3
      %p861 = por %p859, %p860
      %p863 = scmp.ne.s32.totalorder %s846, %s862
      %p864 = scmp.eq.s32.totalorder %s87, 0
      %p865 = por %p863, %p864
      %s867 = sadd.s32 %s866, 1
      %p870 = scmp.eq.s32.totalorder %s81, 3
      %p871 = scmp.ne.s32.totalorder %s866, %s868
      %p872 = scmp.eq.s32.totalorder %s81, 0
      %p873 = por %p871, %p872
      %p874 = scmp.ne.s32.totalorder %s866, %s868
      %p875 = scmp.eq.s32.totalorder %s86, 3
      %p876 = por %p874, %p875
      %p877 = scmp.ne.s32.totalorder %s868, %s869
      %p878 = scmp.eq.s32.totalorder %s86, 0
      %p879 = por %p877, %p878
      %p880 = scmp.ne.s32.totalorder %s868, %s869
      %p881 = scmp.eq.s32.totalorder %s87, 3
      %p882 = por %p880, %p881
      %p884 = scmp.ne.s32.totalorder %s869, %s883
      %p885 = scmp.eq.s32.totalorder %s87, 0
      %p886 = por %p884, %p885
      %p887 = scmp.le.s32.totalorder 1, %s81
      %p888 = scmp.lt.s32.totalorder %s81, 5
      %p889 = pnand %p887, %p888
      %p890 = pneg %p889
      // Predicated region
      $region9: #{tpu_custom_call.1} parent=5 // pred_check
        _
      $region10: #{tpu_custom_call.1} parent=5 // pred_check_branch
        %892 = sbr.rel (%p889) target = $region12
      $region11: #{tpu_custom_call.1} parent=5 // pred_region
        %s893 = ssub.s32 %s81, 1
        // Predicated region
        $region13: #{tpu_custom_call.1} parent=11 // pred_check
          %p894 = pneg %p102
        $region14: #{tpu_custom_call.1} parent=11 // pred_check_branch
          %896 = sbr.rel (%p894) target = $region16
        $region15: #{tpu_custom_call.1} parent=11 // pred_region
          %s898 = ssub.s32 256, 256
          %899 = vsyncadd [#allocation7], %s898
          %s900 = sshll.u32 [#allocation6], 4
          %s901 = int_to_ptr.vmem [resolvable:$true] %s900
          %906 = dma.hbm_to_vmem [thread:$0]  %s1, 256, %s901, [#allocation7], 128, 128, 8
        $region16: #{tpu_custom_call.1} parent=11 // pred_fallthru
          _
        // Predicated region
        $region17: #{tpu_custom_call.1} parent=11 // pred_check
          %p907 = pneg %p123
        $region18: #{tpu_custom_call.1} parent=11 // pred_check_branch
          %909 = sbr.rel (%p907) target = $region20
        $region19: #{tpu_custom_call.1} parent=11 // pred_region
          _
        $region20: #{tpu_custom_call.1} parent=11 // pred_fallthru
          _
        // Predicated region
        $region21: #{tpu_custom_call.1} parent=11 // pred_check
          %p910 = pneg %p144
        $region22: #{tpu_custom_call.1} parent=11 // pred_check_branch
          %912 = sbr.rel (%p910) target = $region24
        $region23: #{tpu_custom_call.1} parent=11 // pred_region
          _
        $region24: #{tpu_custom_call.1} parent=11 // pred_fallthru
          _
        // Predicated region
        $region25: #{tpu_custom_call.1} parent=11 // pred_check
          %p913 = pneg %p165
        $region26: #{tpu_custom_call.1} parent=11 // pred_check_branch
          %915 = sbr.rel (%p913) target = $region28
        $region27: #{tpu_custom_call.1} parent=11 // pred_region
          %s917 = ssub.s32 16, 16
          %918 = vsyncadd [#allocation9], %s917
          %s920 = sshll.u32 [#allocation8], 4
          %s921 = int_to_ptr.vmem [resolvable:$true] %s920
          %923 = dma.hbm_to_vmem [thread:$0]  %s7, 16, %s921, [#allocation9]
        $region28: #{tpu_custom_call.1} parent=11 // pred_fallthru
          _
        // Predicated region
        $region29: #{tpu_custom_call.1} parent=11 // pred_check
          %p924 = pneg %p186
        $region30: #{tpu_custom_call.1} parent=11 // pred_check_branch
          %926 = sbr.rel (%p924) target = $region32
        $region31: #{tpu_custom_call.1} parent=11 // pred_region
          %s928 = ssub.s32 16, 16
          %929 = vsyncadd [#allocation9], %s928
          %s931 = sshll.u32 [#allocation10], 4
          %s932 = int_to_ptr.vmem [resolvable:$true] %s931
          %934 = dma.hbm_to_vmem [thread:$0]  %s9, 16, %s932, [#allocation9]
        $region32: #{tpu_custom_call.1} parent=11 // pred_fallthru
          _
        // Predicated region
        $region33: #{tpu_custom_call.1} parent=11 // pred_check
          %p935 = pneg %p207
        $region34: #{tpu_custom_call.1} parent=11 // pred_check_branch
          %937 = sbr.rel (%p935) target = $region36
        $region35: #{tpu_custom_call.1} parent=11 // pred_region
          %s939 = ssub.s32 256, 256
          %940 = vsyncadd [#allocation12], %s939
          %s941 = sshll.u32 [#allocation11], 4
          %s942 = int_to_ptr.vmem [resolvable:$true] %s941
          %947 = dma.hbm_to_vmem [thread:$0]  %s11, 256, %s942, [#allocation12], 128, 128, 8
        $region36: #{tpu_custom_call.1} parent=11 // pred_fallthru
          _
        // Predicated region
        $region37: #{tpu_custom_call.1} parent=11 // pred_check
          %p948 = pneg %p228
        $region38: #{tpu_custom_call.1} parent=11 // pred_check_branch
          %950 = sbr.rel (%p948) target = $region40
        $region39: #{tpu_custom_call.1} parent=11 // pred_region
          %s952 = ssub.s32 16, 16
          %953 = vsyncadd [#allocation12], %s952
          %s955 = sshll.u32 [#allocation13], 4
          %s956 = int_to_ptr.vmem [resolvable:$true] %s955
          %958 = dma.hbm_to_vmem [thread:$0]  %s13, 16, %s956, [#allocation12]
        $region40: #{tpu_custom_call.1} parent=11 // pred_fallthru
          _
        // Predicated region
        $region41: #{tpu_custom_call.1} parent=11 // pred_check
          %p959 = pneg %p249
        $region42: #{tpu_custom_call.1} parent=11 // pred_check_branch
          %961 = sbr.rel (%p959) target = $region44
        $region43: #{tpu_custom_call.1} parent=11 // pred_region
          _
        $region44: #{tpu_custom_call.1} parent=11 // pred_fallthru
          _
        // Predicated region
        $region45: #{tpu_custom_call.1} parent=11 // pred_check
          %p962 = pneg %p270
        $region46: #{tpu_custom_call.1} parent=11 // pred_check_branch
          %964 = sbr.rel (%p962) target = $region48
        $region47: #{tpu_custom_call.1} parent=11 // pred_region
          %s966 = ssub.s32 16, 16
          %967 = vsyncadd [#allocation15], %s966
          %s969 = sshll.u32 [#allocation14], 4
          %s970 = int_to_ptr.vmem [resolvable:$true] %s969
          %972 = dma.hbm_to_vmem [thread:$0]  %s17, 16, %s970, [#allocation15]
        $region48: #{tpu_custom_call.1} parent=11 // pred_fallthru
          _
        // Predicated region
        $region49: #{tpu_custom_call.1} parent=11 // pred_check
          %p973 = pneg %p291
        $region50: #{tpu_custom_call.1} parent=11 // pred_check_branch
          %975 = sbr.rel (%p973) target = $region52
        $region51: #{tpu_custom_call.1} parent=11 // pred_region
          %s977 = ssub.s32 384, 384
          %978 = vsyncadd [#allocation15], %s977
          %s979 = sshll.u32 [#allocation16], 4
          %s980 = int_to_ptr.vmem [resolvable:$true] %s979
          %985 = dma.hbm_to_vmem [thread:$0]  %s19, 384, %s980, [#allocation15], 128, 128, 8
        $region52: #{tpu_custom_call.1} parent=11 // pred_fallthru
          _
        // Predicated region
        $region53: #{tpu_custom_call.1} parent=11 // pred_check
          %p986 = pneg %p312
        $region54: #{tpu_custom_call.1} parent=11 // pred_check_branch
          %988 = sbr.rel (%p986) target = $region56
        $region55: #{tpu_custom_call.1} parent=11 // pred_region
          %s990 = ssub.s32 16, 16
          %991 = vsyncadd [#allocation18], %s990
          %s993 = sshll.u32 [#allocation17], 4
          %s994 = int_to_ptr.vmem [resolvable:$true] %s993
          %996 = dma.hbm_to_vmem [thread:$0]  %s21, 16, %s994, [#allocation18]
        $region56: #{tpu_custom_call.1} parent=11 // pred_fallthru
          _
        // Predicated region
        $region57: #{tpu_custom_call.1} parent=11 // pred_check
          %p997 = pneg %p333
        $region58: #{tpu_custom_call.1} parent=11 // pred_check_branch
          %999 = sbr.rel (%p997) target = $region60
        $region59: #{tpu_custom_call.1} parent=11 // pred_region
          _
        $region60: #{tpu_custom_call.1} parent=11 // pred_fallthru
          _
        // Predicated region
        $region61: #{tpu_custom_call.1} parent=11 // pred_check
          %p1000 = pneg %p354
        $region62: #{tpu_custom_call.1} parent=11 // pred_check_branch
          %1002 = sbr.rel (%p1000) target = $region64
        $region63: #{tpu_custom_call.1} parent=11 // pred_region
          _
        $region64: #{tpu_custom_call.1} parent=11 // pred_fallthru
          _
        // Predicated region
        $region65: #{tpu_custom_call.1} parent=11 // pred_check
          %p1003 = pneg %p375
        $region66: #{tpu_custom_call.1} parent=11 // pred_check_branch
          %1005 = sbr.rel (%p1003) target = $region68
        $region67: #{tpu_custom_call.1} parent=11 // pred_region
          %s1007 = ssub.s32 128, 128
          %1008 = vsyncadd [#allocation18], %s1007
          %s1009 = sshll.u32 [#allocation19], 4
          %s1010 = int_to_ptr.vmem [resolvable:$true] %s1009
          %1015 = dma.hbm_to_vmem [thread:$0]  %s27, 128, %s1010, [#allocation18], 64, 64, 4
        $region68: #{tpu_custom_call.1} parent=11 // pred_fallthru
          _
        // Predicated region
        $region69: #{tpu_custom_call.1} parent=11 // pred_check
          %p1016 = pneg %p396
        $region70: #{tpu_custom_call.1} parent=11 // pred_check_branch
          %1018 = sbr.rel (%p1016) target = $region72
        $region71: #{tpu_custom_call.1} parent=11 // pred_region
          _
        $region72: #{tpu_custom_call.1} parent=11 // pred_fallthru
          _
        // Predicated region
        $region73: #{tpu_custom_call.1} parent=11 // pred_check
          %p1019 = pneg %p417
        $region74: #{tpu_custom_call.1} parent=11 // pred_check_branch
          %1021 = sbr.rel (%p1019) target = $region76
        $region75: #{tpu_custom_call.1} parent=11 // pred_region
          _
        $region76: #{tpu_custom_call.1} parent=11 // pred_fallthru
          _
        // Predicated region
        $region77: #{tpu_custom_call.1} parent=11 // pred_check
          %p1022 = pneg %p438
        $region78: #{tpu_custom_call.1} parent=11 // pred_check_branch
          %1024 = sbr.rel (%p1022) target = $region80
        $region79: #{tpu_custom_call.1} parent=11 // pred_region
          %s1026 = ssub.s32 256, 256
          %1027 = vsyncadd [#allocation21], %s1026
          %s1028 = sshll.u32 [#allocation20], 4
          %s1029 = int_to_ptr.vmem [resolvable:$true] %s1028
          %1034 = dma.hbm_to_vmem [thread:$0]  %s33, 256, %s1029, [#allocation21], 64, 64, 4
        $region80: #{tpu_custom_call.1} parent=11 // pred_fallthru
          _
        // Predicated region
        $region81: #{tpu_custom_call.1} parent=11 // pred_check
          %p1035 = pneg %p459
        $region82: #{tpu_custom_call.1} parent=11 // pred_check_branch
          %1037 = sbr.rel (%p1035) target = $region84
        $region83: #{tpu_custom_call.1} parent=11 // pred_region
          %s1039 = ssub.s32 16, 16
          %1040 = vsyncadd [#allocation21], %s1039
          %s1042 = sshll.u32 [#allocation22], 4
          %s1043 = int_to_ptr.vmem [resolvable:$true] %s1042
          %1045 = dma.hbm_to_vmem [thread:$0]  %s35, 16, %s1043, [#allocation21]
        $region84: #{tpu_custom_call.1} parent=11 // pred_fallthru
          _
        // Predicated region
        $region85: #{tpu_custom_call.1} parent=11 // pred_check
          %p1046 = pneg %p480
        $region86: #{tpu_custom_call.1} parent=11 // pred_check_branch
          %1048 = sbr.rel (%p1046) target = $region88
        $region87: #{tpu_custom_call.1} parent=11 // pred_region
          _
        $region88: #{tpu_custom_call.1} parent=11 // pred_fallthru
          _
        // Predicated region
        $region89: #{tpu_custom_call.1} parent=11 // pred_check
          %p1049 = pneg %p501
        $region90: #{tpu_custom_call.1} parent=11 // pred_check_branch
          %1051 = sbr.rel (%p1049) target = $region92
        $region91: #{tpu_custom_call.1} parent=11 // pred_region
          _
        $region92: #{tpu_custom_call.1} parent=11 // pred_fallthru
          _
        // Predicated region
        $region93: #{tpu_custom_call.1} parent=11 // pred_check
          %p1052 = pneg %p522
        $region94: #{tpu_custom_call.1} parent=11 // pred_check_branch
          %1054 = sbr.rel (%p1052) target = $region96
        $region95: #{tpu_custom_call.1} parent=11 // pred_region
          _
        $region96: #{tpu_custom_call.1} parent=11 // pred_fallthru
          _
      $region12: #{tpu_custom_call.1} parent=5 // pred_fallthru
        _
      %p1055 = scmp.lt.s32.totalorder %s81, 4
      // Predicated region
      $region97: #{tpu_custom_call.1} parent=5 // pred_check
        %p1056 = pneg %p1055
      $region98: #{tpu_custom_call.1} parent=5 // pred_check_branch
        %1058 = sbr.rel (%p1056) target = $region100
      $region99: #{tpu_custom_call.1} parent=5 // pred_region
        // Predicated region
        $region101: #{tpu_custom_call.1} parent=99 // pred_check
          %p1059 = pneg %p546
        $region102: #{tpu_custom_call.1} parent=99 // pred_check_branch
          %1061 = sbr.rel (%p1059) target = $region104
        $region103: #{tpu_custom_call.1} parent=99 // pred_region
          %p1062 = scmp.lt.s32.totalorder %s81, 1
          %s1063 = scalar_select %p1062, %s81, 1
          %p1064 = scmp.lt.s32.totalorder %s1063, 1
          %s1065 = scalar_select %p1064, %s1063, 1
          %s1066 = smul.addr %s1065, 4
          %s1067 = smul.addr %s1066, 8
          %s1068 = scalar_lea.vmem %s43, %s1067
          %p1069 = scmp.lt.s32.totalorder %s81, 1
          %s1070 = scalar_select %p1069, %s81, 1
        $region104: #{tpu_custom_call.1} parent=99 // pred_fallthru
          _
        // Predicated region
        $region105: #{tpu_custom_call.1} parent=99 // pred_check
          %p1071 = pneg %p576
        $region106: #{tpu_custom_call.1} parent=99 // pred_check_branch
          %1073 = sbr.rel (%p1071) target = $region108
        $region107: #{tpu_custom_call.1} parent=99 // pred_region
          %p1074 = scmp.lt.s32.totalorder %s81, 1
          %s1075 = scalar_select %p1074, %s81, 1
          %p1076 = scmp.lt.s32.totalorder %s1075, 1
          %s1077 = scalar_select %p1076, %s1075, 1
          %s1078 = scalar_lea.vmem %s45, %s1077
          %p1079 = scmp.lt.s32.totalorder %s81, 1
          %s1080 = scalar_select %p1079, %s81, 1
        $region108: #{tpu_custom_call.1} parent=99 // pred_fallthru
          _
        // Predicated region
        $region109: #{tpu_custom_call.1} parent=99 // pred_check
          %p1081 = pneg %p606
        $region110: #{tpu_custom_call.1} parent=99 // pred_check_branch
          %1083 = sbr.rel (%p1081) target = $region112
        $region111: #{tpu_custom_call.1} parent=99 // pred_region
          %p1084 = scmp.lt.s32.totalorder %s81, 1
          %s1085 = scalar_select %p1084, %s81, 1
          %p1086 = scmp.lt.s32.totalorder %s1085, 1
          %s1087 = scalar_select %p1086, %s1085, 1
          %s1088 = smul.addr %s1087, 4
          %s1089 = smul.addr %s1088, 4
          %s1090 = scalar_lea.vmem %s47, %s1089
          %p1091 = scmp.lt.s32.totalorder %s81, 1
          %s1092 = scalar_select %p1091, %s81, 1
        $region112: #{tpu_custom_call.1} parent=99 // pred_fallthru
          _
        // Predicated region
        $region113: #{tpu_custom_call.1} parent=99 // pred_check
          %p1093 = pneg %p636
        $region114: #{tpu_custom_call.1} parent=99 // pred_check_branch
          %1095 = sbr.rel (%p1093) target = $region116
        $region115: #{tpu_custom_call.1} parent=99 // pred_region
          %p1096 = scmp.lt.s32.totalorder %s81, 1
          %s1097 = scalar_select %p1096, %s81, 1
          %p1098 = scmp.lt.s32.totalorder %s1097, 1
          %s1099 = scalar_select %p1098, %s1097, 1
          %s1100 = scalar_lea.vmem %s49, %s1099
          %p1101 = scmp.lt.s32.totalorder %s81, 1
          %s1102 = scalar_select %p1101, %s81, 1
        $region116: #{tpu_custom_call.1} parent=99 // pred_fallthru
          _
        // Predicated region
        $region117: #{tpu_custom_call.1} parent=99 // pred_check
          %p1103 = pneg %p666
        $region118: #{tpu_custom_call.1} parent=99 // pred_check_branch
          %1105 = sbr.rel (%p1103) target = $region120
        $region119: #{tpu_custom_call.1} parent=99 // pred_region
          %p1106 = scmp.lt.s32.totalorder %s81, 1
          %s1107 = scalar_select %p1106, %s81, 1
          %p1108 = scmp.lt.s32.totalorder %s1107, 1
          %s1109 = scalar_select %p1108, %s1107, 1
          %s1110 = scalar_lea.vmem %s51, %s1109
          %p1111 = scmp.lt.s32.totalorder %s81, 1
          %s1112 = scalar_select %p1111, %s81, 1
        $region120: #{tpu_custom_call.1} parent=99 // pred_fallthru
          _
        // Predicated region
        $region121: #{tpu_custom_call.1} parent=99 // pred_check
          %p1113 = pneg %p696
        $region122: #{tpu_custom_call.1} parent=99 // pred_check_branch
          %1115 = sbr.rel (%p1113) target = $region124
        $region123: #{tpu_custom_call.1} parent=99 // pred_region
          %p1116 = scmp.lt.s32.totalorder %s81, 1
          %s1117 = scalar_select %p1116, %s81, 1
          %p1118 = scmp.lt.s32.totalorder %s1117, 1
          %s1119 = scalar_select %p1118, %s1117, 1
          %s1120 = scalar_lea.vmem %s53, %s1119
          %p1121 = scmp.lt.s32.totalorder %s81, 1
          %s1122 = scalar_select %p1121, %s81, 1
        $region124: #{tpu_custom_call.1} parent=99 // pred_fallthru
          _
        // Predicated region
        $region125: #{tpu_custom_call.1} parent=99 // pred_check
          %p1123 = pneg %p722
        $region126: #{tpu_custom_call.1} parent=99 // pred_check_branch
          %1125 = sbr.rel (%p1123) target = $region128
        $region127: #{tpu_custom_call.1} parent=99 // pred_region
          %p1126 = scmp.lt.s32.totalorder %s81, 3
          %s1127 = scalar_select %p1126, %s81, 3
          %s1128 = smul.addr %s1127, 4
          %s1129 = smul.addr %s1128, 8
          %s1130 = scalar_lea.vmem %s55, %s1129
        $region128: #{tpu_custom_call.1} parent=99 // pred_fallthru
          _
        // Predicated region
        $region129: #{tpu_custom_call.1} parent=99 // pred_check
          %p1131 = pneg %p748
        $region130: #{tpu_custom_call.1} parent=99 // pred_check_branch
          %1133 = sbr.rel (%p1131) target = $region132
        $region131: #{tpu_custom_call.1} parent=99 // pred_region
          %p1134 = scmp.lt.s32.totalorder %s81, 3
          %s1135 = scalar_select %p1134, %s81, 3
          %s1136 = scalar_lea.vmem %s57, %s1135
        $region132: #{tpu_custom_call.1} parent=99 // pred_fallthru
          _
        // Predicated region
        $region133: #{tpu_custom_call.1} parent=99 // pred_check
          %p1137 = pneg %p774
        $region134: #{tpu_custom_call.1} parent=99 // pred_check_branch
          %1139 = sbr.rel (%p1137) target = $region136
        $region135: #{tpu_custom_call.1} parent=99 // pred_region
          %p1140 = scmp.lt.s32.totalorder %s81, 3
          %s1141 = scalar_select %p1140, %s81, 3
          %s1142 = smul.addr %s1141, 4
          %s1143 = smul.addr %s1142, 4
          %s1144 = scalar_lea.vmem %s59, %s1143
        $region136: #{tpu_custom_call.1} parent=99 // pred_fallthru
          _
        // Predicated region
        $region137: #{tpu_custom_call.1} parent=99 // pred_check
          %p1145 = pneg %p800
        $region138: #{tpu_custom_call.1} parent=99 // pred_check_branch
          %1147 = sbr.rel (%p1145) target = $region140
        $region139: #{tpu_custom_call.1} parent=99 // pred_region
          %p1148 = scmp.lt.s32.totalorder %s81, 3
          %s1149 = scalar_select %p1148, %s81, 3
          %s1150 = scalar_lea.vmem %s61, %s1149
        $region140: #{tpu_custom_call.1} parent=99 // pred_fallthru
          _
        // Predicated region
        $region141: #{tpu_custom_call.1} parent=99 // pred_check
          %p1151 = pneg %p826
        $region142: #{tpu_custom_call.1} parent=99 // pred_check_branch
          %1153 = sbr.rel (%p1151) target = $region144
        $region143: #{tpu_custom_call.1} parent=99 // pred_region
          %p1154 = scmp.lt.s32.totalorder %s81, 3
          %s1155 = scalar_select %p1154, %s81, 3
          %s1156 = scalar_lea.vmem %s63, %s1155
        $region144: #{tpu_custom_call.1} parent=99 // pred_fallthru
          _
        // Predicated region
        $region145: #{tpu_custom_call.1} parent=99 // pred_check
          %p1157 = pneg %p852
        $region146: #{tpu_custom_call.1} parent=99 // pred_check_branch
          %1159 = sbr.rel (%p1157) target = $region148
        $region147: #{tpu_custom_call.1} parent=99 // pred_region
          %p1160 = scmp.lt.s32.totalorder %s81, 3
          %s1161 = scalar_select %p1160, %s81, 3
          %s1162 = scalar_lea.vmem %s65, %s1161
        $region148: #{tpu_custom_call.1} parent=99 // pred_fallthru
          _
      $region100: #{tpu_custom_call.1} parent=5 // pred_fallthru
        _
      %p1163 = scmp.le.s32.totalorder 1, %s81
      %p1164 = scmp.lt.s32.totalorder %s81, 5
      %p1165 = pnand %p1163, %p1164
      %p1166 = pneg %p1165
      // Predicated region
      $region149: #{tpu_custom_call.1} parent=5 // pred_check
        _
      $region150: #{tpu_custom_call.1} parent=5 // pred_check_branch
        %1168 = sbr.rel (%p1165) target = $region152
      $region151: #{tpu_custom_call.1} parent=5 // pred_region
        %s1169 = ssub.s32 %s81, 1
        // Predicated region
        $region153: #{tpu_custom_call.1} parent=151 // pred_check
          %p1170 = pneg %p102
        $region154: #{tpu_custom_call.1} parent=151 // pred_check_branch
          %1172 = sbr.rel (%p1170) target = $region156
        $region155: #{tpu_custom_call.1} parent=151 // pred_region
          %1173 = dma.done [#allocation7], 256
        $region156: #{tpu_custom_call.1} parent=151 // pred_fallthru
          _
        // Predicated region
        $region157: #{tpu_custom_call.1} parent=151 // pred_check
          %p1174 = pneg %p165
        $region158: #{tpu_custom_call.1} parent=151 // pred_check_branch
          %1176 = sbr.rel (%p1174) target = $region160
        $region159: #{tpu_custom_call.1} parent=151 // pred_region
          %1177 = dma.done [#allocation9], 16
        $region160: #{tpu_custom_call.1} parent=151 // pred_fallthru
          _
        // Predicated region
        $region161: #{tpu_custom_call.1} parent=151 // pred_check
          %p1178 = pneg %p186
        $region162: #{tpu_custom_call.1} parent=151 // pred_check_branch
          %1180 = sbr.rel (%p1178) target = $region164
        $region163: #{tpu_custom_call.1} parent=151 // pred_region
          %1181 = dma.done [#allocation9], 16
        $region164: #{tpu_custom_call.1} parent=151 // pred_fallthru
          _
        // Predicated region
        $region165: #{tpu_custom_call.1} parent=151 // pred_check
          %p1182 = pneg %p207
        $region166: #{tpu_custom_call.1} parent=151 // pred_check_branch
          %1184 = sbr.rel (%p1182) target = $region168
        $region167: #{tpu_custom_call.1} parent=151 // pred_region
          %1185 = dma.done [#allocation12], 256
        $region168: #{tpu_custom_call.1} parent=151 // pred_fallthru
          _
        // Predicated region
        $region169: #{tpu_custom_call.1} parent=151 // pred_check
          %p1186 = pneg %p228
        $region170: #{tpu_custom_call.1} parent=151 // pred_check_branch
          %1188 = sbr.rel (%p1186) target = $region172
        $region171: #{tpu_custom_call.1} parent=151 // pred_region
          %1189 = dma.done [#allocation12], 16
        $region172: #{tpu_custom_call.1} parent=151 // pred_fallthru
          _
        // Predicated region
        $region173: #{tpu_custom_call.1} parent=151 // pred_check
          %p1190 = pneg %p270
        $region174: #{tpu_custom_call.1} parent=151 // pred_check_branch
          %1192 = sbr.rel (%p1190) target = $region176
        $region175: #{tpu_custom_call.1} parent=151 // pred_region
          %1193 = dma.done [#allocation15], 16
        $region176: #{tpu_custom_call.1} parent=151 // pred_fallthru
          _
        // Predicated region
        $region177: #{tpu_custom_call.1} parent=151 // pred_check
          %p1194 = pneg %p291
        $region178: #{tpu_custom_call.1} parent=151 // pred_check_branch
          %1196 = sbr.rel (%p1194) target = $region180
        $region179: #{tpu_custom_call.1} parent=151 // pred_region
          %1197 = dma.done [#allocation15], 384
        $region180: #{tpu_custom_call.1} parent=151 // pred_fallthru
          _
        // Predicated region
        $region181: #{tpu_custom_call.1} parent=151 // pred_check
          %p1198 = pneg %p312
        $region182: #{tpu_custom_call.1} parent=151 // pred_check_branch
          %1200 = sbr.rel (%p1198) target = $region184
        $region183: #{tpu_custom_call.1} parent=151 // pred_region
          %1201 = dma.done [#allocation18], 16
        $region184: #{tpu_custom_call.1} parent=151 // pred_fallthru
          _
        // Predicated region
        $region185: #{tpu_custom_call.1} parent=151 // pred_check
          %p1202 = pneg %p375
        $region186: #{tpu_custom_call.1} parent=151 // pred_check_branch
          %1204 = sbr.rel (%p1202) target = $region188
        $region187: #{tpu_custom_call.1} parent=151 // pred_region
          %1205 = dma.done [#allocation18], 128
        $region188: #{tpu_custom_call.1} parent=151 // pred_fallthru
          _
        // Predicated region
        $region189: #{tpu_custom_call.1} parent=151 // pred_check
          %p1206 = pneg %p438
        $region190: #{tpu_custom_call.1} parent=151 // pred_check_branch
          %1208 = sbr.rel (%p1206) target = $region192
        $region191: #{tpu_custom_call.1} parent=151 // pred_region
          %1209 = dma.done [#allocation21], 256
        $region192: #{tpu_custom_call.1} parent=151 // pred_fallthru
          _
        // Predicated region
        $region193: #{tpu_custom_call.1} parent=151 // pred_check
          %p1210 = pneg %p459
        $region194: #{tpu_custom_call.1} parent=151 // pred_check_branch
          %1212 = sbr.rel (%p1210) target = $region196
        $region195: #{tpu_custom_call.1} parent=151 // pred_region
          %1213 = dma.done [#allocation21], 16
        $region196: #{tpu_custom_call.1} parent=151 // pred_fallthru
          _
        %p1214 = pneg %p102
        %p1215 = pneg %p99
        %p1216 = pneg %p123
        %p1217 = pneg %p120
        %p1218 = pneg %p144
        %p1219 = pneg %p141
        %p1220 = pneg %p165
        %p1221 = pneg %p162
        %p1222 = pneg %p186
        %p1223 = pneg %p183
        %p1224 = pneg %p207
        %p1225 = pneg %p204
        %p1226 = pneg %p228
        %p1227 = pneg %p225
        %p1228 = pneg %p249
        %p1229 = pneg %p246
        %p1230 = pneg %p270
        %p1231 = pneg %p267
        %p1232 = pneg %p291
        %p1233 = pneg %p288
        %p1234 = pneg %p312
        %p1235 = pneg %p309
        %p1236 = pneg %p333
        %p1237 = pneg %p330
        %p1238 = pneg %p354
        %p1239 = pneg %p351
        %p1240 = pneg %p375
        %p1241 = pneg %p372
        %p1242 = pneg %p396
        %p1243 = pneg %p393
        %p1244 = pneg %p417
        %p1245 = pneg %p414
        %p1246 = pneg %p438
        %p1247 = pneg %p435
        %p1248 = pneg %p459
        %p1249 = pneg %p456
        %p1250 = pneg %p480
        %p1251 = pneg %p477
        %p1252 = pneg %p501
        %p1253 = pneg %p498
        %p1254 = pneg %p522
        %p1255 = pneg %p519
        %p1256 = scmp.lt.s32.totalorder %s86, 1
        %s1257 = scalar_select %p1256, %s86, 1
        %p1258 = scmp.lt.s32.totalorder %s1257, 1
        %s1259 = scalar_select %p1258, %s1257, 1
        %s1260 = smul.addr %s1259, 4
        %s1261 = smul.addr %s1260, 8
        %s1262 = scalar_lea.vmem %s43, %s1261
        %p1263 = pneg %p552
        %p1264 = pneg %p549
        %p1265 = scmp.lt.s32.totalorder %s86, 1
        %s1266 = scalar_select %p1265, %s86, 1
        %p1267 = scmp.lt.s32.totalorder %s1266, 1
        %s1268 = scalar_select %p1267, %s1266, 1
        %s1269 = scalar_lea.vmem %s45, %s1268
        %p1270 = pneg %p582
        %p1271 = pneg %p579
        %p1272 = scmp.lt.s32.totalorder %s86, 1
        %s1273 = scalar_select %p1272, %s86, 1
        %p1274 = scmp.lt.s32.totalorder %s1273, 1
        %s1275 = scalar_select %p1274, %s1273, 1
        %s1276 = smul.addr %s1275, 4
        %s1277 = smul.addr %s1276, 4
        %s1278 = scalar_lea.vmem %s47, %s1277
        %p1279 = pneg %p612
        %p1280 = pneg %p609
        %p1281 = scmp.lt.s32.totalorder %s86, 1
        %s1282 = scalar_select %p1281, %s86, 1
        %p1283 = scmp.lt.s32.totalorder %s1282, 1
        %s1284 = scalar_select %p1283, %s1282, 1
        %s1285 = scalar_lea.vmem %s49, %s1284
        %p1286 = pneg %p642
        %p1287 = pneg %p639
        %p1288 = scmp.lt.s32.totalorder %s86, 1
        %s1289 = scalar_select %p1288, %s86, 1
        %p1290 = scmp.lt.s32.totalorder %s1289, 1
        %s1291 = scalar_select %p1290, %s1289, 1
        %s1292 = scalar_lea.vmem %s51, %s1291
        %p1293 = pneg %p672
        %p1294 = pneg %p669
        %p1295 = scmp.lt.s32.totalorder %s86, 1
        %s1296 = scalar_select %p1295, %s86, 1
        %p1297 = scmp.lt.s32.totalorder %s1296, 1
        %s1298 = scalar_select %p1297, %s1296, 1
        %s1299 = scalar_lea.vmem %s53, %s1298
        %p1300 = pneg %p702
        %p1301 = pneg %p699
        %p1302 = scmp.lt.s32.totalorder %s86, 3
        %s1303 = scalar_select %p1302, %s86, 3
        %s1304 = smul.addr %s1303, 4
        %s1305 = smul.addr %s1304, 8
        %s1306 = scalar_lea.vmem %s55, %s1305
        %p1307 = pneg %p728
        %p1308 = pneg %p725
        %p1309 = scmp.lt.s32.totalorder %s86, 3
        %s1310 = scalar_select %p1309, %s86, 3
        %s1311 = scalar_lea.vmem %s57, %s1310
        %p1312 = pneg %p754
        %p1313 = pneg %p751
        %p1314 = scmp.lt.s32.totalorder %s86, 3
        %s1315 = scalar_select %p1314, %s86, 3
        %s1316 = smul.addr %s1315, 4
        %s1317 = smul.addr %s1316, 4
        %s1318 = scalar_lea.vmem %s59, %s1317
        %p1319 = pneg %p780
        %p1320 = pneg %p777
        %p1321 = scmp.lt.s32.totalorder %s86, 3
        %s1322 = scalar_select %p1321, %s86, 3
        %s1323 = scalar_lea.vmem %s61, %s1322
        %p1324 = pneg %p806
        %p1325 = pneg %p803
        %p1326 = scmp.lt.s32.totalorder %s86, 3
        %s1327 = scalar_select %p1326, %s86, 3
        %s1328 = scalar_lea.vmem %s63, %s1327
        %p1329 = pneg %p832
        %p1330 = pneg %p829
        %p1331 = scmp.lt.s32.totalorder %s86, 3
        %s1332 = scalar_select %p1331, %s86, 3
        %s1333 = scalar_lea.vmem %s65, %s1332
        %p1334 = pneg %p858
        %p1335 = pneg %p855
        %p1336 = pneg %p879
        %p1337 = pneg %p876
        %p1338 = scmp.lt.s32.totalorder %s86, 1
        %s1339 = scalar_select %p1338, %s86, 1
        %p1340 = scmp.lt.s32.totalorder %s1339, 1
        %s1341 = scalar_select %p1340, %s1339, 1
        %s1342 = smul.addr %s1341, 4
        %s1343 = smul.addr %s1342, 8
        %s1344 = scalar_lea.vmem %s43, %s1343
        %p1345 = scmp.lt.s32.totalorder %s86, 1
        %s1346 = scalar_select %p1345, %s86, 1
        %p1347 = scmp.lt.s32.totalorder %s86, 1
        %s1348 = scalar_select %p1347, %s86, 1
        %p1349 = scmp.lt.s32.totalorder %s1348, 1
        %s1350 = scalar_select %p1349, %s1348, 1
        %s1351 = scalar_lea.vmem %s45, %s1350
        %p1352 = scmp.lt.s32.totalorder %s86, 1
        %s1353 = scalar_select %p1352, %s86, 1
        %p1354 = scmp.lt.s32.totalorder %s86, 1
        %s1355 = scalar_select %p1354, %s86, 1
        %p1356 = scmp.lt.s32.totalorder %s1355, 1
        %s1357 = scalar_select %p1356, %s1355, 1
        %s1358 = smul.addr %s1357, 4
        %s1359 = smul.addr %s1358, 4
        %s1360 = scalar_lea.vmem %s47, %s1359
        %p1361 = scmp.lt.s32.totalorder %s86, 1
        %s1362 = scalar_select %p1361, %s86, 1
        %p1363 = scmp.lt.s32.totalorder %s86, 1
        %s1364 = scalar_select %p1363, %s86, 1
        %p1365 = scmp.lt.s32.totalorder %s1364, 1
        %s1366 = scalar_select %p1365, %s1364, 1
        %s1367 = scalar_lea.vmem %s49, %s1366
        %p1368 = scmp.lt.s32.totalorder %s86, 1
        %s1369 = scalar_select %p1368, %s86, 1
        %p1370 = scmp.lt.s32.totalorder %s86, 1
        %s1371 = scalar_select %p1370, %s86, 1
        %p1372 = scmp.lt.s32.totalorder %s1371, 1
        %s1373 = scalar_select %p1372, %s1371, 1
        %s1374 = scalar_lea.vmem %s51, %s1373
        %p1375 = scmp.lt.s32.totalorder %s86, 1
        %s1376 = scalar_select %p1375, %s86, 1
        %p1377 = scmp.lt.s32.totalorder %s86, 1
        %s1378 = scalar_select %p1377, %s86, 1
        %p1379 = scmp.lt.s32.totalorder %s1378, 1
        %s1380 = scalar_select %p1379, %s1378, 1
        %s1381 = scalar_lea.vmem %s53, %s1380
        %p1382 = scmp.lt.s32.totalorder %s86, 1
        %s1383 = scalar_select %p1382, %s86, 1
        %p1384 = scmp.lt.s32.totalorder %s86, 3
        %s1385 = scalar_select %p1384, %s86, 3
        %s1386 = smul.addr %s1385, 4
        %s1387 = smul.addr %s1386, 8
        %s1388 = scalar_lea.vmem %s55, %s1387
        %p1389 = scmp.lt.s32.totalorder %s86, 3
        %s1390 = scalar_select %p1389, %s86, 3
        %s1391 = scalar_lea.vmem %s57, %s1390
        %p1392 = scmp.lt.s32.totalorder %s86, 3
        %s1393 = scalar_select %p1392, %s86, 3
        %s1394 = smul.addr %s1393, 4
        %s1395 = smul.addr %s1394, 4
        %s1396 = scalar_lea.vmem %s59, %s1395
        %p1397 = scmp.lt.s32.totalorder %s86, 3
        %s1398 = scalar_select %p1397, %s86, 3
        %s1399 = scalar_lea.vmem %s61, %s1398
        %p1400 = scmp.lt.s32.totalorder %s86, 3
        %s1401 = scalar_select %p1400, %s86, 3
        %s1402 = scalar_lea.vmem %s63, %s1401
        %p1403 = scmp.lt.s32.totalorder %s86, 3
        %s1404 = scalar_select %p1403, %s86, 3
        %s1405 = scalar_lea.vmem %s65, %s1404
        %p1407 = scmp.eq.s32.totalorder %s86, 0
        // Predicated region
        $region197: #{tpu_custom_call.1} parent=151 // pred_check
          %p1408 = pneg %p1407
        $region198: #{tpu_custom_call.1} parent=151 // pred_check_branch
          %1410 = sbr.rel (%p1408) target = $region200
        $region199: #{tpu_custom_call.1} parent=151 // pred_region
          %v1411 = vld [vmem:[#allocation6] sm:$0xff]
          %v1412 = vld [vmem:[#allocation6 + $0x8] sm:$0xff]
          %v1413 = vld [vmem:[#allocation11] sm:$0xff]
          %v1414 = vld [vmem:[#allocation11 + $0x8] sm:$0xff]
          %v1415 = vld [vmem:[#allocation13] sm:$0x1]
          %v1417 = vlaneseq
          %v1418 = vshrl.u32 %v1417, 7
          %v1419 = vsub.s32 0, %v1418
          %v1420 = vrot.slane %v1415, %v1419
          %vm1422 = vcmask 130048
          %v1424 = vsel %vm1422, %v1411, 0
          %v1427 = vsel %vm1422, %v1412, 0
          %1429 = vmatprep.subr.mxu0 0.0
          %1430 = vmatpush1.msra.mxu0 0.0
          %1431 = vmatprep.subr.mxu0 0.0
          %1432 = vmatpush1.msra.mxu0 0.0
          %1433 = vmatprep.subr.mxu0 0.0
          %1434 = vmatpush1.msra.mxu0 0.0
          %1435 = vmatprep.subr.mxu0 0.0
          %1436 = vmatpush1.msra.mxu0 0.0
          %1437 = vmatprep.subr.mxu0 0.0
          %1438 = vmatpush1.msra.mxu0 0.0
          %1439 = vmatprep.subr.mxu0 0.0
          %1440 = vmatpush1.msra.mxu0 0.0
          %1441 = vmatprep.subr.mxu0 0.0
          %1442 = vmatpush1.msra.mxu0 0.0
          %1443 = vmatprep.subr.mxu0 0.0
          %1444 = vmatpush1.msra.mxu0 0.0
          %1445 = vmatprep.subr.mxu0 0.0
          %1446 = vmatpush1.msra.mxu0 0.0
          %1447 = vmatprep.subr.mxu0 0.0
          %1448 = vmatpush1.msra.mxu0 0.0
          %1449 = vmatprep.subr.mxu0 0.0
          %1450 = vmatpush1.msra.mxu0 0.0
          %1451 = vmatprep.subr.mxu0 0.0
          %1452 = vmatpush1.msra.mxu0 0.0
          %1453 = vmatprep.subr.mxu0 0.0
          %1454 = vmatpush1.msra.mxu0 0.0
          %1455 = vmatprep.subr.mxu0 0.0
          %1456 = vmatpush1.msra.mxu0 0.0
          %1457 = vmatprep.subr.mxu0 0.0
          %1458 = vmatpush1.msra.mxu0 %v1414
          %1459 = vmatprep.subr.mxu0 0.0
          %1460 = vmatpush1.msra.mxu0 %v1413
          %1461 = vmatprep.subr.mxu0 0.0
          %1462 = vmatpush2.msra.mxu0 0.0
          %1463 = vmatprep.subr.mxu0 0.0
          %1464 = vmatpush2.msra.mxu0 0.0
          %1465 = vmatprep.subr.mxu0 0.0
          %1466 = vmatpush2.msra.mxu0 0.0
          %1467 = vmatprep.subr.mxu0 0.0
          %1468 = vmatpush2.msra.mxu0 0.0
          %1469 = vmatprep.subr.mxu0 0.0
          %1470 = vmatpush2.msra.mxu0 0.0
          %1471 = vmatprep.subr.mxu0 0.0
          %1472 = vmatpush2.msra.mxu0 0.0
          %1473 = vmatprep.subr.mxu0 0.0
          %1474 = vmatpush2.msra.mxu0 0.0
          %1475 = vmatprep.subr.mxu0 0.0
          %1476 = vmatpush2.msra.mxu0 0.0
          %1477 = vmatprep.subr.mxu0 0.0
          %1478 = vmatpush2.msra.mxu0 0.0
          %1479 = vmatprep.subr.mxu0 0.0
          %1480 = vmatpush2.msra.mxu0 0.0
          %1481 = vmatprep.subr.mxu0 0.0
          %1482 = vmatpush2.msra.mxu0 0.0
          %1483 = vmatprep.subr.mxu0 0.0
          %1484 = vmatpush2.msra.mxu0 0.0
          %1485 = vmatprep.subr.mxu0 0.0
          %1486 = vmatpush2.msra.mxu0 0.0
          %1487 = vmatprep.subr.mxu0 0.0
          %1488 = vmatpush2.msra.mxu0 0.0
          %1489 = vmatprep.subr.mxu0 0.0
          %1490 = vmatpush2.msra.mxu0 0.0
          %1491 = vmatprep.subr.mxu0 0.0
          %1492 = vmatpush2.msra.mxu0 0.0
          %1493 = vmatprep.mubr.f32.mxu0 0.0
          %1494 = vmatmul.mubr.f32.gmra.mxu0 %v1424
          %v1495 = vpop.f32.mrf.mxu0
          %v1496 = vadd.f32 %v1420, %v1495
          %v1497 = vpop.f32.mrf.mxu0
          %1498 = vmatprep.mubr.f32.mxu0 0.0
          %1499 = vmatmul.mubr.f32.gmra.mxu0 %v1427
          %v1500 = vpop.f32.mrf.mxu0
          %v1501 = vadd.f32 %v1420, %v1500
          %v1502 = vpop.f32.mrf.mxu0
          %1503 = vdwg.mxu0
          %v1504 = vxor.u32 %v1496, 2147483648
          %v1505 = vxor.u32 %v1501, 2147483648
          %v1506 = vmul.f32 %v1504, 1.442695
          %v1507 = vpow.pop %v1506
          %v1508 = vmul.f32 %v1505, 1.442695
          %v1509 = vpow.pop %v1508
          %v1510 = vadd.f32 %v1507, 1.0
          %v1511 = vadd.f32 %v1509, 1.0
          %v1512 = vrcp.pop %v1510
          %v1513 = vmul.f32 1.0, %v1512
          %v1514 = vrcp.pop %v1511
          %v1515 = vmul.f32 1.0, %v1514
          %v1516 = vmul.f32 %v1496, %v1513
          %v1517 = vmul.f32 %v1501, %v1515
          %vm1518 = vcmask 261120
          %1519 = vst.msk [vmem:[#allocation2] sm:$0xff] %vm1518, %v1516
          %1520 = vst.msk [vmem:[#allocation2 + $0x8] sm:$0xff] %vm1518, %v1517
          %v1521 = vld [vmem:[%s3] sm:$0xff]
          %v1522 = vld [vmem:[%s3 + $0x8] sm:$0xff]
          %v1523 = vld [vmem:[%s3 + $0x10] sm:$0xff]
          %v1524 = vld [vmem:[%s3 + $0x18] sm:$0xff]
          %v1525 = vld [vmem:[#allocation8] sm:$0x1]
          %1527 = vset.pattern.permute.xlu0 0
          %1528 = vperm.xlu0 %1527, %v1521
          %v1529 = vpop.permute.xlu0 %1528
          %1532 = vset.pattern.permute.xlu0 0
          %1533 = vperm.xlu0 %1532, %v1522
          %v1534 = vpop.permute.xlu0 %1533
          %1537 = vset.pattern.permute.xlu0 0
          %1538 = vperm.xlu0 %1537, %v1523
          %v1539 = vpop.permute.xlu0 %1538
          %1542 = vset.pattern.permute.xlu0 0
          %1543 = vperm.xlu0 %1542, %v1524
          %v1544 = vpop.permute.xlu0 %1543
          %v1547 = vlaneseq
          %v1548 = vshrl.u32 %v1547, 7
          %v1549 = vsub.s32 0, %v1548
          %v1550 = vrot.slane %v1525, %v1549
          %v1552 = vsub.f32 %v1529, %v1550
          %v1553 = vsub.f32 %v1534, %v1550
          %v1554 = vsub.f32 %v1539, %v1550
          %v1555 = vsub.f32 %v1544, %v1550
          %v1556 = vmul.f32 %v1552, %v1552
          %v1557 = vmul.f32 %v1553, %v1553
          %v1558 = vmul.f32 %v1554, %v1554
          %v1559 = vmul.f32 %v1555, %v1555
          %v1560 = vsub.f32 0.0, %v1556
          %v1561 = vsub.f32 0.0, %v1557
          %v1562 = vsub.f32 0.0, %v1558
          %v1563 = vsub.f32 0.0, %v1559
          %v1564 = vmul.f32 %v1560, 1.442695
          %v1565 = vpow.pop %v1564
          %v1566 = vmul.f32 %v1561, 1.442695
          %v1567 = vpow.pop %v1566
          %v1568 = vmul.f32 %v1562, 1.442695
          %v1569 = vpow.pop %v1568
          %v1570 = vmul.f32 %v1563, 1.442695
          %v1571 = vpow.pop %v1570
          %v1572 = vld [vmem:[%s15] sm:$0xff]
          %v1573 = vld [vmem:[%s15 + $0x8] sm:$0xff]
          %v1574 = vld [vmem:[%s15 + $0x10] sm:$0xff]
          %v1575 = vld [vmem:[%s15 + $0x18] sm:$0xff]
          %v1576 = vld [vmem:[%s15 + $0x20] sm:$0xff]
          %v1577 = vld [vmem:[#allocation14] sm:$0x1]
          %v1579 = vlaneseq
          %v1580 = vshrl.u32 %v1579, 7
          %v1581 = vsub.s32 0, %v1580
          %v1582 = vrot.slane %v1577, %v1581
          %vm1584 = vcmask 326656
          %v1586 = vsel %vm1584, %v1565, 0
          %v1589 = vsel %vm1584, %v1567, 0
          %v1592 = vsel %vm1584, %v1569, 0
          %v1595 = vsel %vm1584, %v1571, 0
          %1597 = vmatprep.subr.mxu0 0.0
          %1598 = vmatpush1.msra.mxu0 0.0
          %1599 = vmatprep.subr.mxu0 0.0
          %1600 = vmatpush1.msra.mxu0 0.0
          %1601 = vmatprep.subr.mxu0 0.0
          %1602 = vmatpush1.msra.mxu0 0.0
          %1603 = vmatprep.subr.mxu0 0.0
          %1604 = vmatpush1.msra.mxu0 0.0
          %1605 = vmatprep.subr.mxu0 0.0
          %1606 = vmatpush1.msra.mxu0 0.0
          %1607 = vmatprep.subr.mxu0 0.0
          %1608 = vmatpush1.msra.mxu0 0.0
          %1609 = vmatprep.subr.mxu0 0.0
          %1610 = vmatpush1.msra.mxu0 0.0
          %1611 = vmatprep.subr.mxu0 0.0
          %1612 = vmatpush1.msra.mxu0 0.0
          %1613 = vmatprep.subr.mxu0 0.0
          %1614 = vmatpush1.msra.mxu0 0.0
          %1615 = vmatprep.subr.mxu0 0.0
          %1616 = vmatpush1.msra.mxu0 0.0
          %1617 = vmatprep.subr.mxu0 0.0
          %1618 = vmatpush1.msra.mxu0 0.0
          %1619 = vmatprep.subr.mxu0 0.0
          %1620 = vmatpush1.msra.mxu0 %v1576
          %1621 = vmatprep.subr.mxu0 0.0
          %1622 = vmatpush1.msra.mxu0 %v1575
          %1623 = vmatprep.subr.mxu0 0.0
          %1624 = vmatpush1.msra.mxu0 %v1574
          %1625 = vmatprep.subr.mxu0 0.0
          %1626 = vmatpush1.msra.mxu0 %v1573
          %1627 = vmatprep.subr.mxu0 0.0
          %1628 = vmatpush1.msra.mxu0 %v1572
          %1629 = vmatprep.subr.mxu0 0.0
          %1630 = vmatpush2.msra.mxu0 0.0
          %1631 = vmatprep.subr.mxu0 0.0
          %1632 = vmatpush2.msra.mxu0 0.0
          %1633 = vmatprep.subr.mxu0 0.0
          %1634 = vmatpush2.msra.mxu0 0.0
          %1635 = vmatprep.subr.mxu0 0.0
          %1636 = vmatpush2.msra.mxu0 0.0
          %1637 = vmatprep.subr.mxu0 0.0
          %1638 = vmatpush2.msra.mxu0 0.0
          %1639 = vmatprep.subr.mxu0 0.0
          %1640 = vmatpush2.msra.mxu0 0.0
          %1641 = vmatprep.subr.mxu0 0.0
          %1642 = vmatpush2.msra.mxu0 0.0
          %1643 = vmatprep.subr.mxu0 0.0
          %1644 = vmatpush2.msra.mxu0 0.0
          %1645 = vmatprep.subr.mxu0 0.0
          %1646 = vmatpush2.msra.mxu0 0.0
          %1647 = vmatprep.subr.mxu0 0.0
          %1648 = vmatpush2.msra.mxu0 0.0
          %1649 = vmatprep.subr.mxu0 0.0
          %1650 = vmatpush2.msra.mxu0 0.0
          %1651 = vmatprep.subr.mxu0 0.0
          %1652 = vmatpush2.msra.mxu0 0.0
          %1653 = vmatprep.subr.mxu0 0.0
          %1654 = vmatpush2.msra.mxu0 0.0
          %1655 = vmatprep.subr.mxu0 0.0
          %1656 = vmatpush2.msra.mxu0 0.0
          %1657 = vmatprep.subr.mxu0 0.0
          %1658 = vmatpush2.msra.mxu0 0.0
          %1659 = vmatprep.subr.mxu0 0.0
          %1660 = vmatpush2.msra.mxu0 0.0
          %1661 = vmatprep.mubr.f32.mxu0 0.0
          %1662 = vmatmul.mubr.f32.gmra.mxu0 %v1586
          %v1663 = vpop.f32.mrf.mxu0
          %v1664 = vadd.f32 %v1582, %v1663
          %v1665 = vpop.f32.mrf.mxu0
          %1666 = vmatprep.mubr.f32.mxu0 0.0
          %1667 = vmatmul.mubr.f32.gmra.mxu0 %v1589
          %v1668 = vpop.f32.mrf.mxu0
          %v1669 = vadd.f32 %v1582, %v1668
          %v1670 = vpop.f32.mrf.mxu0
          %1671 = vmatprep.mubr.f32.mxu0 0.0
          %1672 = vmatmul.mubr.f32.gmra.mxu0 %v1592
          %v1673 = vpop.f32.mrf.mxu0
          %v1674 = vadd.f32 %v1582, %v1673
          %v1675 = vpop.f32.mrf.mxu0
          %1676 = vmatprep.mubr.f32.mxu0 0.0
          %1677 = vmatmul.mubr.f32.gmra.mxu0 %v1595
          %v1678 = vpop.f32.mrf.mxu0
          %v1679 = vadd.f32 %v1582, %v1678
          %v1680 = vpop.f32.mrf.mxu0
          %1681 = vdwg.mxu0
          %v1682 = vxor.u32 %v1664, 2147483648
          %v1683 = vxor.u32 %v1669, 2147483648
          %v1684 = vxor.u32 %v1674, 2147483648
          %v1685 = vxor.u32 %v1679, 2147483648
          %v1686 = vmul.f32 %v1682, 1.442695
          %v1687 = vpow.pop %v1686
          %v1688 = vmul.f32 %v1683, 1.442695
          %v1689 = vpow.pop %v1688
          %v1690 = vmul.f32 %v1684, 1.442695
          %v1691 = vpow.pop %v1690
          %v1692 = vmul.f32 %v1685, 1.442695
          %v1693 = vpow.pop %v1692
          %v1694 = vadd.f32 %v1687, 1.0
          %v1695 = vadd.f32 %v1689, 1.0
          %v1696 = vadd.f32 %v1691, 1.0
          %v1697 = vadd.f32 %v1693, 1.0
          %v1698 = vrcp.pop %v1694
          %v1699 = vmul.f32 1.0, %v1698
          %v1700 = vrcp.pop %v1695
          %v1701 = vmul.f32 1.0, %v1700
          %v1702 = vrcp.pop %v1696
          %v1703 = vmul.f32 1.0, %v1702
          %v1704 = vrcp.pop %v1697
          %v1705 = vmul.f32 1.0, %v1704
          %v1706 = vmul.f32 %v1664, %v1699
          %v1707 = vmul.f32 %v1669, %v1701
          %v1708 = vmul.f32 %v1674, %v1703
          %v1709 = vmul.f32 %v1679, %v1705
          %1710 = vst.msk [vmem:[#allocation3] sm:$0xff] %vm1518, %v1706
          %1711 = vst.msk [vmem:[#allocation3 + $0x8] sm:$0xff] %vm1518, %v1707
          %1712 = vst.msk [vmem:[#allocation3 + $0x10] sm:$0xff] %vm1518, %v1708
          %1713 = vst.msk [vmem:[#allocation3 + $0x18] sm:$0xff] %vm1518, %v1709
          %v1714 = vld [vmem:[%s5] sm:$0xff]
          %v1715 = vld [vmem:[%s5 + $0x8] sm:$0xff]
          %v1716 = vld [vmem:[%s5 + $0x10] sm:$0xff]
          %v1717 = vld [vmem:[%s5 + $0x18] sm:$0xff]
          %v1718 = vld [vmem:[%s5 + $0x20] sm:$0xff]
          %v1719 = vld [vmem:[%s5 + $0x28] sm:$0xff]
          %v1720 = vld [vmem:[#allocation10] sm:$0x1]
          %1722 = vset.pattern.permute.xlu0 0
          %1723 = vperm.xlu0 %1722, %v1714
          %v1724 = vpop.permute.xlu0 %1723
          %1727 = vset.pattern.permute.xlu0 0
          %1728 = vperm.xlu0 %1727, %v1715
          %v1729 = vpop.permute.xlu0 %1728
          %1732 = vset.pattern.permute.xlu0 0
          %1733 = vperm.xlu0 %1732, %v1716
          %v1734 = vpop.permute.xlu0 %1733
          %1737 = vset.pattern.permute.xlu0 0
          %1738 = vperm.xlu0 %1737, %v1717
          %v1739 = vpop.permute.xlu0 %1738
          %1742 = vset.pattern.permute.xlu0 0
          %1743 = vperm.xlu0 %1742, %v1718
          %v1744 = vpop.permute.xlu0 %1743
          %1747 = vset.pattern.permute.xlu0 0
          %1748 = vperm.xlu0 %1747, %v1719
          %v1749 = vpop.permute.xlu0 %1748
          %v1752 = vlaneseq
          %v1753 = vshrl.u32 %v1752, 7
          %v1754 = vsub.s32 0, %v1753
          %v1755 = vrot.slane %v1720, %v1754
          %v1757 = vsub.f32 %v1724, %v1755
          %v1758 = vsub.f32 %v1729, %v1755
          %v1759 = vsub.f32 %v1734, %v1755
          %v1760 = vsub.f32 %v1739, %v1755
          %v1761 = vsub.f32 %v1744, %v1755
          %v1762 = vsub.f32 %v1749, %v1755
          %v1763 = vmul.f32 %v1757, %v1757
          %v1764 = vmul.f32 %v1758, %v1758
          %v1765 = vmul.f32 %v1759, %v1759
          %v1766 = vmul.f32 %v1760, %v1760
          %v1767 = vmul.f32 %v1761, %v1761
          %v1768 = vmul.f32 %v1762, %v1762
          %v1769 = vsub.f32 0.0, %v1763
          %v1770 = vsub.f32 0.0, %v1764
          %v1771 = vsub.f32 0.0, %v1765
          %v1772 = vsub.f32 0.0, %v1766
          %v1773 = vsub.f32 0.0, %v1767
          %v1774 = vsub.f32 0.0, %v1768
          %v1775 = vmul.f32 %v1769, 1.442695
          %v1776 = vpow.pop %v1775
          %v1777 = vmul.f32 %v1770, 1.442695
          %v1778 = vpow.pop %v1777
          %v1779 = vmul.f32 %v1771, 1.442695
          %v1780 = vpow.pop %v1779
          %v1781 = vmul.f32 %v1772, 1.442695
          %v1782 = vpow.pop %v1781
          %v1783 = vmul.f32 %v1773, 1.442695
          %v1784 = vpow.pop %v1783
          %v1785 = vmul.f32 %v1774, 1.442695
          %v1786 = vpow.pop %v1785
          %v1787 = vld [vmem:[#allocation16] sm:$0xff]
          %v1788 = vld [vmem:[#allocation16 + $0x8] sm:$0xff]
          %v1789 = vld [vmem:[#allocation16 + $0x10] sm:$0xf]
          %v1790 = vld [vmem:[#allocation17] sm:$0x1]
          %v1792 = vlaneseq
          %v1793 = vshrl.u32 %v1792, 7
          %v1794 = vsub.s32 0, %v1793
          %v1795 = vrot.slane %v1790, %v1794
          %vm1797 = vcmask 162816
          %v1799 = vsel %vm1797, %v1776, 0
          %v1802 = vsel %vm1797, %v1778, 0
          %v1805 = vsel %vm1797, %v1780, 0
          %v1808 = vsel %vm1797, %v1782, 0
          %v1811 = vsel %vm1797, %v1784, 0
          %v1814 = vsel %vm1797, %v1786, 0
          %vm1816 = vcmask 1043456
          %v1818 = vsel %vm1816, %v1789, 0
          %1820 = vmatprep.subr.mxu0 0.0
          %1821 = vmatpush1.msra.mxu0 0.0
          %1822 = vmatprep.subr.mxu0 0.0
          %1823 = vmatpush1.msra.mxu0 0.0
          %1824 = vmatprep.subr.mxu0 0.0
          %1825 = vmatpush1.msra.mxu0 0.0
          %1826 = vmatprep.subr.mxu0 0.0
          %1827 = vmatpush1.msra.mxu0 0.0
          %1828 = vmatprep.subr.mxu0 0.0
          %1829 = vmatpush1.msra.mxu0 0.0
          %1830 = vmatprep.subr.mxu0 0.0
          %1831 = vmatpush1.msra.mxu0 0.0
          %1832 = vmatprep.subr.mxu0 0.0
          %1833 = vmatpush1.msra.mxu0 0.0
          %1834 = vmatprep.subr.mxu0 0.0
          %1835 = vmatpush1.msra.mxu0 0.0
          %1836 = vmatprep.subr.mxu0 0.0
          %1837 = vmatpush1.msra.mxu0 0.0
          %1838 = vmatprep.subr.mxu0 0.0
          %1839 = vmatpush1.msra.mxu0 0.0
          %1840 = vmatprep.subr.mxu0 0.0
          %1841 = vmatpush1.msra.mxu0 0.0
          %1842 = vmatprep.subr.mxu0 0.0
          %1843 = vmatpush1.msra.mxu0 0.0
          %1844 = vmatprep.subr.mxu0 0.0
          %1845 = vmatpush1.msra.mxu0 0.0
          %1846 = vmatprep.subr.mxu0 0.0
          %1847 = vmatpush1.msra.mxu0 %v1818
          %1848 = vmatprep.subr.mxu0 0.0
          %1849 = vmatpush1.msra.mxu0 %v1788
          %1850 = vmatprep.subr.mxu0 0.0
          %1851 = vmatpush1.msra.mxu0 %v1787
          %1852 = vmatprep.subr.mxu0 0.0
          %1853 = vmatpush2.msra.mxu0 0.0
          %1854 = vmatprep.subr.mxu0 0.0
          %1855 = vmatpush2.msra.mxu0 0.0
          %1856 = vmatprep.subr.mxu0 0.0
          %1857 = vmatpush2.msra.mxu0 0.0
          %1858 = vmatprep.subr.mxu0 0.0
          %1859 = vmatpush2.msra.mxu0 0.0
          %1860 = vmatprep.subr.mxu0 0.0
          %1861 = vmatpush2.msra.mxu0 0.0
          %1862 = vmatprep.subr.mxu0 0.0
          %1863 = vmatpush2.msra.mxu0 0.0
          %1864 = vmatprep.subr.mxu0 0.0
          %1865 = vmatpush2.msra.mxu0 0.0
          %1866 = vmatprep.subr.mxu0 0.0
          %1867 = vmatpush2.msra.mxu0 0.0
          %1868 = vmatprep.subr.mxu0 0.0
          %1869 = vmatpush2.msra.mxu0 0.0
          %1870 = vmatprep.subr.mxu0 0.0
          %1871 = vmatpush2.msra.mxu0 0.0
          %1872 = vmatprep.subr.mxu0 0.0
          %1873 = vmatpush2.msra.mxu0 0.0
          %1874 = vmatprep.subr.mxu0 0.0
          %1875 = vmatpush2.msra.mxu0 0.0
          %1876 = vmatprep.subr.mxu0 0.0
          %1877 = vmatpush2.msra.mxu0 0.0
          %1878 = vmatprep.subr.mxu0 0.0
          %1879 = vmatpush2.msra.mxu0 0.0
          %1880 = vmatprep.subr.mxu0 0.0
          %1881 = vmatpush2.msra.mxu0 0.0
          %1882 = vmatprep.subr.mxu0 0.0
          %1883 = vmatpush2.msra.mxu0 0.0
          %1884 = vmatprep.mubr.f32.mxu0 0.0
          %1885 = vmatmul.mubr.f32.gmra.mxu0 %v1799
          %v1886 = vpop.f32.mrf.mxu0
          %v1887 = vadd.f32 %v1795, %v1886
          %v1888 = vpop.f32.mrf.mxu0
          %1889 = vmatprep.mubr.f32.mxu0 0.0
          %1890 = vmatmul.mubr.f32.gmra.mxu0 %v1802
          %v1891 = vpop.f32.mrf.mxu0
          %v1892 = vadd.f32 %v1795, %v1891
          %v1893 = vpop.f32.mrf.mxu0
          %1894 = vmatprep.mubr.f32.mxu0 0.0
          %1895 = vmatmul.mubr.f32.gmra.mxu0 %v1805
          %v1896 = vpop.f32.mrf.mxu0
          %v1897 = vadd.f32 %v1795, %v1896
          %v1898 = vpop.f32.mrf.mxu0
          %1899 = vmatprep.mubr.f32.mxu0 0.0
          %1900 = vmatmul.mubr.f32.gmra.mxu0 %v1808
          %v1901 = vpop.f32.mrf.mxu0
          %v1902 = vadd.f32 %v1795, %v1901
          %v1903 = vpop.f32.mrf.mxu0
          %1904 = vmatprep.mubr.f32.mxu0 0.0
          %1905 = vmatmul.mubr.f32.gmra.mxu0 %v1811
          %v1906 = vpop.f32.mrf.mxu0
          %v1907 = vadd.f32 %v1795, %v1906
          %v1908 = vpop.f32.mrf.mxu0
          %1909 = vmatprep.mubr.f32.mxu0 0.0
          %1910 = vmatmul.mubr.f32.gmra.mxu0 %v1814
          %v1911 = vpop.f32.mrf.mxu0
          %v1912 = vadd.f32 %v1795, %v1911
          %v1913 = vpop.f32.mrf.mxu0
          %1914 = vdwg.mxu0
          %v1915 = vxor.u32 %v1887, 2147483648
          %v1916 = vxor.u32 %v1892, 2147483648
          %v1917 = vxor.u32 %v1897, 2147483648
          %v1918 = vxor.u32 %v1902, 2147483648
          %v1919 = vxor.u32 %v1907, 2147483648
          %v1920 = vxor.u32 %v1912, 2147483648
          %v1921 = vmul.f32 %v1915, 1.442695
          %v1922 = vpow.pop %v1921
          %v1923 = vmul.f32 %v1916, 1.442695
          %v1924 = vpow.pop %v1923
          %v1925 = vmul.f32 %v1917, 1.442695
          %v1926 = vpow.pop %v1925
          %v1927 = vmul.f32 %v1918, 1.442695
          %v1928 = vpow.pop %v1927
          %v1929 = vmul.f32 %v1919, 1.442695
          %v1930 = vpow.pop %v1929
          %v1931 = vmul.f32 %v1920, 1.442695
          %v1932 = vpow.pop %v1931
          %v1933 = vadd.f32 %v1922, 1.0
          %v1934 = vadd.f32 %v1924, 1.0
          %v1935 = vadd.f32 %v1926, 1.0
          %v1936 = vadd.f32 %v1928, 1.0
          %v1937 = vadd.f32 %v1930, 1.0
          %v1938 = vadd.f32 %v1932, 1.0
          %v1939 = vrcp.pop %v1933
          %v1940 = vmul.f32 1.0, %v1939
          %v1941 = vrcp.pop %v1934
          %v1942 = vmul.f32 1.0, %v1941
          %v1943 = vrcp.pop %v1935
          %v1944 = vmul.f32 1.0, %v1943
          %v1945 = vrcp.pop %v1936
          %v1946 = vmul.f32 1.0, %v1945
          %v1947 = vrcp.pop %v1937
          %v1948 = vmul.f32 1.0, %v1947
          %v1949 = vrcp.pop %v1938
          %v1950 = vmul.f32 1.0, %v1949
          %v1951 = vmul.f32 %v1887, %v1940
          %v1952 = vmul.f32 %v1892, %v1942
          %v1953 = vmul.f32 %v1897, %v1944
          %v1954 = vmul.f32 %v1902, %v1946
          %v1955 = vmul.f32 %v1907, %v1948
          %v1956 = vmul.f32 %v1912, %v1950
          %1957 = vst.msk [vmem:[#allocation4] sm:$0xff] %vm1518, %v1951
          %1958 = vst.msk [vmem:[#allocation4 + $0x8] sm:$0xff] %vm1518, %v1952
          %1959 = vst.msk [vmem:[#allocation4 + $0x10] sm:$0xff] %vm1518, %v1953
          %1960 = vst.msk [vmem:[#allocation4 + $0x18] sm:$0xff] %vm1518, %v1954
          %1961 = vst.msk [vmem:[#allocation4 + $0x20] sm:$0xff] %vm1518, %v1955
          %1962 = vst.msk [vmem:[#allocation4 + $0x28] sm:$0xff] %vm1518, %v1956
        $region200: #{tpu_custom_call.1} parent=151 // pred_fallthru
          _
        %p1963 = scmp.lt.s32.totalorder %s86, 2
        // Predicated region
        $region201: #{tpu_custom_call.1} parent=151 // pred_check
          %p1964 = pneg %p1963
        $region202: #{tpu_custom_call.1} parent=151 // pred_check_branch
          %1966 = sbr.rel (%p1964) target = $region204
        $region203: #{tpu_custom_call.1} parent=151 // pred_region
          %v1967 = vld [vmem:[#allocation3] sm:$0xff]
          %v1968 = vld [vmem:[#allocation3 + $0x8] sm:$0xff]
          %v1969 = vld [vmem:[#allocation3 + $0x10] sm:$0xff]
          %v1970 = vld [vmem:[#allocation3 + $0x18] sm:$0xff]
          %v1971 = vld [vmem:[#allocation4] sm:$0xff]
          %v1972 = vld [vmem:[#allocation4 + $0x8] sm:$0xff]
          %v1973 = vld [vmem:[#allocation4 + $0x10] sm:$0xff]
          %v1974 = vld [vmem:[#allocation4 + $0x18] sm:$0xff]
          %v1975 = vld [vmem:[#allocation4 + $0x20] sm:$0xff]
          %v1976 = vld [vmem:[#allocation4 + $0x28] sm:$0xff]
          %v1977 = vld [vmem:[%s29] sm:$0xf]
          %v1978 = vld [vmem:[%s29 + $0x4] sm:$0xf]
          %v1979 = vld [vmem:[%s29 + $0x8] sm:$0xf]
          %v1980 = vld [vmem:[%s29 + $0xc] sm:$0xf]
          %v1981 = vld [vmem:[%s29 + $0x10] sm:$0xf]
          %v1982 = vld [vmem:[%s29 + $0x14] sm:$0xf]
          %v1983 = vld [vmem:[%s31] sm:$0xf]
          %v1984 = vld [vmem:[%s31 + $0x4] sm:$0xf]
          %v1985 = vld [vmem:[%s31 + $0x8] sm:$0xf]
          %v1986 = vld [vmem:[%s31 + $0xc] sm:$0xf]
          %v1987 = vld [vmem:[%s31 + $0x10] sm:$0xf]
          %v1988 = vld [vmem:[%s31 + $0x14] sm:$0xf]
          %v1989 = vld [vmem:[#allocation20] sm:$0xf]
          %v1990 = vld [vmem:[#allocation20 + $0x4] sm:$0xf]
          %v1991 = vld [vmem:[#allocation20 + $0x8] sm:$0xf]
          %v1992 = vld [vmem:[#allocation20 + $0xc] sm:$0xf]
          %v1993 = vld [vmem:[%s1344] sm:$0xff]
          %v1994 = vld [vmem:[%s1344 + $0x8] sm:$0xff]
          %v1995 = vld [vmem:[%s1344 + $0x10] sm:$0xff]
          %v1996 = vld [vmem:[%s1344 + $0x18] sm:$0xff]
          %v1997 = vld [vmem:[%s1351] sm:$0x1]
          %v1998 = vld [vmem:[%s1360] sm:$0xf]
          %v1999 = vld [vmem:[%s1360 + $0x4] sm:$0xf]
          %v2000 = vld [vmem:[%s1360 + $0x8] sm:$0xf]
          %v2001 = vld [vmem:[%s1360 + $0xc] sm:$0xf]
          %v2002 = vld [vmem:[%s1367] sm:$0x1]
          %v2003 = vld [vmem:[%s1374] sm:$0x1]
          %v2004 = vld [vmem:[%s1381] sm:$0x1]
          %v2006 = vlaneseq
          %v2007 = vshrl.u32 %v2006, 7
          %v2008 = vsub.s32 0, %v2007
          %v2009 = vrot.slane %v1997, %v2008
          %vm2011 = vcmask 261120
          %v2013 = vsel %vm2011, %v1967, 0
          %v2016 = vsel %vm2011, %v1968, 0
          %v2019 = vsel %vm2011, %v1969, 0
          %v2022 = vsel %vm2011, %v1970, 0
          %2024 = vmatprep.subr.mxu0 0.0
          %2025 = vmatpush1.msra.mxu0 0.0
          %2026 = vmatprep.subr.mxu0 0.0
          %2027 = vmatpush1.msra.mxu0 0.0
          %2028 = vmatprep.subr.mxu0 0.0
          %2029 = vmatpush1.msra.mxu0 0.0
          %2030 = vmatprep.subr.mxu0 0.0
          %2031 = vmatpush1.msra.mxu0 0.0
          %2032 = vmatprep.subr.mxu0 0.0
          %2033 = vmatpush1.msra.mxu0 0.0
          %2034 = vmatprep.subr.mxu0 0.0
          %2035 = vmatpush1.msra.mxu0 0.0
          %2036 = vmatprep.subr.mxu0 0.0
          %2037 = vmatpush1.msra.mxu0 0.0
          %2038 = vmatprep.subr.mxu0 0.0
          %2039 = vmatpush1.msra.mxu0 0.0
          %2040 = vmatprep.subr.mxu0 0.0
          %2041 = vmatpush1.msra.mxu0 0.0
          %2042 = vmatprep.subr.mxu0 0.0
          %2043 = vmatpush1.msra.mxu0 0.0
          %2044 = vmatprep.subr.mxu0 0.0
          %2045 = vmatpush1.msra.mxu0 0.0
          %2046 = vmatprep.subr.mxu0 0.0
          %2047 = vmatpush1.msra.mxu0 0.0
          %2048 = vmatprep.subr.mxu0 0.0
          %2049 = vmatpush1.msra.mxu0 %v1996
          %2050 = vmatprep.subr.mxu0 0.0
          %2051 = vmatpush1.msra.mxu0 %v1995
          %2052 = vmatprep.subr.mxu0 0.0
          %2053 = vmatpush1.msra.mxu0 %v1994
          %2054 = vmatprep.subr.mxu0 0.0
          %2055 = vmatpush1.msra.mxu0 %v1993
          %2056 = vmatprep.subr.mxu0 0.0
          %2057 = vmatpush2.msra.mxu0 0.0
          %2058 = vmatprep.subr.mxu0 0.0
          %2059 = vmatpush2.msra.mxu0 0.0
          %2060 = vmatprep.subr.mxu0 0.0
          %2061 = vmatpush2.msra.mxu0 0.0
          %2062 = vmatprep.subr.mxu0 0.0
          %2063 = vmatpush2.msra.mxu0 0.0
          %2064 = vmatprep.subr.mxu0 0.0
          %2065 = vmatpush2.msra.mxu0 0.0
          %2066 = vmatprep.subr.mxu0 0.0
          %2067 = vmatpush2.msra.mxu0 0.0
          %2068 = vmatprep.subr.mxu0 0.0
          %2069 = vmatpush2.msra.mxu0 0.0
          %2070 = vmatprep.subr.mxu0 0.0
          %2071 = vmatpush2.msra.mxu0 0.0
          %2072 = vmatprep.subr.mxu0 0.0
          %2073 = vmatpush2.msra.mxu0 0.0
          %2074 = vmatprep.subr.mxu0 0.0
          %2075 = vmatpush2.msra.mxu0 0.0
          %2076 = vmatprep.subr.mxu0 0.0
          %2077 = vmatpush2.msra.mxu0 0.0
          %2078 = vmatprep.subr.mxu0 0.0
          %2079 = vmatpush2.msra.mxu0 0.0
          %2080 = vmatprep.subr.mxu0 0.0
          %2081 = vmatpush2.msra.mxu0 0.0
          %2082 = vmatprep.subr.mxu0 0.0
          %2083 = vmatpush2.msra.mxu0 0.0
          %2084 = vmatprep.subr.mxu0 0.0
          %2085 = vmatpush2.msra.mxu0 0.0
          %2086 = vmatprep.subr.mxu0 0.0
          %2087 = vmatpush2.msra.mxu0 0.0
          %2088 = vmatprep.mubr.f32.mxu0 0.0
          %2089 = vmatmul.mubr.f32.gmra.mxu0 %v2013
          %v2090 = vpop.f32.mrf.mxu0
          %v2091 = vadd.f32 %v2009, %v2090
          %v2092 = vpop.f32.mrf.mxu0
          %2093 = vmatprep.mubr.f32.mxu0 0.0
          %2094 = vmatmul.mubr.f32.gmra.mxu0 %v2016
          %v2095 = vpop.f32.mrf.mxu0
          %v2096 = vadd.f32 %v2009, %v2095
          %v2097 = vpop.f32.mrf.mxu0
          %2098 = vmatprep.mubr.f32.mxu0 0.0
          %2099 = vmatmul.mubr.f32.gmra.mxu0 %v2019
          %v2100 = vpop.f32.mrf.mxu0
          %v2101 = vadd.f32 %v2009, %v2100
          %v2102 = vpop.f32.mrf.mxu0
          %2103 = vmatprep.mubr.f32.mxu0 0.0
          %2104 = vmatmul.mubr.f32.gmra.mxu0 %v2022
          %v2105 = vpop.f32.mrf.mxu0
          %v2106 = vadd.f32 %v2009, %v2105
          %v2107 = vpop.f32.mrf.mxu0
          %2108 = vdwg.mxu0
          %v2109 = vpack.c.bf16 %v2096, %v2091
          %v2110 = vpack.c.bf16 %v2106, %v2101
          %v2117 = vunpack.c.l.b16 %v1977
          %v2118 = vunpack.c.l.b16 %v1978
          %v2119 = vunpack.c.l.b16 %v1979
          %v2120 = vunpack.c.l.b16 %v1980
          %v2121 = vunpack.c.l.b16 %v1981
          %v2122 = vunpack.c.l.b16 %v1982
          %v2123 = vpack.c.b16 %v2118, %v2117
          %v2124 = vpack.c.b16 %v2120, %v2119
          %v2125 = vpack.c.b16 %v2122, %v2121
          %2128 = vrot.lane.b32.xlu0 %v2109, 96
          %v2129 = vpop.permute.xlu0 %2128
          %2130 = vrot.lane.b32.xlu0 %v2110, 96
          %v2131 = vpop.permute.xlu0 %2130
          %v2135 = vsel %vm2011, %v2123, 0
          %v2138 = vsel %vm2011, %v2124, 0
          %v2141 = vsel %vm2011, %v2125, 0
          %2143 = vmatprep.subr.bf16.mxu0 0
          %2144 = vmatpush1.bf16.msra.mxu0 0
          %2145 = vmatprep.subr.bf16.mxu0 0
          %2146 = vmatpush1.bf16.msra.mxu0 0
          %2147 = vmatprep.subr.bf16.mxu0 0
          %2148 = vmatpush1.bf16.msra.mxu0 0
          %2149 = vmatprep.subr.bf16.mxu0 0
          %2150 = vmatpush1.bf16.msra.mxu0 0
          %2151 = vmatprep.subr.bf16.mxu0 0
          %2152 = vmatpush1.bf16.msra.mxu0 0
          %2153 = vmatprep.subr.bf16.mxu0 0
          %2154 = vmatpush1.bf16.msra.mxu0 0
          %2155 = vmatprep.subr.bf16.mxu0 0
          %2156 = vmatpush1.bf16.msra.mxu0 %v2131
          %2157 = vmatprep.subr.bf16.mxu0 0
          %2158 = vmatpush1.bf16.msra.mxu0 %v2129
          %2159 = vmatprep.subr.bf16.mxu0 0
          %2160 = vmatpush2.bf16.msra.mxu0 0
          %2161 = vmatprep.subr.bf16.mxu0 0
          %2162 = vmatpush2.bf16.msra.mxu0 0
          %2163 = vmatprep.subr.bf16.mxu0 0
          %2164 = vmatpush2.bf16.msra.mxu0 0
          %2165 = vmatprep.subr.bf16.mxu0 0
          %2166 = vmatpush2.bf16.msra.mxu0 0
          %2167 = vmatprep.subr.bf16.mxu0 0
          %2168 = vmatpush2.bf16.msra.mxu0 0
          %2169 = vmatprep.subr.bf16.mxu0 0
          %2170 = vmatpush2.bf16.msra.mxu0 0
          %2171 = vmatprep.subr.bf16.mxu0 0
          %2172 = vmatpush2.bf16.msra.mxu0 0
          %2173 = vmatprep.subr.bf16.mxu0 0
          %2174 = vmatpush2.bf16.msra.mxu0 0
          %2175 = vmatprep.mubr.bf16.mxu0 0
          %2176 = vmatmul.mubr.bf16.gmra.mxu0 %v2135
          %v2177 = vpop.f32.mrf.mxu0
          %v2178 = vadd.f32 0.0, %v2177
          %v2179 = vpop.f32.mrf.mxu0
          %v2180 = vpop.f32.mrf.mxu0
          %v2181 = vadd.f32 0.0, %v2180
          %v2182 = vpop.f32.mrf.mxu0
          %2183 = vmatprep.mubr.bf16.mxu0 0
          %2184 = vmatmul.mubr.bf16.gmra.mxu0 %v2138
          %v2185 = vpop.f32.mrf.mxu0
          %v2186 = vadd.f32 0.0, %v2185
          %v2187 = vpop.f32.mrf.mxu0
          %v2188 = vpop.f32.mrf.mxu0
          %v2189 = vadd.f32 0.0, %v2188
          %v2190 = vpop.f32.mrf.mxu0
          %2191 = vmatprep.mubr.bf16.mxu0 0
          %2192 = vmatmul.mubr.bf16.gmra.mxu0 %v2141
          %v2193 = vpop.f32.mrf.mxu0
          %v2194 = vadd.f32 0.0, %v2193
          %v2195 = vpop.f32.mrf.mxu0
          %v2196 = vpop.f32.mrf.mxu0
          %v2197 = vadd.f32 0.0, %v2196
          %v2198 = vpop.f32.mrf.mxu0
          %2199 = vdwg.mxu0
          %v2200 = vpack.c.bf16 %v1972, %v1971
          %v2201 = vpack.c.bf16 %v1974, %v1973
          %v2202 = vpack.c.bf16 %v1976, %v1975
          %v2204 = vlaneseq
          %v2205 = vshrl.u32 %v2204, 7
          %v2206 = vsub.s32 0, %v2205
          %v2207 = vrot.slane %v2002, %v2206
          %v2213 = vunpack.c.l.b16 %v1998
          %v2214 = vunpack.c.l.b16 %v1999
          %v2215 = vunpack.c.l.b16 %v2000
          %v2216 = vunpack.c.l.b16 %v2001
          %v2217 = vpack.c.b16 %v2214, %v2213
          %v2218 = vpack.c.b16 %v2216, %v2215
          %v2222 = vsel %vm2011, %v2200, 0
          %v2225 = vsel %vm2011, %v2201, 0
          %v2228 = vsel %vm2011, %v2202, 0
          %2230 = vmatprep.subr.bf16.mxu0 0
          %2231 = vmatpush1.bf16.msra.mxu0 0
          %2232 = vmatprep.subr.bf16.mxu0 0
          %2233 = vmatpush1.bf16.msra.mxu0 0
          %2234 = vmatprep.subr.bf16.mxu0 0
          %2235 = vmatpush1.bf16.msra.mxu0 0
          %2236 = vmatprep.subr.bf16.mxu0 0
          %2237 = vmatpush1.bf16.msra.mxu0 0
          %2238 = vmatprep.subr.bf16.mxu0 0
          %2239 = vmatpush1.bf16.msra.mxu0 0
          %2240 = vmatprep.subr.bf16.mxu0 0
          %2241 = vmatpush1.bf16.msra.mxu0 0
          %2242 = vmatprep.subr.bf16.mxu0 0
          %2243 = vmatpush1.bf16.msra.mxu0 %v2218
          %2244 = vmatprep.subr.bf16.mxu0 0
          %2245 = vmatpush1.bf16.msra.mxu0 %v2217
          %2246 = vmatprep.subr.bf16.mxu0 0
          %2247 = vmatpush2.bf16.msra.mxu0 0
          %2248 = vmatprep.subr.bf16.mxu0 0
          %2249 = vmatpush2.bf16.msra.mxu0 0
          %2250 = vmatprep.subr.bf16.mxu0 0
          %2251 = vmatpush2.bf16.msra.mxu0 0
          %2252 = vmatprep.subr.bf16.mxu0 0
          %2253 = vmatpush2.bf16.msra.mxu0 0
          %2254 = vmatprep.subr.bf16.mxu0 0
          %2255 = vmatpush2.bf16.msra.mxu0 0
          %2256 = vmatprep.subr.bf16.mxu0 0
          %2257 = vmatpush2.bf16.msra.mxu0 0
          %2258 = vmatprep.subr.bf16.mxu0 0
          %2259 = vmatpush2.bf16.msra.mxu0 0
          %2260 = vmatprep.subr.bf16.mxu0 0
          %2261 = vmatpush2.bf16.msra.mxu0 0
          %2262 = vmatprep.mubr.bf16.mxu0 0
          %2263 = vmatmul.mubr.bf16.gmra.mxu0 %v2222
          %v2264 = vpop.f32.mrf.mxu0
          %v2265 = vadd.f32 %v2207, %v2264
          %v2266 = vpop.f32.mrf.mxu0
          %v2267 = vpop.f32.mrf.mxu0
          %v2268 = vadd.f32 %v2207, %v2267
          %v2269 = vpop.f32.mrf.mxu0
          %2270 = vmatprep.mubr.bf16.mxu0 0
          %2271 = vmatmul.mubr.bf16.gmra.mxu0 %v2225
          %v2272 = vpop.f32.mrf.mxu0
          %v2273 = vadd.f32 %v2207, %v2272
          %v2274 = vpop.f32.mrf.mxu0
          %v2275 = vpop.f32.mrf.mxu0
          %v2276 = vadd.f32 %v2207, %v2275
          %v2277 = vpop.f32.mrf.mxu0
          %2278 = vmatprep.mubr.bf16.mxu0 0
          %2279 = vmatmul.mubr.bf16.gmra.mxu0 %v2228
          %v2280 = vpop.f32.mrf.mxu0
          %v2281 = vadd.f32 %v2207, %v2280
          %v2282 = vpop.f32.mrf.mxu0
          %v2283 = vpop.f32.mrf.mxu0
          %v2284 = vadd.f32 %v2207, %v2283
          %v2285 = vpop.f32.mrf.mxu0
          %2286 = vdwg.mxu0
          %v2293 = vunpack.c.l.b16 %v1983
          %v2294 = vunpack.c.l.b16 %v1984
          %v2295 = vunpack.c.l.b16 %v1985
          %v2296 = vunpack.c.l.b16 %v1986
          %v2297 = vunpack.c.l.b16 %v1987
          %v2298 = vunpack.c.l.b16 %v1988
          %v2299 = vpack.c.b16 %v2294, %v2293
          %v2300 = vpack.c.b16 %v2296, %v2295
          %v2301 = vpack.c.b16 %v2298, %v2297
          %v2303 = vsel %vm2011, %v2299, 0
          %v2306 = vsel %vm2011, %v2300, 0
          %v2309 = vsel %vm2011, %v2301, 0
          %2311 = vmatprep.subr.bf16.mxu0 0
          %2312 = vmatpush1.bf16.msra.mxu0 0
          %2313 = vmatprep.subr.bf16.mxu0 0
          %2314 = vmatpush1.bf16.msra.mxu0 0
          %2315 = vmatprep.subr.bf16.mxu0 0
          %2316 = vmatpush1.bf16.msra.mxu0 0
          %2317 = vmatprep.subr.bf16.mxu0 0
          %2318 = vmatpush1.bf16.msra.mxu0 0
          %2319 = vmatprep.subr.bf16.mxu0 0
          %2320 = vmatpush1.bf16.msra.mxu0 0
          %2321 = vmatprep.subr.bf16.mxu0 0
          %2322 = vmatpush1.bf16.msra.mxu0 0
          %2323 = vmatprep.subr.bf16.mxu0 0
          %2324 = vmatpush1.bf16.msra.mxu0 %v2110
          %2325 = vmatprep.subr.bf16.mxu0 0
          %2326 = vmatpush1.bf16.msra.mxu0 %v2109
          %2327 = vmatprep.subr.bf16.mxu0 0
          %2328 = vmatpush2.bf16.msra.mxu0 0
          %2329 = vmatprep.subr.bf16.mxu0 0
          %2330 = vmatpush2.bf16.msra.mxu0 0
          %2331 = vmatprep.subr.bf16.mxu0 0
          %2332 = vmatpush2.bf16.msra.mxu0 0
          %2333 = vmatprep.subr.bf16.mxu0 0
          %2334 = vmatpush2.bf16.msra.mxu0 0
          %2335 = vmatprep.subr.bf16.mxu0 0
          %2336 = vmatpush2.bf16.msra.mxu0 0
          %2337 = vmatprep.subr.bf16.mxu0 0
          %2338 = vmatpush2.bf16.msra.mxu0 0
          %2339 = vmatprep.subr.bf16.mxu0 0
          %2340 = vmatpush2.bf16.msra.mxu0 0
          %2341 = vmatprep.subr.bf16.mxu0 0
          %2342 = vmatpush2.bf16.msra.mxu0 0
          %2343 = vmatprep.mubr.bf16.mxu0 0
          %2344 = vmatmul.mubr.bf16.gmra.mxu0 %v2303
          %v2345 = vpop.f32.mrf.mxu0
          %v2346 = vadd.f32 %v2178, %v2345
          %v2347 = vpop.f32.mrf.mxu0
          %v2348 = vpop.f32.mrf.mxu0
          %v2349 = vadd.f32 %v2181, %v2348
          %v2350 = vpop.f32.mrf.mxu0
          %2351 = vmatprep.mubr.bf16.mxu0 0
          %2352 = vmatmul.mubr.bf16.gmra.mxu0 %v2306
          %v2353 = vpop.f32.mrf.mxu0
          %v2354 = vadd.f32 %v2186, %v2353
          %v2355 = vpop.f32.mrf.mxu0
          %v2356 = vpop.f32.mrf.mxu0
          %v2357 = vadd.f32 %v2189, %v2356
          %v2358 = vpop.f32.mrf.mxu0
          %2359 = vmatprep.mubr.bf16.mxu0 0
          %2360 = vmatmul.mubr.bf16.gmra.mxu0 %v2309
          %v2361 = vpop.f32.mrf.mxu0
          %v2362 = vadd.f32 %v2194, %v2361
          %v2363 = vpop.f32.mrf.mxu0
          %v2364 = vpop.f32.mrf.mxu0
          %v2365 = vadd.f32 %v2197, %v2364
          %v2366 = vpop.f32.mrf.mxu0
          %2367 = vdwg.mxu0
          %v2368 = vadd.f32 %v2346, %v2265
          %v2369 = vadd.f32 %v2349, %v2268
          %v2370 = vadd.f32 %v2354, %v2273
          %v2371 = vadd.f32 %v2357, %v2276
          %v2372 = vadd.f32 %v2362, %v2281
          %v2373 = vadd.f32 %v2365, %v2284
          %v2374 = vxor.u32 %v2368, 2147483648
          %v2375 = vxor.u32 %v2369, 2147483648
          %v2376 = vxor.u32 %v2370, 2147483648
          %v2377 = vxor.u32 %v2371, 2147483648
          %v2378 = vxor.u32 %v2372, 2147483648
          %v2379 = vxor.u32 %v2373, 2147483648
          %v2380 = vmul.f32 %v2374, 1.442695
          %v2381 = vpow.pop %v2380
          %v2382 = vmul.f32 %v2375, 1.442695
          %v2383 = vpow.pop %v2382
          %v2384 = vmul.f32 %v2376, 1.442695
          %v2385 = vpow.pop %v2384
          %v2386 = vmul.f32 %v2377, 1.442695
          %v2387 = vpow.pop %v2386
          %v2388 = vmul.f32 %v2378, 1.442695
          %v2389 = vpow.pop %v2388
          %v2390 = vmul.f32 %v2379, 1.442695
          %v2391 = vpow.pop %v2390
          %v2392 = vadd.f32 %v2381, 1.0
          %v2393 = vadd.f32 %v2383, 1.0
          %v2394 = vadd.f32 %v2385, 1.0
          %v2395 = vadd.f32 %v2387, 1.0
          %v2396 = vadd.f32 %v2389, 1.0
          %v2397 = vadd.f32 %v2391, 1.0
          %v2398 = vrcp.pop %v2392
          %v2399 = vmul.f32 1.0, %v2398
          %v2400 = vrcp.pop %v2393
          %v2401 = vmul.f32 1.0, %v2400
          %v2402 = vrcp.pop %v2394
          %v2403 = vmul.f32 1.0, %v2402
          %v2404 = vrcp.pop %v2395
          %v2405 = vmul.f32 1.0, %v2404
          %v2406 = vrcp.pop %v2396
          %v2407 = vmul.f32 1.0, %v2406
          %v2408 = vrcp.pop %v2397
          %v2409 = vmul.f32 1.0, %v2408
          %v2410 = vmul.f32 %v2368, %v2399
          %v2411 = vmul.f32 %v2369, %v2401
          %v2412 = vmul.f32 %v2370, %v2403
          %v2413 = vmul.f32 %v2371, %v2405
          %v2414 = vmul.f32 %v2372, %v2407
          %v2415 = vmul.f32 %v2373, %v2409
          %2422 = vrot.lane.b32.xlu0 %v2178, 96
          %v2423 = vpop.permute.xlu0 %2422
          %2424 = vrot.lane.b32.xlu0 %v2181, 96
          %v2425 = vpop.permute.xlu0 %2424
          %2426 = vrot.lane.b32.xlu0 %v2186, 96
          %v2427 = vpop.permute.xlu0 %2426
          %2428 = vrot.lane.b32.xlu0 %v2189, 96
          %v2429 = vpop.permute.xlu0 %2428
          %2430 = vrot.lane.b32.xlu0 %v2194, 96
          %v2431 = vpop.permute.xlu0 %2430
          %2432 = vrot.lane.b32.xlu0 %v2197, 96
          %v2433 = vpop.permute.xlu0 %2432
          %v2440 = vmul.f32 %v2410, %v2423
          %v2441 = vmul.f32 %v2411, %v2425
          %v2442 = vmul.f32 %v2412, %v2427
          %v2443 = vmul.f32 %v2413, %v2429
          %v2444 = vmul.f32 %v2414, %v2431
          %v2445 = vmul.f32 %v2415, %v2433
          %2452 = vrot.lane.b32.xlu0 %v2440, 32
          %v2453 = vpop.permute.xlu0 %2452
          %2454 = vrot.lane.b32.xlu0 %v2441, 32
          %v2455 = vpop.permute.xlu0 %2454
          %2456 = vrot.lane.b32.xlu0 %v2442, 32
          %v2457 = vpop.permute.xlu0 %2456
          %2458 = vrot.lane.b32.xlu0 %v2443, 32
          %v2459 = vpop.permute.xlu0 %2458
          %2460 = vrot.lane.b32.xlu0 %v2444, 32
          %v2461 = vpop.permute.xlu0 %2460
          %2462 = vrot.lane.b32.xlu0 %v2445, 32
          %v2463 = vpop.permute.xlu0 %2462
          %v2470 = vsel %vm2011, %v2410, %v2453
          %v2471 = vsel %vm2011, %v2411, %v2455
          %v2472 = vsel %vm2011, %v2412, %v2457
          %v2473 = vsel %vm2011, %v2413, %v2459
          %v2474 = vsel %vm2011, %v2414, %v2461
          %v2475 = vsel %vm2011, %v2415, %v2463
          %v2476 = vpack.c.bf16 %v2471, %v2470
          %v2477 = vpack.c.bf16 %v2473, %v2472
          %v2478 = vpack.c.bf16 %v2475, %v2474
          %v2483 = vunpack.c.l.b16 %v1989
          %v2484 = vunpack.c.l.b16 %v1990
          %v2485 = vunpack.c.l.b16 %v1991
          %v2486 = vunpack.c.l.b16 %v1992
          %v2487 = vpack.c.b16 %v2484, %v2483
          %v2488 = vpack.c.b16 %v2486, %v2485
          %vm2489 = vcmask 392192
          %v2491 = vsel %vm2489, %v2487, 0
          %v2494 = vsel %vm2489, %v2488, 0
          %2496 = vmatprep.subr.bf16.mxu0 0
          %2497 = vmatpush1.bf16.msra.mxu0 0
          %2498 = vmatprep.subr.bf16.mxu0 0
          %2499 = vmatpush1.bf16.msra.mxu0 0
          %2500 = vmatprep.subr.bf16.mxu0 0
          %2501 = vmatpush1.bf16.msra.mxu0 0
          %2502 = vmatprep.subr.bf16.mxu0 0
          %2503 = vmatpush1.bf16.msra.mxu0 0
          %2504 = vmatprep.subr.bf16.mxu0 0
          %2505 = vmatpush1.bf16.msra.mxu0 0
          %2506 = vmatprep.subr.bf16.mxu0 0
          %2507 = vmatpush1.bf16.msra.mxu0 %v2478
          %2508 = vmatprep.subr.bf16.mxu0 0
          %2509 = vmatpush1.bf16.msra.mxu0 %v2477
          %2510 = vmatprep.subr.bf16.mxu0 0
          %2511 = vmatpush1.bf16.msra.mxu0 %v2476
          %2512 = vmatprep.subr.bf16.mxu0 0
          %2513 = vmatpush2.bf16.msra.mxu0 0
          %2514 = vmatprep.subr.bf16.mxu0 0
          %2515 = vmatpush2.bf16.msra.mxu0 0
          %2516 = vmatprep.subr.bf16.mxu0 0
          %2517 = vmatpush2.bf16.msra.mxu0 0
          %2518 = vmatprep.subr.bf16.mxu0 0
          %2519 = vmatpush2.bf16.msra.mxu0 0
          %2520 = vmatprep.subr.bf16.mxu0 0
          %2521 = vmatpush2.bf16.msra.mxu0 0
          %2522 = vmatprep.subr.bf16.mxu0 0
          %2523 = vmatpush2.bf16.msra.mxu0 0
          %2524 = vmatprep.subr.bf16.mxu0 0
          %2525 = vmatpush2.bf16.msra.mxu0 0
          %2526 = vmatprep.subr.bf16.mxu0 0
          %2527 = vmatpush2.bf16.msra.mxu0 0
          %2528 = vmatprep.mubr.bf16.mxu0 0
          %2529 = vmatmul.mubr.bf16.gmra.mxu0 %v2491
          %v2530 = vpop.f32.mrf.mxu0
          %v2531 = vadd.f32 0.0, %v2530
          %v2532 = vpop.f32.mrf.mxu0
          %v2533 = vpop.f32.mrf.mxu0
          %v2534 = vadd.f32 0.0, %v2533
          %v2535 = vpop.f32.mrf.mxu0
          %2536 = vmatprep.mubr.bf16.mxu0 0
          %2537 = vmatmul.mubr.bf16.gmra.mxu0 %v2494
          %v2538 = vpop.f32.mrf.mxu0
          %v2539 = vadd.f32 0.0, %v2538
          %v2540 = vpop.f32.mrf.mxu0
          %v2541 = vpop.f32.mrf.mxu0
          %v2542 = vadd.f32 0.0, %v2541
          %v2543 = vpop.f32.mrf.mxu0
          %2544 = vdwg.mxu0
          %v2545 = vadd.f32 %v2531, 1e-08
          %v2546 = vadd.f32 %v2534, 1e-08
          %v2547 = vadd.f32 %v2539, 1e-08
          %v2548 = vadd.f32 %v2542, 1e-08
          %v2549 = vrcp.pop %v2545
          %v2550 = vrcp.pop %v2546
          %v2551 = vrcp.pop %v2547
          %v2552 = vrcp.pop %v2548
          %2557 = vrot.lane.b32.xlu0 %v2549, 32
          %v2558 = vpop.permute.xlu0 %2557
          %2559 = vrot.lane.b32.xlu0 %v2550, 32
          %v2560 = vpop.permute.xlu0 %2559
          %2561 = vrot.lane.b32.xlu0 %v2551, 32
          %v2562 = vpop.permute.xlu0 %2561
          %2563 = vrot.lane.b32.xlu0 %v2552, 32
          %v2564 = vpop.permute.xlu0 %2563
          %v2569 = vmul.f32 %v2531, %v2558
          %v2570 = vmul.f32 %v2534, %v2560
          %v2571 = vmul.f32 %v2539, %v2562
          %v2572 = vmul.f32 %v2542, %v2564
          %2577 = vrot.lane.b32.xlu0 %v2569, 64
          %v2578 = vpop.permute.xlu0 %2577
          %2579 = vrot.lane.b32.xlu0 %v2570, 64
          %v2580 = vpop.permute.xlu0 %2579
          %2581 = vrot.lane.b32.xlu0 %v2571, 64
          %v2582 = vpop.permute.xlu0 %2581
          %2583 = vrot.lane.b32.xlu0 %v2572, 64
          %v2584 = vpop.permute.xlu0 %2583
          %v2589 = vadd.f32 %v2091, %v2578
          %v2590 = vadd.f32 %v2096, %v2580
          %v2591 = vadd.f32 %v2101, %v2582
          %v2592 = vadd.f32 %v2106, %v2584
          %v2594 = vlaneseq
          %v2595 = vshrl.u32 %v2594, 7
          %v2596 = vsub.s32 0, %v2595
          %v2597 = vrot.slane %v2003, %v2596
          %2598 = vrot.lane.b32.xlu0 %v2597, 96
          %v2599 = vpop.permute.xlu0 %2598
          %v2601 = vmul.f32 %v2589, %v2599
          %v2602 = vmul.f32 %v2590, %v2599
          %v2603 = vmul.f32 %v2591, %v2599
          %v2604 = vmul.f32 %v2592, %v2599
          %v2606 = vlaneseq
          %v2607 = vshrl.u32 %v2606, 7
          %v2608 = vsub.s32 0, %v2607
          %v2609 = vrot.slane %v2004, %v2608
          %2610 = vrot.lane.b32.xlu0 %v2609, 96
          %v2611 = vpop.permute.xlu0 %2610
          %v2613 = vadd.f32 %v2601, %v2611
          %v2614 = vadd.f32 %v2602, %v2611
          %v2615 = vadd.f32 %v2603, %v2611
          %v2616 = vadd.f32 %v2604, %v2611
          %v2617 = vxor.u32 %v2613, 2147483648
          %v2618 = vxor.u32 %v2614, 2147483648
          %v2619 = vxor.u32 %v2615, 2147483648
          %v2620 = vxor.u32 %v2616, 2147483648
          %v2621 = vmul.f32 %v2617, 1.442695
          %v2622 = vpow.pop %v2621
          %v2623 = vmul.f32 %v2618, 1.442695
          %v2624 = vpow.pop %v2623
          %v2625 = vmul.f32 %v2619, 1.442695
          %v2626 = vpow.pop %v2625
          %v2627 = vmul.f32 %v2620, 1.442695
          %v2628 = vpow.pop %v2627
          %v2629 = vadd.f32 %v2622, 1.0
          %v2630 = vadd.f32 %v2624, 1.0
          %v2631 = vadd.f32 %v2626, 1.0
          %v2632 = vadd.f32 %v2628, 1.0
          %v2633 = vrcp.pop %v2629
          %v2634 = vmul.f32 1.0, %v2633
          %v2635 = vrcp.pop %v2630
          %v2636 = vmul.f32 1.0, %v2635
          %v2637 = vrcp.pop %v2631
          %v2638 = vmul.f32 1.0, %v2637
          %v2639 = vrcp.pop %v2632
          %v2640 = vmul.f32 1.0, %v2639
          %v2641 = vmul.f32 %v2613, %v2634
          %v2642 = vmul.f32 %v2614, %v2636
          %v2643 = vmul.f32 %v2615, %v2638
          %v2644 = vmul.f32 %v2616, %v2640
          %2645 = vrot.lane.b32.xlu0 %v1967, 96
          %v2646 = vpop.permute.xlu0 %2645
          %2647 = vrot.lane.b32.xlu0 %v1968, 96
          %v2648 = vpop.permute.xlu0 %2647
          %2649 = vrot.lane.b32.xlu0 %v1969, 96
          %v2650 = vpop.permute.xlu0 %2649
          %2651 = vrot.lane.b32.xlu0 %v1970, 96
          %v2652 = vpop.permute.xlu0 %2651
          %v2657 = vadd.f32 %v2641, %v2646
          %v2658 = vadd.f32 %v2642, %v2648
          %v2659 = vadd.f32 %v2643, %v2650
          %v2660 = vadd.f32 %v2644, %v2652
          %2665 = vrot.lane.b32.xlu0 %v2657, 32
          %v2666 = vpop.permute.xlu0 %2665
          %2667 = vrot.lane.b32.xlu0 %v2658, 32
          %v2668 = vpop.permute.xlu0 %2667
          %2669 = vrot.lane.b32.xlu0 %v2659, 32
          %v2670 = vpop.permute.xlu0 %2669
          %2671 = vrot.lane.b32.xlu0 %v2660, 32
          %v2672 = vpop.permute.xlu0 %2671
          %2677 = vst.msk [vmem:[#allocation3] sm:$0xff] %vm2011, %v2666
          %2678 = vst.msk [vmem:[#allocation3 + $0x8] sm:$0xff] %vm2011, %v2668
          %2679 = vst.msk [vmem:[#allocation3 + $0x10] sm:$0xff] %vm2011, %v2670
          %2680 = vst.msk [vmem:[#allocation3 + $0x18] sm:$0xff] %vm2011, %v2672
        $region204: #{tpu_custom_call.1} parent=151 // pred_fallthru
          _
        %v2681 = vld [vmem:[#allocation2] sm:$0xff]
        %v2682 = vld [vmem:[#allocation2 + $0x8] sm:$0xff]
        %v2683 = vld [vmem:[#allocation3] sm:$0xff]
        %v2684 = vld [vmem:[#allocation3 + $0x8] sm:$0xff]
        %v2685 = vld [vmem:[#allocation3 + $0x10] sm:$0xff]
        %v2686 = vld [vmem:[#allocation3 + $0x18] sm:$0xff]
        %v2687 = vld [vmem:[%s23] sm:$0xf]
        %v2688 = vld [vmem:[%s23 + $0x4] sm:$0xf]
        %v2689 = vld [vmem:[%s23 + $0x8] sm:$0xf]
        %v2690 = vld [vmem:[%s23 + $0xc] sm:$0xf]
        %v2691 = vld [vmem:[%s25] sm:$0xf]
        %v2692 = vld [vmem:[%s25 + $0x4] sm:$0xf]
        %v2693 = vld [vmem:[%s25 + $0x8] sm:$0xf]
        %v2694 = vld [vmem:[%s25 + $0xc] sm:$0xf]
        %v2695 = vld [vmem:[#allocation19] sm:$0xf]
        %v2696 = vld [vmem:[#allocation19 + $0x4] sm:$0xf]
        %v2697 = vld [vmem:[%s1388] sm:$0xff]
        %v2698 = vld [vmem:[%s1388 + $0x8] sm:$0xff]
        %v2699 = vld [vmem:[%s1388 + $0x10] sm:$0xff]
        %v2700 = vld [vmem:[%s1388 + $0x18] sm:$0xff]
        %v2701 = vld [vmem:[%s1391] sm:$0x1]
        %v2702 = vld [vmem:[%s1396] sm:$0xf]
        %v2703 = vld [vmem:[%s1396 + $0x4] sm:$0xf]
        %v2704 = vld [vmem:[%s1396 + $0x8] sm:$0xf]
        %v2705 = vld [vmem:[%s1396 + $0xc] sm:$0xf]
        %v2706 = vld [vmem:[%s1399] sm:$0x1]
        %v2707 = vld [vmem:[%s1402] sm:$0x1]
        %v2708 = vld [vmem:[%s1405] sm:$0x1]
        %v2710 = vlaneseq
        %v2711 = vshrl.u32 %v2710, 7
        %v2712 = vsub.s32 0, %v2711
        %v2713 = vrot.slane %v2701, %v2712
        %vm2715 = vcmask 261120
        %v2717 = vsel %vm2715, %v2681, 0
        %v2720 = vsel %vm2715, %v2682, 0
        %2722 = vmatprep.subr.mxu0 0.0
        %2723 = vmatpush1.msra.mxu0 0.0
        %2724 = vmatprep.subr.mxu0 0.0
        %2725 = vmatpush1.msra.mxu0 0.0
        %2726 = vmatprep.subr.mxu0 0.0
        %2727 = vmatpush1.msra.mxu0 0.0
        %2728 = vmatprep.subr.mxu0 0.0
        %2729 = vmatpush1.msra.mxu0 0.0
        %2730 = vmatprep.subr.mxu0 0.0
        %2731 = vmatpush1.msra.mxu0 0.0
        %2732 = vmatprep.subr.mxu0 0.0
        %2733 = vmatpush1.msra.mxu0 0.0
        %2734 = vmatprep.subr.mxu0 0.0
        %2735 = vmatpush1.msra.mxu0 0.0
        %2736 = vmatprep.subr.mxu0 0.0
        %2737 = vmatpush1.msra.mxu0 0.0
        %2738 = vmatprep.subr.mxu0 0.0
        %2739 = vmatpush1.msra.mxu0 0.0
        %2740 = vmatprep.subr.mxu0 0.0
        %2741 = vmatpush1.msra.mxu0 0.0
        %2742 = vmatprep.subr.mxu0 0.0
        %2743 = vmatpush1.msra.mxu0 0.0
        %2744 = vmatprep.subr.mxu0 0.0
        %2745 = vmatpush1.msra.mxu0 0.0
        %2746 = vmatprep.subr.mxu0 0.0
        %2747 = vmatpush1.msra.mxu0 %v2700
        %2748 = vmatprep.subr.mxu0 0.0
        %2749 = vmatpush1.msra.mxu0 %v2699
        %2750 = vmatprep.subr.mxu0 0.0
        %2751 = vmatpush1.msra.mxu0 %v2698
        %2752 = vmatprep.subr.mxu0 0.0
        %2753 = vmatpush1.msra.mxu0 %v2697
        %2754 = vmatprep.subr.mxu0 0.0
        %2755 = vmatpush2.msra.mxu0 0.0
        %2756 = vmatprep.subr.mxu0 0.0
        %2757 = vmatpush2.msra.mxu0 0.0
        %2758 = vmatprep.subr.mxu0 0.0
        %2759 = vmatpush2.msra.mxu0 0.0
        %2760 = vmatprep.subr.mxu0 0.0
        %2761 = vmatpush2.msra.mxu0 0.0
        %2762 = vmatprep.subr.mxu0 0.0
        %2763 = vmatpush2.msra.mxu0 0.0
        %2764 = vmatprep.subr.mxu0 0.0
        %2765 = vmatpush2.msra.mxu0 0.0
        %2766 = vmatprep.subr.mxu0 0.0
        %2767 = vmatpush2.msra.mxu0 0.0
        %2768 = vmatprep.subr.mxu0 0.0
        %2769 = vmatpush2.msra.mxu0 0.0
        %2770 = vmatprep.subr.mxu0 0.0
        %2771 = vmatpush2.msra.mxu0 0.0
        %2772 = vmatprep.subr.mxu0 0.0
        %2773 = vmatpush2.msra.mxu0 0.0
        %2774 = vmatprep.subr.mxu0 0.0
        %2775 = vmatpush2.msra.mxu0 0.0
        %2776 = vmatprep.subr.mxu0 0.0
        %2777 = vmatpush2.msra.mxu0 0.0
        %2778 = vmatprep.subr.mxu0 0.0
        %2779 = vmatpush2.msra.mxu0 0.0
        %2780 = vmatprep.subr.mxu0 0.0
        %2781 = vmatpush2.msra.mxu0 0.0
        %2782 = vmatprep.subr.mxu0 0.0
        %2783 = vmatpush2.msra.mxu0 0.0
        %2784 = vmatprep.subr.mxu0 0.0
        %2785 = vmatpush2.msra.mxu0 0.0
        %2786 = vmatprep.mubr.f32.mxu0 0.0
        %2787 = vmatmul.mubr.f32.gmra.mxu0 %v2717
        %v2788 = vpop.f32.mrf.mxu0
        %v2789 = vadd.f32 %v2713, %v2788
        %v2790 = vpop.f32.mrf.mxu0
        %2791 = vmatprep.mubr.f32.mxu0 0.0
        %2792 = vmatmul.mubr.f32.gmra.mxu0 %v2720
        %v2793 = vpop.f32.mrf.mxu0
        %v2794 = vadd.f32 %v2713, %v2793
        %v2795 = vpop.f32.mrf.mxu0
        %2796 = vdwg.mxu0
        %v2797 = vpack.c.bf16 %v2794, %v2789
        %v2802 = vunpack.c.l.b16 %v2687
        %v2803 = vunpack.c.l.b16 %v2688
        %v2804 = vunpack.c.l.b16 %v2689
        %v2805 = vunpack.c.l.b16 %v2690
        %v2806 = vpack.c.b16 %v2803, %v2802
        %v2807 = vpack.c.b16 %v2805, %v2804
        %2809 = vrot.lane.b32.xlu0 %v2797, 96
        %v2810 = vpop.permute.xlu0 %2809
        %vm2812 = vcmask 130048
        %v2814 = vsel %vm2812, %v2806, 0
        %v2817 = vsel %vm2812, %v2807, 0
        %2819 = vmatprep.subr.bf16.mxu0 0
        %2820 = vmatpush1.bf16.msra.mxu0 0
        %2821 = vmatprep.subr.bf16.mxu0 0
        %2822 = vmatpush1.bf16.msra.mxu0 0
        %2823 = vmatprep.subr.bf16.mxu0 0
        %2824 = vmatpush1.bf16.msra.mxu0 0
        %2825 = vmatprep.subr.bf16.mxu0 0
        %2826 = vmatpush1.bf16.msra.mxu0 0
        %2827 = vmatprep.subr.bf16.mxu0 0
        %2828 = vmatpush1.bf16.msra.mxu0 0
        %2829 = vmatprep.subr.bf16.mxu0 0
        %2830 = vmatpush1.bf16.msra.mxu0 0
        %2831 = vmatprep.subr.bf16.mxu0 0
        %2832 = vmatpush1.bf16.msra.mxu0 0
        %2833 = vmatprep.subr.bf16.mxu0 0
        %2834 = vmatpush1.bf16.msra.mxu0 %v2810
        %2835 = vmatprep.subr.bf16.mxu0 0
        %2836 = vmatpush2.bf16.msra.mxu0 0
        %2837 = vmatprep.subr.bf16.mxu0 0
        %2838 = vmatpush2.bf16.msra.mxu0 0
        %2839 = vmatprep.subr.bf16.mxu0 0
        %2840 = vmatpush2.bf16.msra.mxu0 0
        %2841 = vmatprep.subr.bf16.mxu0 0
        %2842 = vmatpush2.bf16.msra.mxu0 0
        %2843 = vmatprep.subr.bf16.mxu0 0
        %2844 = vmatpush2.bf16.msra.mxu0 0
        %2845 = vmatprep.subr.bf16.mxu0 0
        %2846 = vmatpush2.bf16.msra.mxu0 0
        %2847 = vmatprep.subr.bf16.mxu0 0
        %2848 = vmatpush2.bf16.msra.mxu0 0
        %2849 = vmatprep.subr.bf16.mxu0 0
        %2850 = vmatpush2.bf16.msra.mxu0 0
        %2851 = vmatprep.mubr.bf16.mxu0 0
        %2852 = vmatmul.mubr.bf16.gmra.mxu0 %v2814
        %v2853 = vpop.f32.mrf.mxu0
        %v2854 = vadd.f32 0.0, %v2853
        %v2855 = vpop.f32.mrf.mxu0
        %v2856 = vpop.f32.mrf.mxu0
        %v2857 = vadd.f32 0.0, %v2856
        %v2858 = vpop.f32.mrf.mxu0
        %2859 = vmatprep.mubr.bf16.mxu0 0
        %2860 = vmatmul.mubr.bf16.gmra.mxu0 %v2817
        %v2861 = vpop.f32.mrf.mxu0
        %v2862 = vadd.f32 0.0, %v2861
        %v2863 = vpop.f32.mrf.mxu0
        %v2864 = vpop.f32.mrf.mxu0
        %v2865 = vadd.f32 0.0, %v2864
        %v2866 = vpop.f32.mrf.mxu0
        %2867 = vdwg.mxu0
        %v2868 = vpack.c.bf16 %v2684, %v2683
        %v2869 = vpack.c.bf16 %v2686, %v2685
        %v2871 = vlaneseq
        %v2872 = vshrl.u32 %v2871, 7
        %v2873 = vsub.s32 0, %v2872
        %v2874 = vrot.slane %v2706, %v2873
        %v2880 = vunpack.c.l.b16 %v2702
        %v2881 = vunpack.c.l.b16 %v2703
        %v2882 = vunpack.c.l.b16 %v2704
        %v2883 = vunpack.c.l.b16 %v2705
        %v2884 = vpack.c.b16 %v2881, %v2880
        %v2885 = vpack.c.b16 %v2883, %v2882
        %v2889 = vsel %vm2715, %v2868, 0
        %v2892 = vsel %vm2715, %v2869, 0
        %2894 = vmatprep.subr.bf16.mxu0 0
        %2895 = vmatpush1.bf16.msra.mxu0 0
        %2896 = vmatprep.subr.bf16.mxu0 0
        %2897 = vmatpush1.bf16.msra.mxu0 0
        %2898 = vmatprep.subr.bf16.mxu0 0
        %2899 = vmatpush1.bf16.msra.mxu0 0
        %2900 = vmatprep.subr.bf16.mxu0 0
        %2901 = vmatpush1.bf16.msra.mxu0 0
        %2902 = vmatprep.subr.bf16.mxu0 0
        %2903 = vmatpush1.bf16.msra.mxu0 0
        %2904 = vmatprep.subr.bf16.mxu0 0
        %2905 = vmatpush1.bf16.msra.mxu0 0
        %2906 = vmatprep.subr.bf16.mxu0 0
        %2907 = vmatpush1.bf16.msra.mxu0 %v2885
        %2908 = vmatprep.subr.bf16.mxu0 0
        %2909 = vmatpush1.bf16.msra.mxu0 %v2884
        %2910 = vmatprep.subr.bf16.mxu0 0
        %2911 = vmatpush2.bf16.msra.mxu0 0
        %2912 = vmatprep.subr.bf16.mxu0 0
        %2913 = vmatpush2.bf16.msra.mxu0 0
        %2914 = vmatprep.subr.bf16.mxu0 0
        %2915 = vmatpush2.bf16.msra.mxu0 0
        %2916 = vmatprep.subr.bf16.mxu0 0
        %2917 = vmatpush2.bf16.msra.mxu0 0
        %2918 = vmatprep.subr.bf16.mxu0 0
        %2919 = vmatpush2.bf16.msra.mxu0 0
        %2920 = vmatprep.subr.bf16.mxu0 0
        %2921 = vmatpush2.bf16.msra.mxu0 0
        %2922 = vmatprep.subr.bf16.mxu0 0
        %2923 = vmatpush2.bf16.msra.mxu0 0
        %2924 = vmatprep.subr.bf16.mxu0 0
        %2925 = vmatpush2.bf16.msra.mxu0 0
        %2926 = vmatprep.mubr.bf16.mxu0 0
        %2927 = vmatmul.mubr.bf16.gmra.mxu0 %v2889
        %v2928 = vpop.f32.mrf.mxu0
        %v2929 = vadd.f32 %v2874, %v2928
        %v2930 = vpop.f32.mrf.mxu0
        %v2931 = vpop.f32.mrf.mxu0
        %v2932 = vadd.f32 %v2874, %v2931
        %v2933 = vpop.f32.mrf.mxu0
        %2934 = vmatprep.mubr.bf16.mxu0 0
        %2935 = vmatmul.mubr.bf16.gmra.mxu0 %v2892
        %v2936 = vpop.f32.mrf.mxu0
        %v2937 = vadd.f32 %v2874, %v2936
        %v2938 = vpop.f32.mrf.mxu0
        %v2939 = vpop.f32.mrf.mxu0
        %v2940 = vadd.f32 %v2874, %v2939
        %v2941 = vpop.f32.mrf.mxu0
        %2942 = vdwg.mxu0
        %v2947 = vunpack.c.l.b16 %v2691
        %v2948 = vunpack.c.l.b16 %v2692
        %v2949 = vunpack.c.l.b16 %v2693
        %v2950 = vunpack.c.l.b16 %v2694
        %v2951 = vpack.c.b16 %v2948, %v2947
        %v2952 = vpack.c.b16 %v2950, %v2949
        %v2954 = vsel %vm2812, %v2951, 0
        %v2957 = vsel %vm2812, %v2952, 0
        %2959 = vmatprep.subr.bf16.mxu0 0
        %2960 = vmatpush1.bf16.msra.mxu0 0
        %2961 = vmatprep.subr.bf16.mxu0 0
        %2962 = vmatpush1.bf16.msra.mxu0 0
        %2963 = vmatprep.subr.bf16.mxu0 0
        %2964 = vmatpush1.bf16.msra.mxu0 0
        %2965 = vmatprep.subr.bf16.mxu0 0
        %2966 = vmatpush1.bf16.msra.mxu0 0
        %2967 = vmatprep.subr.bf16.mxu0 0
        %2968 = vmatpush1.bf16.msra.mxu0 0
        %2969 = vmatprep.subr.bf16.mxu0 0
        %2970 = vmatpush1.bf16.msra.mxu0 0
        %2971 = vmatprep.subr.bf16.mxu0 0
        %2972 = vmatpush1.bf16.msra.mxu0 0
        %2973 = vmatprep.subr.bf16.mxu0 0
        %2974 = vmatpush1.bf16.msra.mxu0 %v2797
        %2975 = vmatprep.subr.bf16.mxu0 0
        %2976 = vmatpush2.bf16.msra.mxu0 0
        %2977 = vmatprep.subr.bf16.mxu0 0
        %2978 = vmatpush2.bf16.msra.mxu0 0
        %2979 = vmatprep.subr.bf16.mxu0 0
        %2980 = vmatpush2.bf16.msra.mxu0 0
        %2981 = vmatprep.subr.bf16.mxu0 0
        %2982 = vmatpush2.bf16.msra.mxu0 0
        %2983 = vmatprep.subr.bf16.mxu0 0
        %2984 = vmatpush2.bf16.msra.mxu0 0
        %2985 = vmatprep.subr.bf16.mxu0 0
        %2986 = vmatpush2.bf16.msra.mxu0 0
        %2987 = vmatprep.subr.bf16.mxu0 0
        %2988 = vmatpush2.bf16.msra.mxu0 0
        %2989 = vmatprep.subr.bf16.mxu0 0
        %2990 = vmatpush2.bf16.msra.mxu0 0
        %2991 = vmatprep.mubr.bf16.mxu0 0
        %2992 = vmatmul.mubr.bf16.gmra.mxu0 %v2954
        %v2993 = vpop.f32.mrf.mxu0
        %v2994 = vadd.f32 %v2854, %v2993
        %v2995 = vpop.f32.mrf.mxu0
        %v2996 = vpop.f32.mrf.mxu0
        %v2997 = vadd.f32 %v2857, %v2996
        %v2998 = vpop.f32.mrf.mxu0
        %2999 = vmatprep.mubr.bf16.mxu0 0
        %3000 = vmatmul.mubr.bf16.gmra.mxu0 %v2957
        %v3001 = vpop.f32.mrf.mxu0
        %v3002 = vadd.f32 %v2862, %v3001
        %v3003 = vpop.f32.mrf.mxu0
        %v3004 = vpop.f32.mrf.mxu0
        %v3005 = vadd.f32 %v2865, %v3004
        %v3006 = vpop.f32.mrf.mxu0
        %3007 = vdwg.mxu0
        %v3008 = vadd.f32 %v2994, %v2929
        %v3009 = vadd.f32 %v2997, %v2932
        %v3010 = vadd.f32 %v3002, %v2937
        %v3011 = vadd.f32 %v3005, %v2940
        %v3012 = vxor.u32 %v3008, 2147483648
        %v3013 = vxor.u32 %v3009, 2147483648
        %v3014 = vxor.u32 %v3010, 2147483648
        %v3015 = vxor.u32 %v3011, 2147483648
        %v3016 = vmul.f32 %v3012, 1.442695
        %v3017 = vpow.pop %v3016
        %v3018 = vmul.f32 %v3013, 1.442695
        %v3019 = vpow.pop %v3018
        %v3020 = vmul.f32 %v3014, 1.442695
        %v3021 = vpow.pop %v3020
        %v3022 = vmul.f32 %v3015, 1.442695
        %v3023 = vpow.pop %v3022
        %v3024 = vadd.f32 %v3017, 1.0
        %v3025 = vadd.f32 %v3019, 1.0
        %v3026 = vadd.f32 %v3021, 1.0
        %v3027 = vadd.f32 %v3023, 1.0
        %v3028 = vrcp.pop %v3024
        %v3029 = vmul.f32 1.0, %v3028
        %v3030 = vrcp.pop %v3025
        %v3031 = vmul.f32 1.0, %v3030
        %v3032 = vrcp.pop %v3026
        %v3033 = vmul.f32 1.0, %v3032
        %v3034 = vrcp.pop %v3027
        %v3035 = vmul.f32 1.0, %v3034
        %v3036 = vmul.f32 %v3008, %v3029
        %v3037 = vmul.f32 %v3009, %v3031
        %v3038 = vmul.f32 %v3010, %v3033
        %v3039 = vmul.f32 %v3011, %v3035
        %3044 = vrot.lane.b32.xlu0 %v2854, 96
        %v3045 = vpop.permute.xlu0 %3044
        %3046 = vrot.lane.b32.xlu0 %v2857, 96
        %v3047 = vpop.permute.xlu0 %3046
        %3048 = vrot.lane.b32.xlu0 %v2862, 96
        %v3049 = vpop.permute.xlu0 %3048
        %3050 = vrot.lane.b32.xlu0 %v2865, 96
        %v3051 = vpop.permute.xlu0 %3050
        %v3056 = vmul.f32 %v3036, %v3045
        %v3057 = vmul.f32 %v3037, %v3047
        %v3058 = vmul.f32 %v3038, %v3049
        %v3059 = vmul.f32 %v3039, %v3051
        %3064 = vrot.lane.b32.xlu0 %v3056, 32
        %v3065 = vpop.permute.xlu0 %3064
        %3066 = vrot.lane.b32.xlu0 %v3057, 32
        %v3067 = vpop.permute.xlu0 %3066
        %3068 = vrot.lane.b32.xlu0 %v3058, 32
        %v3069 = vpop.permute.xlu0 %3068
        %3070 = vrot.lane.b32.xlu0 %v3059, 32
        %v3071 = vpop.permute.xlu0 %3070
        %v3076 = vsel %vm2715, %v3036, %v3065
        %v3077 = vsel %vm2715, %v3037, %v3067
        %v3078 = vsel %vm2715, %v3038, %v3069
        %v3079 = vsel %vm2715, %v3039, %v3071
        %v3080 = vpack.c.bf16 %v3077, %v3076
        %v3081 = vpack.c.bf16 %v3079, %v3078
        %v3084 = vunpack.c.l.b16 %v2695
        %v3085 = vunpack.c.l.b16 %v2696
        %v3086 = vpack.c.b16 %v3085, %v3084
        %v3088 = vsel %vm2715, %v3086, 0
        %3090 = vmatprep.subr.bf16.mxu0 0
        %3091 = vmatpush1.bf16.msra.mxu0 0
        %3092 = vmatprep.subr.bf16.mxu0 0
        %3093 = vmatpush1.bf16.msra.mxu0 0
        %3094 = vmatprep.subr.bf16.mxu0 0
        %3095 = vmatpush1.bf16.msra.mxu0 0
        %3096 = vmatprep.subr.bf16.mxu0 0
        %3097 = vmatpush1.bf16.msra.mxu0 0
        %3098 = vmatprep.subr.bf16.mxu0 0
        %3099 = vmatpush1.bf16.msra.mxu0 0
        %3100 = vmatprep.subr.bf16.mxu0 0
        %3101 = vmatpush1.bf16.msra.mxu0 0
        %3102 = vmatprep.subr.bf16.mxu0 0
        %3103 = vmatpush1.bf16.msra.mxu0 %v3081
        %3104 = vmatprep.subr.bf16.mxu0 0
        %3105 = vmatpush1.bf16.msra.mxu0 %v3080
        %3106 = vmatprep.subr.bf16.mxu0 0
        %3107 = vmatpush2.bf16.msra.mxu0 0
        %3108 = vmatprep.subr.bf16.mxu0 0
        %3109 = vmatpush2.bf16.msra.mxu0 0
        %3110 = vmatprep.subr.bf16.mxu0 0
        %3111 = vmatpush2.bf16.msra.mxu0 0
        %3112 = vmatprep.subr.bf16.mxu0 0
        %3113 = vmatpush2.bf16.msra.mxu0 0
        %3114 = vmatprep.subr.bf16.mxu0 0
        %3115 = vmatpush2.bf16.msra.mxu0 0
        %3116 = vmatprep.subr.bf16.mxu0 0
        %3117 = vmatpush2.bf16.msra.mxu0 0
        %3118 = vmatprep.subr.bf16.mxu0 0
        %3119 = vmatpush2.bf16.msra.mxu0 0
        %3120 = vmatprep.subr.bf16.mxu0 0
        %3121 = vmatpush2.bf16.msra.mxu0 0
        %3122 = vmatprep.mubr.bf16.mxu0 0
        %3123 = vmatmul.mubr.bf16.gmra.mxu0 %v3088
        %v3124 = vpop.f32.mrf.mxu0
        %v3125 = vadd.f32 0.0, %v3124
        %v3126 = vpop.f32.mrf.mxu0
        %v3127 = vpop.f32.mrf.mxu0
        %v3128 = vadd.f32 0.0, %v3127
        %v3129 = vpop.f32.mrf.mxu0
        %3130 = vdwg.mxu0
        %v3131 = vadd.f32 %v3125, 1e-08
        %v3132 = vadd.f32 %v3128, 1e-08
        %v3133 = vrcp.pop %v3131
        %v3134 = vrcp.pop %v3132
        %3137 = vrot.lane.b32.xlu0 %v3133, 32
        %v3138 = vpop.permute.xlu0 %3137
        %3139 = vrot.lane.b32.xlu0 %v3134, 32
        %v3140 = vpop.permute.xlu0 %3139
        %v3143 = vmul.f32 %v3125, %v3138
        %v3144 = vmul.f32 %v3128, %v3140
        %3147 = vrot.lane.b32.xlu0 %v3143, 64
        %v3148 = vpop.permute.xlu0 %3147
        %3149 = vrot.lane.b32.xlu0 %v3144, 64
        %v3150 = vpop.permute.xlu0 %3149
        %v3153 = vadd.f32 %v2789, %v3148
        %v3154 = vadd.f32 %v2794, %v3150
        %v3156 = vlaneseq
        %v3157 = vshrl.u32 %v3156, 7
        %v3158 = vsub.s32 0, %v3157
        %v3159 = vrot.slane %v2707, %v3158
        %3160 = vrot.lane.b32.xlu0 %v3159, 96
        %v3161 = vpop.permute.xlu0 %3160
        %v3163 = vmul.f32 %v3153, %v3161
        %v3164 = vmul.f32 %v3154, %v3161
        %v3166 = vlaneseq
        %v3167 = vshrl.u32 %v3166, 7
        %v3168 = vsub.s32 0, %v3167
        %v3169 = vrot.slane %v2708, %v3168
        %3170 = vrot.lane.b32.xlu0 %v3169, 96
        %v3171 = vpop.permute.xlu0 %3170
        %v3173 = vadd.f32 %v3163, %v3171
        %v3174 = vadd.f32 %v3164, %v3171
        %v3175 = vxor.u32 %v3173, 2147483648
        %v3176 = vxor.u32 %v3174, 2147483648
        %v3177 = vmul.f32 %v3175, 1.442695
        %v3178 = vpow.pop %v3177
        %v3179 = vmul.f32 %v3176, 1.442695
        %v3180 = vpow.pop %v3179
        %v3181 = vadd.f32 %v3178, 1.0
        %v3182 = vadd.f32 %v3180, 1.0
        %v3183 = vrcp.pop %v3181
        %v3184 = vmul.f32 1.0, %v3183
        %v3185 = vrcp.pop %v3182
        %v3186 = vmul.f32 1.0, %v3185
        %v3187 = vmul.f32 %v3173, %v3184
        %v3188 = vmul.f32 %v3174, %v3186
        %3189 = vrot.lane.b32.xlu0 %v2681, 96
        %v3190 = vpop.permute.xlu0 %3189
        %3191 = vrot.lane.b32.xlu0 %v2682, 96
        %v3192 = vpop.permute.xlu0 %3191
        %v3195 = vadd.f32 %v3187, %v3190
        %v3196 = vadd.f32 %v3188, %v3192
        %3199 = vrot.lane.b32.xlu0 %v3195, 32
        %v3200 = vpop.permute.xlu0 %3199
        %3201 = vrot.lane.b32.xlu0 %v3196, 32
        %v3202 = vpop.permute.xlu0 %3201
        %3205 = vst.msk [vmem:[#allocation2] sm:$0xff] %vm2715, %v3200
        %3206 = vst.msk [vmem:[#allocation2 + $0x8] sm:$0xff] %vm2715, %v3202
        %p3207 = scmp.eq.s32.totalorder %s86, 3
        // Predicated region
        $region205: #{tpu_custom_call.1} parent=151 // pred_check
          %p3208 = pneg %p3207
        $region206: #{tpu_custom_call.1} parent=151 // pred_check_branch
          %3210 = sbr.rel (%p3208) target = $region208
        $region207: #{tpu_custom_call.1} parent=151 // pred_region
          %v3211 = vld [vmem:[#allocation22] sm:$0x1]
          %v3212 = vld [vmem:[#allocation2] sm:$0xff]
          %v3213 = vld [vmem:[#allocation2 + $0x8] sm:$0xff]
          %v3214 = vpack.c.bf16 %v3213, %v3212
          %v3216 = vsel %vm2812, %v3211, 0
          %3218 = vmatprep.subr.bf16.mxu0 0
          %3219 = vmatpush1.bf16.msra.mxu0 0
          %3220 = vmatprep.subr.bf16.mxu0 0
          %3221 = vmatpush1.bf16.msra.mxu0 0
          %3222 = vmatprep.subr.bf16.mxu0 0
          %3223 = vmatpush1.bf16.msra.mxu0 0
          %3224 = vmatprep.subr.bf16.mxu0 0
          %3225 = vmatpush1.bf16.msra.mxu0 0
          %3226 = vmatprep.subr.bf16.mxu0 0
          %3227 = vmatpush1.bf16.msra.mxu0 0
          %3228 = vmatprep.subr.bf16.mxu0 0
          %3229 = vmatpush1.bf16.msra.mxu0 0
          %3230 = vmatprep.subr.bf16.mxu0 0
          %3231 = vmatpush1.bf16.msra.mxu0 0
          %3232 = vmatprep.subr.bf16.mxu0 0
          %3233 = vmatpush1.bf16.msra.mxu0 %v3214
          %3234 = vmatprep.subr.bf16.mxu0 0
          %3235 = vmatpush2.bf16.msra.mxu0 0
          %3236 = vmatprep.subr.bf16.mxu0 0
          %3237 = vmatpush2.bf16.msra.mxu0 0
          %3238 = vmatprep.subr.bf16.mxu0 0
          %3239 = vmatpush2.bf16.msra.mxu0 0
          %3240 = vmatprep.subr.bf16.mxu0 0
          %3241 = vmatpush2.bf16.msra.mxu0 0
          %3242 = vmatprep.subr.bf16.mxu0 0
          %3243 = vmatpush2.bf16.msra.mxu0 0
          %3244 = vmatprep.subr.bf16.mxu0 0
          %3245 = vmatpush2.bf16.msra.mxu0 0
          %3246 = vmatprep.subr.bf16.mxu0 0
          %3247 = vmatpush2.bf16.msra.mxu0 0
          %3248 = vmatprep.subr.bf16.mxu0 0
          %3249 = vmatpush2.bf16.msra.mxu0 0
          %3250 = vmatprep.mubr.bf16.mxu0 0
          %3251 = vmatmul.mubr.bf16.gmra.mxu0 %v3216
          %v3252 = vpop.f32.mrf.mxu0
          %v3253 = vadd.f32 0.0, %v3252
          %v3254 = vpop.f32.mrf.mxu0
          %v3255 = vpop.f32.mrf.mxu0
          %v3256 = vpop.f32.mrf.mxu0
          %3257 = vdwg.mxu0
          %v3258 = vld [vmem:[%s37] sm:$0x3]
          %3260 = vset.pattern.permute.xlu0 0
          %3261 = vperm.xlu0 %3260, %v3258
          %v3262 = vpop.permute.xlu0 %3261
          %v3264 = vmul.f32 %v3253, %v3262
          %v3265 = vld [vmem:[%s39] sm:$0xff]
          %v3266 = vld [vmem:[%s39 + $0x8] sm:$0xff]
          %v3267 = vld [vmem:[%s39 + $0x10] sm:$0xff]
          %v3268 = vld [vmem:[%s39 + $0x18] sm:$0xff]
          %v3269 = vld [vmem:[#allocation5] sm:$0x1]
          %v3271 = vlaneseq
          %v3272 = vshrl.u32 %v3271, 7
          %v3273 = vsub.s32 0, %v3272
          %v3274 = vrot.slane %v3269, %v3273
          %v3277 = vsel %vm2715, %v3264, 0
          %3279 = vmatprep.subr.mxu0 0.0
          %3280 = vmatpush1.msra.mxu0 0.0
          %3281 = vmatprep.subr.mxu0 0.0
          %3282 = vmatpush1.msra.mxu0 0.0
          %3283 = vmatprep.subr.mxu0 0.0
          %3284 = vmatpush1.msra.mxu0 0.0
          %3285 = vmatprep.subr.mxu0 0.0
          %3286 = vmatpush1.msra.mxu0 0.0
          %3287 = vmatprep.subr.mxu0 0.0
          %3288 = vmatpush1.msra.mxu0 0.0
          %3289 = vmatprep.subr.mxu0 0.0
          %3290 = vmatpush1.msra.mxu0 0.0
          %3291 = vmatprep.subr.mxu0 0.0
          %3292 = vmatpush1.msra.mxu0 0.0
          %3293 = vmatprep.subr.mxu0 0.0
          %3294 = vmatpush1.msra.mxu0 0.0
          %3295 = vmatprep.subr.mxu0 0.0
          %3296 = vmatpush1.msra.mxu0 0.0
          %3297 = vmatprep.subr.mxu0 0.0
          %3298 = vmatpush1.msra.mxu0 0.0
          %3299 = vmatprep.subr.mxu0 0.0
          %3300 = vmatpush1.msra.mxu0 0.0
          %3301 = vmatprep.subr.mxu0 0.0
          %3302 = vmatpush1.msra.mxu0 0.0
          %3303 = vmatprep.subr.mxu0 0.0
          %3304 = vmatpush1.msra.mxu0 %v3268
          %3305 = vmatprep.subr.mxu0 0.0
          %3306 = vmatpush1.msra.mxu0 %v3267
          %3307 = vmatprep.subr.mxu0 0.0
          %3308 = vmatpush1.msra.mxu0 %v3266
          %3309 = vmatprep.subr.mxu0 0.0
          %3310 = vmatpush1.msra.mxu0 %v3265
          %3311 = vmatprep.subr.mxu0 0.0
          %3312 = vmatpush2.msra.mxu0 0.0
          %3313 = vmatprep.subr.mxu0 0.0
          %3314 = vmatpush2.msra.mxu0 0.0
          %3315 = vmatprep.subr.mxu0 0.0
          %3316 = vmatpush2.msra.mxu0 0.0
          %3317 = vmatprep.subr.mxu0 0.0
          %3318 = vmatpush2.msra.mxu0 0.0
          %3319 = vmatprep.subr.mxu0 0.0
          %3320 = vmatpush2.msra.mxu0 0.0
          %3321 = vmatprep.subr.mxu0 0.0
          %3322 = vmatpush2.msra.mxu0 0.0
          %3323 = vmatprep.subr.mxu0 0.0
          %3324 = vmatpush2.msra.mxu0 0.0
          %3325 = vmatprep.subr.mxu0 0.0
          %3326 = vmatpush2.msra.mxu0 0.0
          %3327 = vmatprep.subr.mxu0 0.0
          %3328 = vmatpush2.msra.mxu0 0.0
          %3329 = vmatprep.subr.mxu0 0.0
          %3330 = vmatpush2.msra.mxu0 0.0
          %3331 = vmatprep.subr.mxu0 0.0
          %3332 = vmatpush2.msra.mxu0 0.0
          %3333 = vmatprep.subr.mxu0 0.0
          %3334 = vmatpush2.msra.mxu0 0.0
          %3335 = vmatprep.subr.mxu0 0.0
          %3336 = vmatpush2.msra.mxu0 0.0
          %3337 = vmatprep.subr.mxu0 0.0
          %3338 = vmatpush2.msra.mxu0 0.0
          %3339 = vmatprep.subr.mxu0 0.0
          %3340 = vmatpush2.msra.mxu0 0.0
          %3341 = vmatprep.subr.mxu0 0.0
          %3342 = vmatpush2.msra.mxu0 0.0
          %3343 = vmatprep.mubr.f32.mxu0 0.0
          %3344 = vmatmul.mubr.f32.gmra.mxu0 %v3277
          %v3345 = vpop.f32.mrf.mxu0
          %v3346 = vadd.f32 %v3274, %v3345
          %v3347 = vpop.f32.mrf.mxu0
          %3348 = vdwg.mxu0
          %vm3349 = vcmask 1024
          %3350 = vst.msk [vmem:[%s67] sm:$0x3] %vm3349, %v3346
        $region208: #{tpu_custom_call.1} parent=151 // pred_fallthru
          _
        // Predicated region
        $region209: #{tpu_custom_call.1} parent=151 // pred_check
          %p3351 = pneg %p876
        $region210: #{tpu_custom_call.1} parent=151 // pred_check_branch
          %3353 = sbr.rel (%p3351) target = $region212
        $region211: #{tpu_custom_call.1} parent=151 // pred_region
          _
        $region212: #{tpu_custom_call.1} parent=151 // pred_fallthru
          _
        // Predicated region
        $region213: #{tpu_custom_call.1} parent=151 // pred_check
          %p3354 = pneg %p876
        $region214: #{tpu_custom_call.1} parent=151 // pred_check_branch
          %3356 = sbr.rel (%p3354) target = $region216
        $region215: #{tpu_custom_call.1} parent=151 // pred_region
          _
        $region216: #{tpu_custom_call.1} parent=151 // pred_fallthru
          _
      $region152: #{tpu_custom_call.1} parent=5 // pred_fallthru
        _
      %p3357 = scmp.le.s32.totalorder 2, %s81
      // Predicated region
      $region217: #{tpu_custom_call.1} parent=5 // pred_check
        %p3358 = pneg %p3357
      $region218: #{tpu_custom_call.1} parent=5 // pred_check_branch
        %3360 = sbr.rel (%p3358) target = $region220
      $region219: #{tpu_custom_call.1} parent=5 // pred_region
        %s3361 = ssub.s32 %s81, 2
      $region220: #{tpu_custom_call.1} parent=5 // pred_fallthru
        _
    $region6: #{tpu_custom_call.1} parent=1 // loop_footer
      %s85 = sadd.s32 1, %s81
    $region7: #{tpu_custom_call.1} parent=1 // loop_footer_branch
      %80 = sbr.rel target = $region3
    $region8: #{tpu_custom_call.1} parent=1 // loop_exit
      _
    %3362 = vsyncpa [#allocation7], 1
    %s3363 = scalar_lea.sflag [#allocation7], 1
    %3364 = vsyncpa %s3363, 1
    %3365 = vsyncpa [#allocation9], 1
    %3366 = vsyncpa [#allocation12], 1
    %3367 = vsyncpa [#allocation15], 1
    %3368 = vsyncpa [#allocation18], 1
    %3369 = vsyncpa [#allocation21], 1

</llo_original>
